<compile_context>
chip_gen: v5e
topology: v5e:2x2
jax: 0.10.0
libtpu: 0.0.40
codegen_flags: <defaults>
</compile_context>

<pallas_src>
import functools

import jax
import jax.numpy as jnp
from jax.experimental import pallas as pl
from jax.experimental.pallas import tpu as pltpu

_PADR = 8  # slack rows on flat spatial buffers (shifted conv taps read <= 1 row past the end)


# ----------------------------------------------------------------------------
# Fused per-stage kernel (one image per grid step):
#   ConvTranspose2d(k=2,s=2,bias=False) -> [concat enc] -> 3x3 conv+b+LReLU -> 3x3 conv+b+LReLU
# All spatial data is flat row-major in "super-pixel" form: a (R, Wu, C) image is stored as
# (R * Wu/2, 2C); this is byte-identical to NHWC so XLA-side reshapes are free.
# ----------------------------------------------------------------------------
def _fused_stage_kernel(x_ref, enc_ref, upw_ref, w1u_ref, w1e_ref, b1_ref,
                        w2_ref, b2_ref, out_ref,
                        z0_buf, z1_buf, u_buf, m_buf, m2_buf, *, H, W, ns):
    f32 = jnp.float32
    Hu = 2 * H          # upsampled height
    Wsup = W            # upsampled width in super-pixels (Wu = 2W -> Wu // 2 = W)
    cw = u_buf.shape[1]  # = 2 * Cmid (super channel width)

    # ---- 1) ConvTranspose2d 2x2 / stride 2: two matmuls + VMEM row-chunk interleave ----
    x2d = x_ref[...]                                                     # (H*W, Cin)
    z0_buf[...] = jnp.dot(x2d, upw_ref[0], preferred_element_type=f32)   # even output rows
    z1_buf[...] = jnp.dot(x2d, upw_ref[1], preferred_element_type=f32)   # odd output rows

    u_buf[pl.ds(Hu * Wsup, _PADR), :] = jnp.zeros((_PADR, cw), f32)      # zero slack rows

    def interleave(i, carry):
        u_buf[pl.ds((2 * i) * Wsup, Wsup), :] = z0_buf[pl.ds(i * Wsup, Wsup), :]
        u_buf[pl.ds((2 * i + 1) * Wsup, Wsup), :] = z1_buf[pl.ds(i * Wsup, Wsup), :]
        return carry

    jax.lax.fori_loop(0, H, interleave, 0)

    # ---- 2) conv1: 3x3 valid over concat([up, enc]) + bias + LeakyReLU ------------------
    # 6 taps (kh in 0..2, s in 0..1); up and enc parts accumulate into the same f32 acc,
    # which removes the channel-concat entirely.
    M1 = (Hu - 2) * Wsup
    acc = None
    for t in range(6):
        kh, s = t // 2, t % 2
        off = kh * Wsup + s
        term = jnp.dot(u_buf[pl.ds(off, M1), :], w1u_ref[t], preferred_element_type=f32)
        term = term + jnp.dot(enc_ref[pl.ds(off, M1), :], w1e_ref[t],
                              preferred_element_type=f32)
        acc = term if acc is None else acc + term
    acc = acc + b1_ref[...]
    acc = jnp.where(acc >= 0.0, acc, acc * ns)
    m_buf[pl.ds(0, M1), :] = acc
    m_buf[pl.ds(M1, _PADR), :] = jnp.zeros((_PADR, cw), f32)

    # ---- 3) conv2: 3x3 valid + bias + LeakyReLU ------------------------------------------
    M2 = (Hu - 4) * Wsup
    acc2 = None
    for t in range(6):
        kh, s = t // 2, t % 2
        off = kh * Wsup + s
        term = jnp.dot(m_buf[pl.ds(off, M2), :], w2_ref[t], preferred_element_type=f32)
        acc2 = term if acc2 is None else acc2 + term
    acc2 = acc2 + b2_ref[...]
    acc2 = jnp.where(acc2 >= 0.0, acc2, acc2 * ns)
    m2_buf[...] = acc2

    # ---- 4) compact: drop the invalid right-edge super-column per spatial row ------------
    Wv = Wsup - 2

    def compact(r, carry):
        out_ref[pl.ds(r * Wv, Wv), :] = m2_buf[pl.ds(r * Wsup, Wv), :]
        return carry

    jax.lax.fori_loop(0, Hu - 4, compact, 0)


def _run_stage(x_flat, enc_flat, sp, *, H, W, ns):
    """One decoder stage. x_flat: (N, H*W, Cin) per-pixel flat; enc_flat: (N, 2H*W+_PADR, 2C)
    super-pixel flat (already center-cropped + row-padded). Returns (N, (2H-4)*(W-2), 2C)."""
    N, HW, Cin = x_flat.shape
    C2 = sp["b1"].shape[-1]
    Hu, Wsup = 2 * H, W
    M_out = (Hu - 4) * (Wsup - 2)
    enc_rows = enc_flat.shape[1]

    kernel = functools.partial(_fused_stage_kernel, H=H, W=W, ns=float(ns))
    return pl.pallas_call(
        kernel,
        out_shape=jax.ShapeDtypeStruct((N, M_out, C2), x_flat.dtype),
        grid_spec=pltpu.PrefetchScalarGridSpec(
            num_scalar_prefetch=0,
            grid=(N,),
            in_specs=[
                pl.BlockSpec((None, HW, Cin), lambda n: (n, 0, 0)),       # x (per-pixel flat)
                pl.BlockSpec((None, enc_rows, C2), lambda n: (n, 0, 0)),  # enc (super flat)
                pl.BlockSpec((2, Cin, C2), lambda n: (0, 0, 0)),          # up weights
                pl.BlockSpec((6, C2, C2), lambda n: (0, 0, 0)),           # conv1 (up part)
                pl.BlockSpec((6, C2, C2), lambda n: (0, 0, 0)),           # conv1 (enc part)
                pl.BlockSpec((1, C2), lambda n: (0, 0)),                  # bias1 (super)
                pl.BlockSpec((6, C2, C2), lambda n: (0, 0, 0)),           # conv2
                pl.BlockSpec((1, C2), lambda n: (0, 0)),                  # bias2 (super)
            ],
            out_specs=pl.BlockSpec((None, M_out, C2), lambda n: (n, 0, 0)),
            scratch_shapes=[
                pltpu.VMEM((HW, C2), jnp.float32),                        # z0 (even rows)
                pltpu.VMEM((HW, C2), jnp.float32),                        # z1 (odd rows)
                pltpu.VMEM((Hu * Wsup + _PADR, C2), jnp.float32),         # upsampled image
                pltpu.VMEM(((Hu - 2) * Wsup + _PADR, C2), jnp.float32),   # conv1 output
                pltpu.VMEM(((Hu - 4) * Wsup, C2), jnp.float32),           # conv2 output
            ],
        ),
        compiler_params=pltpu.CompilerParams(
            dimension_semantics=("parallel",),           # shard batch across TensorCores
            vmem_limit_bytes=48 * 1024 * 1024,           # stays under v7x's 64 MiB VMEM
        ),
    )(x_flat, enc_flat, sp["upw"], sp["w1u"], sp["w1e"], sp["b1"], sp["w2"], sp["b2"])


# ----------------------------------------------------------------------------
# One-time weight preparation (outside the forward): compose 3x3 conv weights into the
# 6-tap "super-pixel" matrices and reshape the transposed-conv weights.
# ----------------------------------------------------------------------------
def _superize_conv3x3(w):
    """(3,3,Cin,Cout) -> (6, 2*Cin, 2*Cout); tap t = kh*2 + s, rows dj*Cin+ci, cols cb*Cout+co,
    value = w[kh, 2*s+dj-cb, ci, co] (zero when that kw is out of range)."""
    Cin, Cout = w.shape[2], w.shape[3]
    zero = jnp.zeros((Cin, Cout), w.dtype)
    taps = []
    for kh in range(3):
        for s in range(2):
            rows = []
            for dj in range(2):
                cols = []
                for cb in range(2):
                    kw = 2 * s + dj - cb
                    cols.append(w[kh, kw] if 0 <= kw <= 2 else zero)
                rows.append(jnp.concatenate(cols, axis=1))
            taps.append(jnp.concatenate(rows, axis=0))
    return jnp.stack(taps, axis=0)


def prepare_params(params):
    prepared = []
    for i in range(len(params["up_w"])):
        up_w = params["up_w"][i]                      # (Cin, 2, 2, Cmid)
        cin, _, _, cmid = up_w.shape
        w1 = params["b1_w"][i]                        # (3, 3, 2*Cmid, Cmid)
        w2 = params["b2_w"][i]                        # (3, 3, Cmid, Cmid)
        assert w1.shape[2] == 2 * cmid, "Block in_channels must equal 2 * out_channels"
        prepared.append({
            "upw": jnp.transpose(up_w, (1, 0, 2, 3)).reshape(2, cin, 2 * cmid),
            "w1u": _superize_conv3x3(w1[:, :, :cmid, :]),   # x channels come first in cat
            "w1e": _superize_conv3x3(w1[:, :, cmid:, :]),
            "b1": jnp.tile(params["b1_b"][i], 2).reshape(1, 2 * cmid),
            "w2": _superize_conv3x3(w2),
            "b2": jnp.tile(params["b2_b"][i], 2).reshape(1, 2 * cmid),
        })
    return prepared


# ----------------------------------------------------------------------------
# Decoder forward (NCHW in / NCHW out, matching the PyTorch module)
# ----------------------------------------------------------------------------
def decoder_forward(x_nchw, enc_features_nchw, prepared, ns=0.01):
    N = x_nchw.shape[0]
    x = jnp.transpose(x_nchw, (0, 2, 3, 1))                    # NCHW -> NHWC (once)
    H, W, C = x.shape[1], x.shape[2], x.shape[3]
    x_flat = x.reshape(N, H * W, C)                            # free reshape

    for i, sp in enumerate(prepared):
        assert H >= 3 and W >= 3
        C2 = sp["b1"].shape[-1]
        cmid = C2 // 2
        Hu, Wu = 2 * H, 2 * W

        # CenterCrop (torchvision rounding) + super-pixel flatten of the encoder feature.
        enc = jnp.transpose(enc_features_nchw[i], (0, 2, 3, 1))
        He, We = enc.shape[1], enc.shape[2]
        top = int(round((He - Hu) / 2.0))
        left = int(round((We - Wu) / 2.0))
        enc = enc[:, top:top + Hu, left:left + Wu, :]
        enc_flat = enc.reshape(N, Hu * W, C2)                  # free reshape
        enc_flat = jnp.pad(enc_flat, ((0, 0), (0, _PADR), (0, 0)))

        out = _run_stage(x_flat, enc_flat, sp, H=H, W=W, ns=ns)   # (N, (Hu-4)*(W-2), 2*Cmid)

        H, W, C = Hu - 4, Wu - 4, cmid
        x_flat = out.reshape(N, H * W, C)                      # free reshape (super -> pixel)

    return jnp.transpose(x_flat.reshape(N, H, W, C), (0, 3, 1, 2))   # NHWC -> NCHW


def init_params(key, channels):
    params = {"up_w": [], "b1_w": [], "b1_b": [], "b2_w": [], "b2_b": []}
    for i in range(len(channels) - 1):
        cin, cout = channels[i], channels[i + 1]
        key, k1, k2, k3, k4, k5 = jax.random.split(key, 6)
        params["up_w"].append(jax.random.normal(k1, (cin, 2, 2, cout), jnp.float32) * 0.05)
        params["b1_w"].append(jax.random.normal(k2, (3, 3, cin, cout), jnp.float32) * 0.05)
        params["b1_b"].append(jax.random.normal(k3, (cout,), jnp.float32) * 0.05)
        params["b2_w"].append(jax.random.normal(k4, (3, 3, cout, cout), jnp.float32) * 0.05)
        params["b2_b"].append(jax.random.normal(k5, (cout,), jnp.float32) * 0.05)
    return params


if __name__ == "__main__":
    # Small shapes consistent with the module (channels arg of Decoder).
    channels = (128, 64, 32, 16)
    ns = 0.01
    batch = 2

    root = jax.random.PRNGKey(0)
    kp, kx, ke0, ke1, ke2 = jax.random.split(root, 5)
    params = init_params(kp, channels)
    prepared = prepare_params(params)      # weight rearrangement done ONCE, outside the forward

    x = jax.random.normal(kx, (batch, channels[0], 4, 4), jnp.float32)       # NCHW
    enc_features = [
        jax.random.normal(ke0, (batch, channels[1], 10, 10), jnp.float32),   # crop -> 8x8
        jax.random.normal(ke1, (batch, channels[2], 12, 12), jnp.float32),   # crop -> 8x8
        jax.random.normal(ke2, (batch, channels[3], 9, 9), jnp.float32),     # crop -> 8x8
    ]

    fwd = jax.jit(functools.partial(decoder_forward, ns=ns))
    out = jax.block_until_ready(fwd(x, enc_features, prepared))
    assert out.shape == (batch, channels[-1], 4, 4), out.shape
    print("KERNEL_OK")
</pallas_src>

<mosaic_0001>
module attributes {stable_mosaic.version = 11 : i64} {
  func.func @_fused_stage_kernel(%arg0: i32, %arg1: memref<1x16x128xf32, #tpu.memory_space<vmem>>, %arg2: memref<1x40x128xf32, #tpu.memory_space<vmem>>, %arg3: memref<2x128x128xf32, #tpu.memory_space<vmem>>, %arg4: memref<6x128x128xf32, #tpu.memory_space<vmem>>, %arg5: memref<6x128x128xf32, #tpu.memory_space<vmem>>, %arg6: memref<1x128xf32, #tpu.memory_space<vmem>>, %arg7: memref<6x128x128xf32, #tpu.memory_space<vmem>>, %arg8: memref<1x128xf32, #tpu.memory_space<vmem>>, %arg9: memref<1x8x128xf32, #tpu.memory_space<vmem>>, %arg10: memref<16x128xf32, #tpu.memory_space<vmem>>, %arg11: memref<16x128xf32, #tpu.memory_space<vmem>>, %arg12: memref<40x128xf32, #tpu.memory_space<vmem>>, %arg13: memref<32x128xf32, #tpu.memory_space<vmem>>, %arg14: memref<16x128xf32, #tpu.memory_space<vmem>>) attributes {dimension_semantics = [#tpu.dimension_semantics<parallel>], iteration_bounds = array<i64: 2>, scalar_prefetch = 0 : i64, scratch_operands = 5 : i64, tpu.core_type = #tpu.core_type<tc>, window_params = [{transform_indices = @transform_0, window_bounds = array<i64: 1, 16, 128>}, {transform_indices = @transform_1, window_bounds = array<i64: 1, 40, 128>}, {pipeline_mode = #tpu.pipeline_mode<synchronous>, transform_indices = @transform_2, window_bounds = array<i64: 2, 128, 128>}, {pipeline_mode = #tpu.pipeline_mode<synchronous>, transform_indices = @transform_3, window_bounds = array<i64: 6, 128, 128>}, {pipeline_mode = #tpu.pipeline_mode<synchronous>, transform_indices = @transform_4, window_bounds = array<i64: 6, 128, 128>}, {pipeline_mode = #tpu.pipeline_mode<synchronous>, transform_indices = @transform_5, window_bounds = array<i64: 1, 128>}, {pipeline_mode = #tpu.pipeline_mode<synchronous>, transform_indices = @transform_6, window_bounds = array<i64: 6, 128, 128>}, {pipeline_mode = #tpu.pipeline_mode<synchronous>, transform_indices = @transform_7, window_bounds = array<i64: 1, 128>}, {transform_indices = @transform_8, window_bounds = array<i64: 1, 8, 128>}]} {
    %c0 = arith.constant 0 : index
    %c0_0 = arith.constant 0 : index
    %c0_1 = arith.constant 0 : index
    %0 = vector.load %arg1[%c0, %c0_0, %c0_1] : memref<1x16x128xf32, #tpu.memory_space<vmem>>, vector<1x16x128xf32>
    %1 = vector.shape_cast %0 : vector<1x16x128xf32> to vector<16x128xf32>
    %c0_2 = arith.constant 0 : index
    %c0_3 = arith.constant 0 : index
    %c0_4 = arith.constant 0 : index
    %2 = vector.load %arg3[%c0_2, %c0_3, %c0_4] : memref<2x128x128xf32, #tpu.memory_space<vmem>>, vector<1x128x128xf32>
    %3 = vector.shape_cast %2 : vector<1x128x128xf32> to vector<128x128xf32>
    %cst = arith.constant dense<0.000000e+00> : vector<16x128xf32>
    %4 = tpu.matmul %1, %3, %cst {dimension_numbers = #tpu.dot_dimension_numbers<[1], [0], [0], [1], [0, 0, 1, 1], [], []>} : vector<16x128xf32>, vector<128x128xf32>, vector<16x128xf32> -> vector<16x128xf32>
    %c0_5 = arith.constant 0 : index
    %c0_6 = arith.constant 0 : index
    %5 = vector.load %arg10[%c0_5, %c0_6] : memref<16x128xf32, #tpu.memory_space<vmem>>, vector<16x128xf32>
    tpu.vector_store %arg10[%c0_5, %c0_6], %4 {strides = array<i32>} : memref<16x128xf32, #tpu.memory_space<vmem>>, vector<16x128xf32>,
    %c1 = arith.constant 1 : index
    %c0_7 = arith.constant 0 : index
    %c0_8 = arith.constant 0 : index
    %6 = vector.load %arg3[%c1, %c0_7, %c0_8] : memref<2x128x128xf32, #tpu.memory_space<vmem>>, vector<1x128x128xf32>
    %7 = vector.shape_cast %6 : vector<1x128x128xf32> to vector<128x128xf32>
    %cst_9 = arith.constant dense<0.000000e+00> : vector<16x128xf32>
    %8 = tpu.matmul %1, %7, %cst_9 {dimension_numbers = #tpu.dot_dimension_numbers<[1], [0], [0], [1], [0, 0, 1, 1], [], []>} : vector<16x128xf32>, vector<128x128xf32>, vector<16x128xf32> -> vector<16x128xf32>
    %c0_10 = arith.constant 0 : index
    %c0_11 = arith.constant 0 : index
    %9 = vector.load %arg11[%c0_10, %c0_11] : memref<16x128xf32, #tpu.memory_space<vmem>>, vector<16x128xf32>
    tpu.vector_store %arg11[%c0_10, %c0_11], %8 {strides = array<i32>} : memref<16x128xf32, #tpu.memory_space<vmem>>, vector<16x128xf32>,
    %cst_12 = arith.constant 0.000000e+00 : f32
    %10 = vector.broadcast %cst_12 : f32 to vector<8x128xf32>
    %c32 = arith.constant 32 : index
    %c0_13 = arith.constant 0 : index
    %11 = vector.load %arg12[%c32, %c0_13] : memref<40x128xf32, #tpu.memory_space<vmem>>, vector<8x128xf32>
    tpu.vector_store %arg12[%c32, %c0_13], %10 {strides = array<i32>} : memref<40x128xf32, #tpu.memory_space<vmem>>, vector<8x128xf32>,
    %c0_i32 = arith.constant 0 : i32
    %c4_i32 = arith.constant 4 : i32
    %12 = arith.addi %c0_i32, %c4_i32 : i32
    %c1_i32 = arith.constant 1 : i32
    scf.for %arg15 = %c0_i32 to %12 step %c1_i32  : i32 {
      %c4_i32_141 = arith.constant 4 : i32
      %128 = arith.muli %arg15, %c4_i32_141 : i32
      %129 = arith.index_cast %128 : i32 to index
      %c0_142 = arith.constant 0 : index
      %130 = vector.load %arg10[%129, %c0_142] : memref<16x128xf32, #tpu.memory_space<vmem>>, vector<4x128xf32>
      %c2_i32 = arith.constant 2 : i32
      %131 = arith.muli %c2_i32, %arg15 : i32
      %c4_i32_143 = arith.constant 4 : i32
      %132 = arith.muli %131, %c4_i32_143 : i32
      %133 = arith.index_cast %132 : i32 to index
      %c0_144 = arith.constant 0 : index
      %134 = vector.load %arg12[%133, %c0_144] : memref<40x128xf32, #tpu.memory_space<vmem>>, vector<4x128xf32>
      tpu.vector_store %arg12[%133, %c0_144], %130 {strides = array<i32>} : memref<40x128xf32, #tpu.memory_space<vmem>>, vector<4x128xf32>,
      %c4_i32_145 = arith.constant 4 : i32
      %135 = arith.muli %arg15, %c4_i32_145 : i32
      %136 = arith.index_cast %135 : i32 to index
      %c0_146 = arith.constant 0 : index
      %137 = vector.load %arg11[%136, %c0_146] : memref<16x128xf32, #tpu.memory_space<vmem>>, vector<4x128xf32>
      %c2_i32_147 = arith.constant 2 : i32
      %138 = arith.muli %c2_i32_147, %arg15 : i32
      %c1_i32_148 = arith.constant 1 : i32
      %139 = arith.addi %138, %c1_i32_148 : i32
      %c4_i32_149 = arith.constant 4 : i32
      %140 = arith.muli %139, %c4_i32_149 : i32
      %141 = arith.index_cast %140 : i32 to index
      %c0_150 = arith.constant 0 : index
      %142 = vector.load %arg12[%141, %c0_150] : memref<40x128xf32, #tpu.memory_space<vmem>>, vector<4x128xf32>
      tpu.vector_store %arg12[%141, %c0_150], %137 {strides = array<i32>} : memref<40x128xf32, #tpu.memory_space<vmem>>, vector<4x128xf32>,
    }
    %c4_i32_14 = arith.constant 4 : i32
    %c0_15 = arith.constant 0 : index
    %c0_16 = arith.constant 0 : index
    %13 = vector.load %arg12[%c0_15, %c0_16] : memref<40x128xf32, #tpu.memory_space<vmem>>, vector<24x128xf32>
    %c0_17 = arith.constant 0 : index
    %c0_18 = arith.constant 0 : index
    %c0_19 = arith.constant 0 : index
    %14 = vector.load %arg4[%c0_17, %c0_18, %c0_19] : memref<6x128x128xf32, #tpu.memory_space<vmem>>, vector<1x128x128xf32>
    %15 = vector.shape_cast %14 : vector<1x128x128xf32> to vector<128x128xf32>
    %cst_20 = arith.constant dense<0.000000e+00> : vector<24x128xf32>
    %16 = tpu.matmul %13, %15, %cst_20 {dimension_numbers = #tpu.dot_dimension_numbers<[1], [0], [0], [1], [0, 0, 1, 1], [], []>} : vector<24x128xf32>, vector<128x128xf32>, vector<24x128xf32> -> vector<24x128xf32>
    %c0_21 = arith.constant 0 : index
    %c0_22 = arith.constant 0 : index
    %c0_23 = arith.constant 0 : index
    %17 = vector.load %arg2[%c0_21, %c0_22, %c0_23] : memref<1x40x128xf32, #tpu.memory_space<vmem>>, vector<1x24x128xf32>
    %18 = vector.shape_cast %17 : vector<1x24x128xf32> to vector<24x128xf32>
    %c0_24 = arith.constant 0 : index
    %c0_25 = arith.constant 0 : index
    %c0_26 = arith.constant 0 : index
    %19 = vector.load %arg5[%c0_24, %c0_25, %c0_26] : memref<6x128x128xf32, #tpu.memory_space<vmem>>, vector<1x128x128xf32>
    %20 = vector.shape_cast %19 : vector<1x128x128xf32> to vector<128x128xf32>
    %cst_27 = arith.constant dense<0.000000e+00> : vector<24x128xf32>
    %21 = tpu.matmul %18, %20, %cst_27 {dimension_numbers = #tpu.dot_dimension_numbers<[1], [0], [0], [1], [0, 0, 1, 1], [], []>} : vector<24x128xf32>, vector<128x128xf32>, vector<24x128xf32> -> vector<24x128xf32>
    %22 = arith.addf %16, %21 : vector<24x128xf32>
    %c1_28 = arith.constant 1 : index
    %c0_29 = arith.constant 0 : index
    %23 = vector.load %arg12[%c1_28, %c0_29] : memref<40x128xf32, #tpu.memory_space<vmem>>, vector<24x128xf32>
    %c1_30 = arith.constant 1 : index
    %c0_31 = arith.constant 0 : index
    %c0_32 = arith.constant 0 : index
    %24 = vector.load %arg4[%c1_30, %c0_31, %c0_32] : memref<6x128x128xf32, #tpu.memory_space<vmem>>, vector<1x128x128xf32>
    %25 = vector.shape_cast %24 : vector<1x128x128xf32> to vector<128x128xf32>
    %cst_33 = arith.constant dense<0.000000e+00> : vector<24x128xf32>
    %26 = tpu.matmul %23, %25, %cst_33 {dimension_numbers = #tpu.dot_dimension_numbers<[1], [0], [0], [1], [0, 0, 1, 1], [], []>} : vector<24x128xf32>, vector<128x128xf32>, vector<24x128xf32> -> vector<24x128xf32>
    %c0_34 = arith.constant 0 : index
    %c1_35 = arith.constant 1 : index
    %c0_36 = arith.constant 0 : index
    %27 = vector.load %arg2[%c0_34, %c1_35, %c0_36] : memref<1x40x128xf32, #tpu.memory_space<vmem>>, vector<1x24x128xf32>
    %28 = vector.shape_cast %27 : vector<1x24x128xf32> to vector<24x128xf32>
    %c1_37 = arith.constant 1 : index
    %c0_38 = arith.constant 0 : index
    %c0_39 = arith.constant 0 : index
    %29 = vector.load %arg5[%c1_37, %c0_38, %c0_39] : memref<6x128x128xf32, #tpu.memory_space<vmem>>, vector<1x128x128xf32>
    %30 = vector.shape_cast %29 : vector<1x128x128xf32> to vector<128x128xf32>
    %cst_40 = arith.constant dense<0.000000e+00> : vector<24x128xf32>
    %31 = tpu.matmul %28, %30, %cst_40 {dimension_numbers = #tpu.dot_dimension_numbers<[1], [0], [0], [1], [0, 0, 1, 1], [], []>} : vector<24x128xf32>, vector<128x128xf32>, vector<24x128xf32> -> vector<24x128xf32>
    %32 = arith.addf %26, %31 : vector<24x128xf32>
    %33 = arith.addf %22, %32 : vector<24x128xf32>
    %c4 = arith.constant 4 : index
    %c0_41 = arith.constant 0 : index
    %34 = vector.load %arg12[%c4, %c0_41] : memref<40x128xf32, #tpu.memory_space<vmem>>, vector<24x128xf32>
    %c2 = arith.constant 2 : index
    %c0_42 = arith.constant 0 : index
    %c0_43 = arith.constant 0 : index
    %35 = vector.load %arg4[%c2, %c0_42, %c0_43] : memref<6x128x128xf32, #tpu.memory_space<vmem>>, vector<1x128x128xf32>
    %36 = vector.shape_cast %35 : vector<1x128x128xf32> to vector<128x128xf32>
    %cst_44 = arith.constant dense<0.000000e+00> : vector<24x128xf32>
    %37 = tpu.matmul %34, %36, %cst_44 {dimension_numbers = #tpu.dot_dimension_numbers<[1], [0], [0], [1], [0, 0, 1, 1], [], []>} : vector<24x128xf32>, vector<128x128xf32>, vector<24x128xf32> -> vector<24x128xf32>
    %c0_45 = arith.constant 0 : index
    %c4_46 = arith.constant 4 : index
    %c0_47 = arith.constant 0 : index
    %38 = vector.load %arg2[%c0_45, %c4_46, %c0_47] : memref<1x40x128xf32, #tpu.memory_space<vmem>>, vector<1x24x128xf32>
    %39 = vector.shape_cast %38 : vector<1x24x128xf32> to vector<24x128xf32>
    %c2_48 = arith.constant 2 : index
    %c0_49 = arith.constant 0 : index
    %c0_50 = arith.constant 0 : index
    %40 = vector.load %arg5[%c2_48, %c0_49, %c0_50] : memref<6x128x128xf32, #tpu.memory_space<vmem>>, vector<1x128x128xf32>
    %41 = vector.shape_cast %40 : vector<1x128x128xf32> to vector<128x128xf32>
    %cst_51 = arith.constant dense<0.000000e+00> : vector<24x128xf32>
    %42 = tpu.matmul %39, %41, %cst_51 {dimension_numbers = #tpu.dot_dimension_numbers<[1], [0], [0], [1], [0, 0, 1, 1], [], []>} : vector<24x128xf32>, vector<128x128xf32>, vector<24x128xf32> -> vector<24x128xf32>
    %43 = arith.addf %37, %42 : vector<24x128xf32>
    %44 = arith.addf %33, %43 : vector<24x128xf32>
    %c5 = arith.constant 5 : index
    %c0_52 = arith.constant 0 : index
    %45 = vector.load %arg12[%c5, %c0_52] : memref<40x128xf32, #tpu.memory_space<vmem>>, vector<24x128xf32>
    %c3 = arith.constant 3 : index
    %c0_53 = arith.constant 0 : index
    %c0_54 = arith.constant 0 : index
    %46 = vector.load %arg4[%c3, %c0_53, %c0_54] : memref<6x128x128xf32, #tpu.memory_space<vmem>>, vector<1x128x128xf32>
    %47 = vector.shape_cast %46 : vector<1x128x128xf32> to vector<128x128xf32>
    %cst_55 = arith.constant dense<0.000000e+00> : vector<24x128xf32>
    %48 = tpu.matmul %45, %47, %cst_55 {dimension_numbers = #tpu.dot_dimension_numbers<[1], [0], [0], [1], [0, 0, 1, 1], [], []>} : vector<24x128xf32>, vector<128x128xf32>, vector<24x128xf32> -> vector<24x128xf32>
    %c0_56 = arith.constant 0 : index
    %c5_57 = arith.constant 5 : index
    %c0_58 = arith.constant 0 : index
    %49 = vector.load %arg2[%c0_56, %c5_57, %c0_58] : memref<1x40x128xf32, #tpu.memory_space<vmem>>, vector<1x24x128xf32>
    %50 = vector.shape_cast %49 : vector<1x24x128xf32> to vector<24x128xf32>
    %c3_59 = arith.constant 3 : index
    %c0_60 = arith.constant 0 : index
    %c0_61 = arith.constant 0 : index
    %51 = vector.load %arg5[%c3_59, %c0_60, %c0_61] : memref<6x128x128xf32, #tpu.memory_space<vmem>>, vector<1x128x128xf32>
    %52 = vector.shape_cast %51 : vector<1x128x128xf32> to vector<128x128xf32>
    %cst_62 = arith.constant dense<0.000000e+00> : vector<24x128xf32>
    %53 = tpu.matmul %50, %52, %cst_62 {dimension_numbers = #tpu.dot_dimension_numbers<[1], [0], [0], [1], [0, 0, 1, 1], [], []>} : vector<24x128xf32>, vector<128x128xf32>, vector<24x128xf32> -> vector<24x128xf32>
    %54 = arith.addf %48, %53 : vector<24x128xf32>
    %55 = arith.addf %44, %54 : vector<24x128xf32>
    %c8 = arith.constant 8 : index
    %c0_63 = arith.constant 0 : index
    %56 = vector.load %arg12[%c8, %c0_63] : memref<40x128xf32, #tpu.memory_space<vmem>>, vector<24x128xf32>
    %c4_64 = arith.constant 4 : index
    %c0_65 = arith.constant 0 : index
    %c0_66 = arith.constant 0 : index
    %57 = vector.load %arg4[%c4_64, %c0_65, %c0_66] : memref<6x128x128xf32, #tpu.memory_space<vmem>>, vector<1x128x128xf32>
    %58 = vector.shape_cast %57 : vector<1x128x128xf32> to vector<128x128xf32>
    %cst_67 = arith.constant dense<0.000000e+00> : vector<24x128xf32>
    %59 = tpu.matmul %56, %58, %cst_67 {dimension_numbers = #tpu.dot_dimension_numbers<[1], [0], [0], [1], [0, 0, 1, 1], [], []>} : vector<24x128xf32>, vector<128x128xf32>, vector<24x128xf32> -> vector<24x128xf32>
    %c0_68 = arith.constant 0 : index
    %c8_69 = arith.constant 8 : index
    %c0_70 = arith.constant 0 : index
    %60 = vector.load %arg2[%c0_68, %c8_69, %c0_70] : memref<1x40x128xf32, #tpu.memory_space<vmem>>, vector<1x24x128xf32>
    %61 = vector.shape_cast %60 : vector<1x24x128xf32> to vector<24x128xf32>
    %c4_71 = arith.constant 4 : index
    %c0_72 = arith.constant 0 : index
    %c0_73 = arith.constant 0 : index
    %62 = vector.load %arg5[%c4_71, %c0_72, %c0_73] : memref<6x128x128xf32, #tpu.memory_space<vmem>>, vector<1x128x128xf32>
    %63 = vector.shape_cast %62 : vector<1x128x128xf32> to vector<128x128xf32>
    %cst_74 = arith.constant dense<0.000000e+00> : vector<24x128xf32>
    %64 = tpu.matmul %61, %63, %cst_74 {dimension_numbers = #tpu.dot_dimension_numbers<[1], [0], [0], [1], [0, 0, 1, 1], [], []>} : vector<24x128xf32>, vector<128x128xf32>, vector<24x128xf32> -> vector<24x128xf32>
    %65 = arith.addf %59, %64 : vector<24x128xf32>
    %66 = arith.addf %55, %65 : vector<24x128xf32>
    %c9 = arith.constant 9 : index
    %c0_75 = arith.constant 0 : index
    %67 = vector.load %arg12[%c9, %c0_75] : memref<40x128xf32, #tpu.memory_space<vmem>>, vector<24x128xf32>
    %c5_76 = arith.constant 5 : index
    %c0_77 = arith.constant 0 : index
    %c0_78 = arith.constant 0 : index
    %68 = vector.load %arg4[%c5_76, %c0_77, %c0_78] : memref<6x128x128xf32, #tpu.memory_space<vmem>>, vector<1x128x128xf32>
    %69 = vector.shape_cast %68 : vector<1x128x128xf32> to vector<128x128xf32>
    %cst_79 = arith.constant dense<0.000000e+00> : vector<24x128xf32>
    %70 = tpu.matmul %67, %69, %cst_79 {dimension_numbers = #tpu.dot_dimension_numbers<[1], [0], [0], [1], [0, 0, 1, 1], [], []>} : vector<24x128xf32>, vector<128x128xf32>, vector<24x128xf32> -> vector<24x128xf32>
    %c0_80 = arith.constant 0 : index
    %c9_81 = arith.constant 9 : index
    %c0_82 = arith.constant 0 : index
    %71 = vector.load %arg2[%c0_80, %c9_81, %c0_82] : memref<1x40x128xf32, #tpu.memory_space<vmem>>, vector<1x24x128xf32>
    %72 = vector.shape_cast %71 : vector<1x24x128xf32> to vector<24x128xf32>
    %c5_83 = arith.constant 5 : index
    %c0_84 = arith.constant 0 : index
    %c0_85 = arith.constant 0 : index
    %73 = vector.load %arg5[%c5_83, %c0_84, %c0_85] : memref<6x128x128xf32, #tpu.memory_space<vmem>>, vector<1x128x128xf32>
    %74 = vector.shape_cast %73 : vector<1x128x128xf32> to vector<128x128xf32>
    %cst_86 = arith.constant dense<0.000000e+00> : vector<24x128xf32>
    %75 = tpu.matmul %72, %74, %cst_86 {dimension_numbers = #tpu.dot_dimension_numbers<[1], [0], [0], [1], [0, 0, 1, 1], [], []>} : vector<24x128xf32>, vector<128x128xf32>, vector<24x128xf32> -> vector<24x128xf32>
    %76 = arith.addf %70, %75 : vector<24x128xf32>
    %77 = arith.addf %66, %76 : vector<24x128xf32>
    %c0_87 = arith.constant 0 : index
    %c0_88 = arith.constant 0 : index
    %78 = vector.load %arg6[%c0_87, %c0_88] : memref<1x128xf32, #tpu.memory_space<vmem>>, vector<1x128xf32>
    %79 = vector.broadcast %78 : vector<1x128xf32> to vector<24x128xf32>
    %80 = arith.addf %77, %79 : vector<24x128xf32>
    %cst_89 = arith.constant 0.000000e+00 : f32
    %81 = vector.broadcast %cst_89 : f32 to vector<24x128xf32>
    %82 = arith.cmpf oge, %80, %81 : vector<24x128xf32>
    %cst_90 = arith.constant 0.00999999977 : f32
    %83 = vector.broadcast %cst_90 : f32 to vector<24x128xf32>
    %84 = arith.mulf %80, %83 : vector<24x128xf32>
    %85 = arith.select %82, %80, %84 : vector<24x128xi1>, vector<24x128xf32>
    %c0_91 = arith.constant 0 : index
    %c0_92 = arith.constant 0 : index
    %86 = vector.load %arg13[%c0_91, %c0_92] : memref<32x128xf32, #tpu.memory_space<vmem>>, vector<24x128xf32>
    tpu.vector_store %arg13[%c0_91, %c0_92], %85 {strides = array<i32>} : memref<32x128xf32, #tpu.memory_space<vmem>>, vector<24x128xf32>,
    %cst_93 = arith.constant 0.000000e+00 : f32
    %87 = vector.broadcast %cst_93 : f32 to vector<8x128xf32>
    %c24 = arith.constant 24 : index
    %c0_94 = arith.constant 0 : index
    %88 = vector.load %arg13[%c24, %c0_94] : memref<32x128xf32, #tpu.memory_space<vmem>>, vector<8x128xf32>
    tpu.vector_store %arg13[%c24, %c0_94], %87 {strides = array<i32>} : memref<32x128xf32, #tpu.memory_space<vmem>>, vector<8x128xf32>,
    %c0_95 = arith.constant 0 : index
    %c0_96 = arith.constant 0 : index
    %89 = vector.load %arg13[%c0_95, %c0_96] : memref<32x128xf32, #tpu.memory_space<vmem>>, vector<16x128xf32>
    %c0_97 = arith.constant 0 : index
    %c0_98 = arith.constant 0 : index
    %c0_99 = arith.constant 0 : index
    %90 = vector.load %arg7[%c0_97, %c0_98, %c0_99] : memref<6x128x128xf32, #tpu.memory_space<vmem>>, vector<1x128x128xf32>
    %91 = vector.shape_cast %90 : vector<1x128x128xf32> to vector<128x128xf32>
    %cst_100 = arith.constant dense<0.000000e+00> : vector<16x128xf32>
    %92 = tpu.matmul %89, %91, %cst_100 {dimension_numbers = #tpu.dot_dimension_numbers<[1], [0], [0], [1], [0, 0, 1, 1], [], []>} : vector<16x128xf32>, vector<128x128xf32>, vector<16x128xf32> -> vector<16x128xf32>
    %c1_101 = arith.constant 1 : index
    %c0_102 = arith.constant 0 : index
    %93 = vector.load %arg13[%c1_101, %c0_102] : memref<32x128xf32, #tpu.memory_space<vmem>>, vector<16x128xf32>
    %c1_103 = arith.constant 1 : index
    %c0_104 = arith.constant 0 : index
    %c0_105 = arith.constant 0 : index
    %94 = vector.load %arg7[%c1_103, %c0_104, %c0_105] : memref<6x128x128xf32, #tpu.memory_space<vmem>>, vector<1x128x128xf32>
    %95 = vector.shape_cast %94 : vector<1x128x128xf32> to vector<128x128xf32>
    %cst_106 = arith.constant dense<0.000000e+00> : vector<16x128xf32>
    %96 = tpu.matmul %93, %95, %cst_106 {dimension_numbers = #tpu.dot_dimension_numbers<[1], [0], [0], [1], [0, 0, 1, 1], [], []>} : vector<16x128xf32>, vector<128x128xf32>, vector<16x128xf32> -> vector<16x128xf32>
    %97 = arith.addf %92, %96 : vector<16x128xf32>
    %c4_107 = arith.constant 4 : index
    %c0_108 = arith.constant 0 : index
    %98 = vector.load %arg13[%c4_107, %c0_108] : memref<32x128xf32, #tpu.memory_space<vmem>>, vector<16x128xf32>
    %c2_109 = arith.constant 2 : index
    %c0_110 = arith.constant 0 : index
    %c0_111 = arith.constant 0 : index
    %99 = vector.load %arg7[%c2_109, %c0_110, %c0_111] : memref<6x128x128xf32, #tpu.memory_space<vmem>>, vector<1x128x128xf32>
    %100 = vector.shape_cast %99 : vector<1x128x128xf32> to vector<128x128xf32>
    %cst_112 = arith.constant dense<0.000000e+00> : vector<16x128xf32>
    %101 = tpu.matmul %98, %100, %cst_112 {dimension_numbers = #tpu.dot_dimension_numbers<[1], [0], [0], [1], [0, 0, 1, 1], [], []>} : vector<16x128xf32>, vector<128x128xf32>, vector<16x128xf32> -> vector<16x128xf32>
    %102 = arith.addf %97, %101 : vector<16x128xf32>
    %c5_113 = arith.constant 5 : index
    %c0_114 = arith.constant 0 : index
    %103 = vector.load %arg13[%c5_113, %c0_114] : memref<32x128xf32, #tpu.memory_space<vmem>>, vector<16x128xf32>
    %c3_115 = arith.constant 3 : index
    %c0_116 = arith.constant 0 : index
    %c0_117 = arith.constant 0 : index
    %104 = vector.load %arg7[%c3_115, %c0_116, %c0_117] : memref<6x128x128xf32, #tpu.memory_space<vmem>>, vector<1x128x128xf32>
    %105 = vector.shape_cast %104 : vector<1x128x128xf32> to vector<128x128xf32>
    %cst_118 = arith.constant dense<0.000000e+00> : vector<16x128xf32>
    %106 = tpu.matmul %103, %105, %cst_118 {dimension_numbers = #tpu.dot_dimension_numbers<[1], [0], [0], [1], [0, 0, 1, 1], [], []>} : vector<16x128xf32>, vector<128x128xf32>, vector<16x128xf32> -> vector<16x128xf32>
    %107 = arith.addf %102, %106 : vector<16x128xf32>
    %c8_119 = arith.constant 8 : index
    %c0_120 = arith.constant 0 : index
    %108 = vector.load %arg13[%c8_119, %c0_120] : memref<32x128xf32, #tpu.memory_space<vmem>>, vector<16x128xf32>
    %c4_121 = arith.constant 4 : index
    %c0_122 = arith.constant 0 : index
    %c0_123 = arith.constant 0 : index
    %109 = vector.load %arg7[%c4_121, %c0_122, %c0_123] : memref<6x128x128xf32, #tpu.memory_space<vmem>>, vector<1x128x128xf32>
    %110 = vector.shape_cast %109 : vector<1x128x128xf32> to vector<128x128xf32>
    %cst_124 = arith.constant dense<0.000000e+00> : vector<16x128xf32>
    %111 = tpu.matmul %108, %110, %cst_124 {dimension_numbers = #tpu.dot_dimension_numbers<[1], [0], [0], [1], [0, 0, 1, 1], [], []>} : vector<16x128xf32>, vector<128x128xf32>, vector<16x128xf32> -> vector<16x128xf32>
    %112 = arith.addf %107, %111 : vector<16x128xf32>
    %c9_125 = arith.constant 9 : index
    %c0_126 = arith.constant 0 : index
    %113 = vector.load %arg13[%c9_125, %c0_126] : memref<32x128xf32, #tpu.memory_space<vmem>>, vector<16x128xf32>
    %c5_127 = arith.constant 5 : index
    %c0_128 = arith.constant 0 : index
    %c0_129 = arith.constant 0 : index
    %114 = vector.load %arg7[%c5_127, %c0_128, %c0_129] : memref<6x128x128xf32, #tpu.memory_space<vmem>>, vector<1x128x128xf32>
    %115 = vector.shape_cast %114 : vector<1x128x128xf32> to vector<128x128xf32>
    %cst_130 = arith.constant dense<0.000000e+00> : vector<16x128xf32>
    %116 = tpu.matmul %113, %115, %cst_130 {dimension_numbers = #tpu.dot_dimension_numbers<[1], [0], [0], [1], [0, 0, 1, 1], [], []>} : vector<16x128xf32>, vector<128x128xf32>, vector<16x128xf32> -> vector<16x128xf32>
    %117 = arith.addf %112, %116 : vector<16x128xf32>
    %c0_131 = arith.constant 0 : index
    %c0_132 = arith.constant 0 : index
    %118 = vector.load %arg8[%c0_131, %c0_132] : memref<1x128xf32, #tpu.memory_space<vmem>>, vector<1x128xf32>
    %119 = vector.broadcast %118 : vector<1x128xf32> to vector<16x128xf32>
    %120 = arith.addf %117, %119 : vector<16x128xf32>
    %cst_133 = arith.constant 0.000000e+00 : f32
    %121 = vector.broadcast %cst_133 : f32 to vector<16x128xf32>
    %122 = arith.cmpf oge, %120, %121 : vector<16x128xf32>
    %cst_134 = arith.constant 0.00999999977 : f32
    %123 = vector.broadcast %cst_134 : f32 to vector<16x128xf32>
    %124 = arith.mulf %120, %123 : vector<16x128xf32>
    %125 = arith.select %122, %120, %124 : vector<16x128xi1>, vector<16x128xf32>
    %c0_135 = arith.constant 0 : index
    %c0_136 = arith.constant 0 : index
    %126 = vector.load %arg14[%c0_135, %c0_136] : memref<16x128xf32, #tpu.memory_space<vmem>>, vector<16x128xf32>
    tpu.vector_store %arg14[%c0_135, %c0_136], %125 {strides = array<i32>} : memref<16x128xf32, #tpu.memory_space<vmem>>, vector<16x128xf32>,
    %c0_i32_137 = arith.constant 0 : i32
    %c4_i32_138 = arith.constant 4 : i32
    %127 = arith.addi %c0_i32_137, %c4_i32_138 : i32
    %c1_i32_139 = arith.constant 1 : i32
    scf.for %arg15 = %c0_i32_137 to %127 step %c1_i32_139  : i32 {
      %c4_i32_141 = arith.constant 4 : i32
      %128 = arith.muli %arg15, %c4_i32_141 : i32
      %129 = arith.index_cast %128 : i32 to index
      %c0_142 = arith.constant 0 : index
      %130 = vector.load %arg14[%129, %c0_142] : memref<16x128xf32, #tpu.memory_space<vmem>>, vector<2x128xf32>
      %c2_i32 = arith.constant 2 : i32
      %131 = arith.muli %arg15, %c2_i32 : i32
      %c0_143 = arith.constant 0 : index
      %132 = arith.index_cast %131 : i32 to index
      %c0_144 = arith.constant 0 : index
      %133 = vector.load %arg9[%c0_143, %132, %c0_144] : memref<1x8x128xf32, #tpu.memory_space<vmem>>, vector<1x2x128xf32>
      %134 = vector.shape_cast %133 : vector<1x2x128xf32> to vector<2x128xf32>
      %135 = vector.shape_cast %130 : vector<2x128xf32> to vector<1x2x128xf32>
      tpu.vector_store %arg9[%c0_143, %132, %c0_144], %135 {strides = array<i32>} : memref<1x8x128xf32, #tpu.memory_space<vmem>>, vector<1x2x128xf32>,
    }
    %c4_i32_140 = arith.constant 4 : i32
    return
  }
  func.func @transform_0(%arg0: i32) -> (i32, i32, i32) {
    %c0_i32 = arith.constant 0 : i32
    %c0_i32_0 = arith.constant 0 : i32
    %c0_i32_1 = arith.constant 0 : i32
    return %arg0, %c0_i32, %c0_i32_0 : i32, i32, i32
  }
  func.func @transform_1(%arg0: i32) -> (i32, i32, i32) {
    %c0_i32 = arith.constant 0 : i32
    %c0_i32_0 = arith.constant 0 : i32
    %c0_i32_1 = arith.constant 0 : i32
    return %arg0, %c0_i32, %c0_i32_0 : i32, i32, i32
  }
  func.func @transform_2(%arg0: i32) -> (i32, i32, i32) {
    %c0_i32 = arith.constant 0 : i32
    %c0_i32_0 = arith.constant 0 : i32
    %c0_i32_1 = arith.constant 0 : i32
    %c0_i32_2 = arith.constant 0 : i32
    return %c0_i32, %c0_i32_0, %c0_i32_1 : i32, i32, i32
  }
  func.func @transform_3(%arg0: i32) -> (i32, i32, i32) {
    %c0_i32 = arith.constant 0 : i32
    %c0_i32_0 = arith.constant 0 : i32
    %c0_i32_1 = arith.constant 0 : i32
    %c0_i32_2 = arith.constant 0 : i32
    return %c0_i32, %c0_i32_0, %c0_i32_1 : i32, i32, i32
  }
  func.func @transform_4(%arg0: i32) -> (i32, i32, i32) {
    %c0_i32 = arith.constant 0 : i32
    %c0_i32_0 = arith.constant 0 : i32
    %c0_i32_1 = arith.constant 0 : i32
    %c0_i32_2 = arith.constant 0 : i32
    return %c0_i32, %c0_i32_0, %c0_i32_1 : i32, i32, i32
  }
  func.func @transform_5(%arg0: i32) -> (i32, i32) {
    %c0_i32 = arith.constant 0 : i32
    %c0_i32_0 = arith.constant 0 : i32
    %c0_i32_1 = arith.constant 0 : i32
    return %c0_i32, %c0_i32_0 : i32, i32
  }
  func.func @transform_6(%arg0: i32) -> (i32, i32, i32) {
    %c0_i32 = arith.constant 0 : i32
    %c0_i32_0 = arith.constant 0 : i32
    %c0_i32_1 = arith.constant 0 : i32
    %c0_i32_2 = arith.constant 0 : i32
    return %c0_i32, %c0_i32_0, %c0_i32_1 : i32, i32, i32
  }
  func.func @transform_7(%arg0: i32) -> (i32, i32) {
    %c0_i32 = arith.constant 0 : i32
    %c0_i32_0 = arith.constant 0 : i32
    %c0_i32_1 = arith.constant 0 : i32
    return %c0_i32, %c0_i32_0 : i32, i32
  }
  func.func @transform_8(%arg0: i32) -> (i32, i32, i32) {
    %c0_i32 = arith.constant 0 : i32
    %c0_i32_0 = arith.constant 0 : i32
    %c0_i32_1 = arith.constant 0 : i32
    return %arg0, %c0_i32, %c0_i32_0 : i32, i32, i32
  }
}

module attributes {stable_mosaic.version = 11 : i64} {
  func.func @_fused_stage_kernel(%arg0: i32, %arg1: memref<1x16x32xf32, #tpu.memory_space<vmem>>, %arg2: memref<1x40x32xf32, #tpu.memory_space<vmem>>, %arg3: memref<2x32x32xf32, #tpu.memory_space<vmem>>, %arg4: memref<6x32x32xf32, #tpu.memory_space<vmem>>, %arg5: memref<6x32x32xf32, #tpu.memory_space<vmem>>, %arg6: memref<1x32xf32, #tpu.memory_space<vmem>>, %arg7: memref<6x32x32xf32, #tpu.memory_space<vmem>>, %arg8: memref<1x32xf32, #tpu.memory_space<vmem>>, %arg9: memref<1x8x32xf32, #tpu.memory_space<vmem>>, %arg10: memref<16x32xf32, #tpu.memory_space<vmem>>, %arg11: memref<16x32xf32, #tpu.memory_space<vmem>>, %arg12: memref<40x32xf32, #tpu.memory_space<vmem>>, %arg13: memref<32x32xf32, #tpu.memory_space<vmem>>, %arg14: memref<16x32xf32, #tpu.memory_space<vmem>>) attributes {dimension_semantics = [#tpu.dimension_semantics<parallel>], iteration_bounds = array<i64: 2>, scalar_prefetch = 0 : i64, scratch_operands = 5 : i64, tpu.core_type = #tpu.core_type<tc>, window_params = [{transform_indices = @transform_0, window_bounds = array<i64: 1, 16, 32>}, {transform_indices = @transform_1, window_bounds = array<i64: 1, 40, 32>}, {pipeline_mode = #tpu.pipeline_mode<synchronous>, transform_indices = @transform_2, window_bounds = array<i64: 2, 32, 32>}, {pipeline_mode = #tpu.pipeline_mode<synchronous>, transform_indices = @transform_3, window_bounds = array<i64: 6, 32, 32>}, {pipeline_mode = #tpu.pipeline_mode<synchronous>, transform_indices = @transform_4, window_bounds = array<i64: 6, 32, 32>}, {pipeline_mode = #tpu.pipeline_mode<synchronous>, transform_indices = @transform_5, window_bounds = array<i64: 1, 32>}, {pipeline_mode = #tpu.pipeline_mode<synchronous>, transform_indices = @transform_6, window_bounds = array<i64: 6, 32, 32>}, {pipeline_mode = #tpu.pipeline_mode<synchronous>, transform_indices = @transform_7, window_bounds = array<i64: 1, 32>}, {transform_indices = @transform_8, window_bounds = array<i64: 1, 8, 32>}]} {
    %c0 = arith.constant 0 : index
    %c0_0 = arith.constant 0 : index
    %c0_1 = arith.constant 0 : index
    %0 = vector.load %arg1[%c0, %c0_0, %c0_1] : memref<1x16x32xf32, #tpu.memory_space<vmem>>, vector<1x16x32xf32>
    %1 = vector.shape_cast %0 : vector<1x16x32xf32> to vector<16x32xf32>
    %c0_2 = arith.constant 0 : index
    %c0_3 = arith.constant 0 : index
    %c0_4 = arith.constant 0 : index
    %2 = vector.load %arg3[%c0_2, %c0_3, %c0_4] : memref<2x32x32xf32, #tpu.memory_space<vmem>>, vector<1x32x32xf32>
    %3 = vector.shape_cast %2 : vector<1x32x32xf32> to vector<32x32xf32>
    %cst = arith.constant dense<0.000000e+00> : vector<16x32xf32>
    %4 = tpu.matmul %1, %3, %cst {dimension_numbers = #tpu.dot_dimension_numbers<[1], [0], [0], [1], [0, 0, 1, 1], [], []>} : vector<16x32xf32>, vector<32x32xf32>, vector<16x32xf32> -> vector<16x32xf32>
    %c0_5 = arith.constant 0 : index
    %c0_6 = arith.constant 0 : index
    %5 = vector.load %arg10[%c0_5, %c0_6] : memref<16x32xf32, #tpu.memory_space<vmem>>, vector<16x32xf32>
    tpu.vector_store %arg10[%c0_5, %c0_6], %4 {strides = array<i32>} : memref<16x32xf32, #tpu.memory_space<vmem>>, vector<16x32xf32>,
    %c1 = arith.constant 1 : index
    %c0_7 = arith.constant 0 : index
    %c0_8 = arith.constant 0 : index
    %6 = vector.load %arg3[%c1, %c0_7, %c0_8] : memref<2x32x32xf32, #tpu.memory_space<vmem>>, vector<1x32x32xf32>
    %7 = vector.shape_cast %6 : vector<1x32x32xf32> to vector<32x32xf32>
    %cst_9 = arith.constant dense<0.000000e+00> : vector<16x32xf32>
    %8 = tpu.matmul %1, %7, %cst_9 {dimension_numbers = #tpu.dot_dimension_numbers<[1], [0], [0], [1], [0, 0, 1, 1], [], []>} : vector<16x32xf32>, vector<32x32xf32>, vector<16x32xf32> -> vector<16x32xf32>
    %c0_10 = arith.constant 0 : index
    %c0_11 = arith.constant 0 : index
    %9 = vector.load %arg11[%c0_10, %c0_11] : memref<16x32xf32, #tpu.memory_space<vmem>>, vector<16x32xf32>
    tpu.vector_store %arg11[%c0_10, %c0_11], %8 {strides = array<i32>} : memref<16x32xf32, #tpu.memory_space<vmem>>, vector<16x32xf32>,
    %cst_12 = arith.constant 0.000000e+00 : f32
    %10 = vector.broadcast %cst_12 : f32 to vector<8x32xf32>
    %c32 = arith.constant 32 : index
    %c0_13 = arith.constant 0 : index
    %11 = vector.load %arg12[%c32, %c0_13] : memref<40x32xf32, #tpu.memory_space<vmem>>, vector<8x32xf32>
    tpu.vector_store %arg12[%c32, %c0_13], %10 {strides = array<i32>} : memref<40x32xf32, #tpu.memory_space<vmem>>, vector<8x32xf32>,
    %c0_i32 = arith.constant 0 : i32
    %c4_i32 = arith.constant 4 : i32
    %12 = arith.addi %c0_i32, %c4_i32 : i32
    %c1_i32 = arith.constant 1 : i32
    scf.for %arg15 = %c0_i32 to %12 step %c1_i32  : i32 {
      %c4_i32_141 = arith.constant 4 : i32
      %128 = arith.muli %arg15, %c4_i32_141 : i32
      %129 = arith.index_cast %128 : i32 to index
      %c0_142 = arith.constant 0 : index
      %130 = vector.load %arg10[%129, %c0_142] : memref<16x32xf32, #tpu.memory_space<vmem>>, vector<4x32xf32>
      %c2_i32 = arith.constant 2 : i32
      %131 = arith.muli %c2_i32, %arg15 : i32
      %c4_i32_143 = arith.constant 4 : i32
      %132 = arith.muli %131, %c4_i32_143 : i32
      %133 = arith.index_cast %132 : i32 to index
      %c0_144 = arith.constant 0 : index
      %134 = vector.load %arg12[%133, %c0_144] : memref<40x32xf32, #tpu.memory_space<vmem>>, vector<4x32xf32>
      tpu.vector_store %arg12[%133, %c0_144], %130 {strides = array<i32>} : memref<40x32xf32, #tpu.memory_space<vmem>>, vector<4x32xf32>,
      %c4_i32_145 = arith.constant 4 : i32
      %135 = arith.muli %arg15, %c4_i32_145 : i32
      %136 = arith.index_cast %135 : i32 to index
      %c0_146 = arith.constant 0 : index
      %137 = vector.load %arg11[%136, %c0_146] : memref<16x32xf32, #tpu.memory_space<vmem>>, vector<4x32xf32>
      %c2_i32_147 = arith.constant 2 : i32
      %138 = arith.muli %c2_i32_147, %arg15 : i32
      %c1_i32_148 = arith.constant 1 : i32
      %139 = arith.addi %138, %c1_i32_148 : i32
      %c4_i32_149 = arith.constant 4 : i32
      %140 = arith.muli %139, %c4_i32_149 : i32
      %141 = arith.index_cast %140 : i32 to index
      %c0_150 = arith.constant 0 : index
      %142 = vector.load %arg12[%141, %c0_150] : memref<40x32xf32, #tpu.memory_space<vmem>>, vector<4x32xf32>
      tpu.vector_store %arg12[%141, %c0_150], %137 {strides = array<i32>} : memref<40x32xf32, #tpu.memory_space<vmem>>, vector<4x32xf32>,
    }
    %c4_i32_14 = arith.constant 4 : i32
    %c0_15 = arith.constant 0 : index
    %c0_16 = arith.constant 0 : index
    %13 = vector.load %arg12[%c0_15, %c0_16] : memref<40x32xf32, #tpu.memory_space<vmem>>, vector<24x32xf32>
    %c0_17 = arith.constant 0 : index
    %c0_18 = arith.constant 0 : index
    %c0_19 = arith.constant 0 : index
    %14 = vector.load %arg4[%c0_17, %c0_18, %c0_19] : memref<6x32x32xf32, #tpu.memory_space<vmem>>, vector<1x32x32xf32>
    %15 = vector.shape_cast %14 : vector<1x32x32xf32> to vector<32x32xf32>
    %cst_20 = arith.constant dense<0.000000e+00> : vector<24x32xf32>
    %16 = tpu.matmul %13, %15, %cst_20 {dimension_numbers = #tpu.dot_dimension_numbers<[1], [0], [0], [1], [0, 0, 1, 1], [], []>} : vector<24x32xf32>, vector<32x32xf32>, vector<24x32xf32> -> vector<24x32xf32>
    %c0_21 = arith.constant 0 : index
    %c0_22 = arith.constant 0 : index
    %c0_23 = arith.constant 0 : index
    %17 = vector.load %arg2[%c0_21, %c0_22, %c0_23] : memref<1x40x32xf32, #tpu.memory_space<vmem>>, vector<1x24x32xf32>
    %18 = vector.shape_cast %17 : vector<1x24x32xf32> to vector<24x32xf32>
    %c0_24 = arith.constant 0 : index
    %c0_25 = arith.constant 0 : index
    %c0_26 = arith.constant 0 : index
    %19 = vector.load %arg5[%c0_24, %c0_25, %c0_26] : memref<6x32x32xf32, #tpu.memory_space<vmem>>, vector<1x32x32xf32>
    %20 = vector.shape_cast %19 : vector<1x32x32xf32> to vector<32x32xf32>
    %cst_27 = arith.constant dense<0.000000e+00> : vector<24x32xf32>
    %21 = tpu.matmul %18, %20, %cst_27 {dimension_numbers = #tpu.dot_dimension_numbers<[1], [0], [0], [1], [0, 0, 1, 1], [], []>} : vector<24x32xf32>, vector<32x32xf32>, vector<24x32xf32> -> vector<24x32xf32>
    %22 = arith.addf %16, %21 : vector<24x32xf32>
    %c1_28 = arith.constant 1 : index
    %c0_29 = arith.constant 0 : index
    %23 = vector.load %arg12[%c1_28, %c0_29] : memref<40x32xf32, #tpu.memory_space<vmem>>, vector<24x32xf32>
    %c1_30 = arith.constant 1 : index
    %c0_31 = arith.constant 0 : index
    %c0_32 = arith.constant 0 : index
    %24 = vector.load %arg4[%c1_30, %c0_31, %c0_32] : memref<6x32x32xf32, #tpu.memory_space<vmem>>, vector<1x32x32xf32>
    %25 = vector.shape_cast %24 : vector<1x32x32xf32> to vector<32x32xf32>
    %cst_33 = arith.constant dense<0.000000e+00> : vector<24x32xf32>
    %26 = tpu.matmul %23, %25, %cst_33 {dimension_numbers = #tpu.dot_dimension_numbers<[1], [0], [0], [1], [0, 0, 1, 1], [], []>} : vector<24x32xf32>, vector<32x32xf32>, vector<24x32xf32> -> vector<24x32xf32>
    %c0_34 = arith.constant 0 : index
    %c1_35 = arith.constant 1 : index
    %c0_36 = arith.constant 0 : index
    %27 = vector.load %arg2[%c0_34, %c1_35, %c0_36] : memref<1x40x32xf32, #tpu.memory_space<vmem>>, vector<1x24x32xf32>
    %28 = vector.shape_cast %27 : vector<1x24x32xf32> to vector<24x32xf32>
    %c1_37 = arith.constant 1 : index
    %c0_38 = arith.constant 0 : index
    %c0_39 = arith.constant 0 : index
    %29 = vector.load %arg5[%c1_37, %c0_38, %c0_39] : memref<6x32x32xf32, #tpu.memory_space<vmem>>, vector<1x32x32xf32>
    %30 = vector.shape_cast %29 : vector<1x32x32xf32> to vector<32x32xf32>
    %cst_40 = arith.constant dense<0.000000e+00> : vector<24x32xf32>
    %31 = tpu.matmul %28, %30, %cst_40 {dimension_numbers = #tpu.dot_dimension_numbers<[1], [0], [0], [1], [0, 0, 1, 1], [], []>} : vector<24x32xf32>, vector<32x32xf32>, vector<24x32xf32> -> vector<24x32xf32>
    %32 = arith.addf %26, %31 : vector<24x32xf32>
    %33 = arith.addf %22, %32 : vector<24x32xf32>
    %c4 = arith.constant 4 : index
    %c0_41 = arith.constant 0 : index
    %34 = vector.load %arg12[%c4, %c0_41] : memref<40x32xf32, #tpu.memory_space<vmem>>, vector<24x32xf32>
    %c2 = arith.constant 2 : index
    %c0_42 = arith.constant 0 : index
    %c0_43 = arith.constant 0 : index
    %35 = vector.load %arg4[%c2, %c0_42, %c0_43] : memref<6x32x32xf32, #tpu.memory_space<vmem>>, vector<1x32x32xf32>
    %36 = vector.shape_cast %35 : vector<1x32x32xf32> to vector<32x32xf32>
    %cst_44 = arith.constant dense<0.000000e+00> : vector<24x32xf32>
    %37 = tpu.matmul %34, %36, %cst_44 {dimension_numbers = #tpu.dot_dimension_numbers<[1], [0], [0], [1], [0, 0, 1, 1], [], []>} : vector<24x32xf32>, vector<32x32xf32>, vector<24x32xf32> -> vector<24x32xf32>
    %c0_45 = arith.constant 0 : index
    %c4_46 = arith.constant 4 : index
    %c0_47 = arith.constant 0 : index
    %38 = vector.load %arg2[%c0_45, %c4_46, %c0_47] : memref<1x40x32xf32, #tpu.memory_space<vmem>>, vector<1x24x32xf32>
    %39 = vector.shape_cast %38 : vector<1x24x32xf32> to vector<24x32xf32>
    %c2_48 = arith.constant 2 : index
    %c0_49 = arith.constant 0 : index
    %c0_50 = arith.constant 0 : index
    %40 = vector.load %arg5[%c2_48, %c0_49, %c0_50] : memref<6x32x32xf32, #tpu.memory_space<vmem>>, vector<1x32x32xf32>
    %41 = vector.shape_cast %40 : vector<1x32x32xf32> to vector<32x32xf32>
    %cst_51 = arith.constant dense<0.000000e+00> : vector<24x32xf32>
    %42 = tpu.matmul %39, %41, %cst_51 {dimension_numbers = #tpu.dot_dimension_numbers<[1], [0], [0], [1], [0, 0, 1, 1], [], []>} : vector<24x32xf32>, vector<32x32xf32>, vector<24x32xf32> -> vector<24x32xf32>
    %43 = arith.addf %37, %42 : vector<24x32xf32>
    %44 = arith.addf %33, %43 : vector<24x32xf32>
    %c5 = arith.constant 5 : index
    %c0_52 = arith.constant 0 : index
    %45 = vector.load %arg12[%c5, %c0_52] : memref<40x32xf32, #tpu.memory_space<vmem>>, vector<24x32xf32>
    %c3 = arith.constant 3 : index
    %c0_53 = arith.constant 0 : index
    %c0_54 = arith.constant 0 : index
    %46 = vector.load %arg4[%c3, %c0_53, %c0_54] : memref<6x32x32xf32, #tpu.memory_space<vmem>>, vector<1x32x32xf32>
    %47 = vector.shape_cast %46 : vector<1x32x32xf32> to vector<32x32xf32>
    %cst_55 = arith.constant dense<0.000000e+00> : vector<24x32xf32>
    %48 = tpu.matmul %45, %47, %cst_55 {dimension_numbers = #tpu.dot_dimension_numbers<[1], [0], [0], [1], [0, 0, 1, 1], [], []>} : vector<24x32xf32>, vector<32x32xf32>, vector<24x32xf32> -> vector<24x32xf32>
    %c0_56 = arith.constant 0 : index
    %c5_57 = arith.constant 5 : index
    %c0_58 = arith.constant 0 : index
    %49 = vector.load %arg2[%c0_56, %c5_57, %c0_58] : memref<1x40x32xf32, #tpu.memory_space<vmem>>, vector<1x24x32xf32>
    %50 = vector.shape_cast %49 : vector<1x24x32xf32> to vector<24x32xf32>
    %c3_59 = arith.constant 3 : index
    %c0_60 = arith.constant 0 : index
    %c0_61 = arith.constant 0 : index
    %51 = vector.load %arg5[%c3_59, %c0_60, %c0_61] : memref<6x32x32xf32, #tpu.memory_space<vmem>>, vector<1x32x32xf32>
    %52 = vector.shape_cast %51 : vector<1x32x32xf32> to vector<32x32xf32>
    %cst_62 = arith.constant dense<0.000000e+00> : vector<24x32xf32>
    %53 = tpu.matmul %50, %52, %cst_62 {dimension_numbers = #tpu.dot_dimension_numbers<[1], [0], [0], [1], [0, 0, 1, 1], [], []>} : vector<24x32xf32>, vector<32x32xf32>, vector<24x32xf32> -> vector<24x32xf32>
    %54 = arith.addf %48, %53 : vector<24x32xf32>
    %55 = arith.addf %44, %54 : vector<24x32xf32>
    %c8 = arith.constant 8 : index
    %c0_63 = arith.constant 0 : index
    %56 = vector.load %arg12[%c8, %c0_63] : memref<40x32xf32, #tpu.memory_space<vmem>>, vector<24x32xf32>
    %c4_64 = arith.constant 4 : index
    %c0_65 = arith.constant 0 : index
    %c0_66 = arith.constant 0 : index
    %57 = vector.load %arg4[%c4_64, %c0_65, %c0_66] : memref<6x32x32xf32, #tpu.memory_space<vmem>>, vector<1x32x32xf32>
    %58 = vector.shape_cast %57 : vector<1x32x32xf32> to vector<32x32xf32>
    %cst_67 = arith.constant dense<0.000000e+00> : vector<24x32xf32>
    %59 = tpu.matmul %56, %58, %cst_67 {dimension_numbers = #tpu.dot_dimension_numbers<[1], [0], [0], [1], [0, 0, 1, 1], [], []>} : vector<24x32xf32>, vector<32x32xf32>, vector<24x32xf32> -> vector<24x32xf32>
    %c0_68 = arith.constant 0 : index
    %c8_69 = arith.constant 8 : index
    %c0_70 = arith.constant 0 : index
    %60 = vector.load %arg2[%c0_68, %c8_69, %c0_70] : memref<1x40x32xf32, #tpu.memory_space<vmem>>, vector<1x24x32xf32>
    %61 = vector.shape_cast %60 : vector<1x24x32xf32> to vector<24x32xf32>
    %c4_71 = arith.constant 4 : index
    %c0_72 = arith.constant 0 : index
    %c0_73 = arith.constant 0 : index
    %62 = vector.load %arg5[%c4_71, %c0_72, %c0_73] : memref<6x32x32xf32, #tpu.memory_space<vmem>>, vector<1x32x32xf32>
    %63 = vector.shape_cast %62 : vector<1x32x32xf32> to vector<32x32xf32>
    %cst_74 = arith.constant dense<0.000000e+00> : vector<24x32xf32>
    %64 = tpu.matmul %61, %63, %cst_74 {dimension_numbers = #tpu.dot_dimension_numbers<[1], [0], [0], [1], [0, 0, 1, 1], [], []>} : vector<24x32xf32>, vector<32x32xf32>, vector<24x32xf32> -> vector<24x32xf32>
    %65 = arith.addf %59, %64 : vector<24x32xf32>
    %66 = arith.addf %55, %65 : vector<24x32xf32>
    %c9 = arith.constant 9 : index
    %c0_75 = arith.constant 0 : index
    %67 = vector.load %arg12[%c9, %c0_75] : memref<40x32xf32, #tpu.memory_space<vmem>>, vector<24x32xf32>
    %c5_76 = arith.constant 5 : index
    %c0_77 = arith.constant 0 : index
    %c0_78 = arith.constant 0 : index
    %68 = vector.load %arg4[%c5_76, %c0_77, %c0_78] : memref<6x32x32xf32, #tpu.memory_space<vmem>>, vector<1x32x32xf32>
    %69 = vector.shape_cast %68 : vector<1x32x32xf32> to vector<32x32xf32>
    %cst_79 = arith.constant dense<0.000000e+00> : vector<24x32xf32>
    %70 = tpu.matmul %67, %69, %cst_79 {dimension_numbers = #tpu.dot_dimension_numbers<[1], [0], [0], [1], [0, 0, 1, 1], [], []>} : vector<24x32xf32>, vector<32x32xf32>, vector<24x32xf32> -> vector<24x32xf32>
    %c0_80 = arith.constant 0 : index
    %c9_81 = arith.constant 9 : index
    %c0_82 = arith.constant 0 : index
    %71 = vector.load %arg2[%c0_80, %c9_81, %c0_82] : memref<1x40x32xf32, #tpu.memory_space<vmem>>, vector<1x24x32xf32>
    %72 = vector.shape_cast %71 : vector<1x24x32xf32> to vector<24x32xf32>
    %c5_83 = arith.constant 5 : index
    %c0_84 = arith.constant 0 : index
    %c0_85 = arith.constant 0 : index
    %73 = vector.load %arg5[%c5_83, %c0_84, %c0_85] : memref<6x32x32xf32, #tpu.memory_space<vmem>>, vector<1x32x32xf32>
    %74 = vector.shape_cast %73 : vector<1x32x32xf32> to vector<32x32xf32>
    %cst_86 = arith.constant dense<0.000000e+00> : vector<24x32xf32>
    %75 = tpu.matmul %72, %74, %cst_86 {dimension_numbers = #tpu.dot_dimension_numbers<[1], [0], [0], [1], [0, 0, 1, 1], [], []>} : vector<24x32xf32>, vector<32x32xf32>, vector<24x32xf32> -> vector<24x32xf32>
    %76 = arith.addf %70, %75 : vector<24x32xf32>
    %77 = arith.addf %66, %76 : vector<24x32xf32>
    %c0_87 = arith.constant 0 : index
    %c0_88 = arith.constant 0 : index
    %78 = vector.load %arg6[%c0_87, %c0_88] : memref<1x32xf32, #tpu.memory_space<vmem>>, vector<1x32xf32>
    %79 = vector.broadcast %78 : vector<1x32xf32> to vector<24x32xf32>
    %80 = arith.addf %77, %79 : vector<24x32xf32>
    %cst_89 = arith.constant 0.000000e+00 : f32
    %81 = vector.broadcast %cst_89 : f32 to vector<24x32xf32>
    %82 = arith.cmpf oge, %80, %81 : vector<24x32xf32>
    %cst_90 = arith.constant 0.00999999977 : f32
    %83 = vector.broadcast %cst_90 : f32 to vector<24x32xf32>
    %84 = arith.mulf %80, %83 : vector<24x32xf32>
    %85 = arith.select %82, %80, %84 : vector<24x32xi1>, vector<24x32xf32>
    %c0_91 = arith.constant 0 : index
    %c0_92 = arith.constant 0 : index
    %86 = vector.load %arg13[%c0_91, %c0_92] : memref<32x32xf32, #tpu.memory_space<vmem>>, vector<24x32xf32>
    tpu.vector_store %arg13[%c0_91, %c0_92], %85 {strides = array<i32>} : memref<32x32xf32, #tpu.memory_space<vmem>>, vector<24x32xf32>,
    %cst_93 = arith.constant 0.000000e+00 : f32
    %87 = vector.broadcast %cst_93 : f32 to vector<8x32xf32>
    %c24 = arith.constant 24 : index
    %c0_94 = arith.constant 0 : index
    %88 = vector.load %arg13[%c24, %c0_94] : memref<32x32xf32, #tpu.memory_space<vmem>>, vector<8x32xf32>
    tpu.vector_store %arg13[%c24, %c0_94], %87 {strides = array<i32>} : memref<32x32xf32, #tpu.memory_space<vmem>>, vector<8x32xf32>,
    %c0_95 = arith.constant 0 : index
    %c0_96 = arith.constant 0 : index
    %89 = vector.load %arg13[%c0_95, %c0_96] : memref<32x32xf32, #tpu.memory_space<vmem>>, vector<16x32xf32>
    %c0_97 = arith.constant 0 : index
    %c0_98 = arith.constant 0 : index
    %c0_99 = arith.constant 0 : index
    %90 = vector.load %arg7[%c0_97, %c0_98, %c0_99] : memref<6x32x32xf32, #tpu.memory_space<vmem>>, vector<1x32x32xf32>
    %91 = vector.shape_cast %90 : vector<1x32x32xf32> to vector<32x32xf32>
    %cst_100 = arith.constant dense<0.000000e+00> : vector<16x32xf32>
    %92 = tpu.matmul %89, %91, %cst_100 {dimension_numbers = #tpu.dot_dimension_numbers<[1], [0], [0], [1], [0, 0, 1, 1], [], []>} : vector<16x32xf32>, vector<32x32xf32>, vector<16x32xf32> -> vector<16x32xf32>
    %c1_101 = arith.constant 1 : index
    %c0_102 = arith.constant 0 : index
    %93 = vector.load %arg13[%c1_101, %c0_102] : memref<32x32xf32, #tpu.memory_space<vmem>>, vector<16x32xf32>
    %c1_103 = arith.constant 1 : index
    %c0_104 = arith.constant 0 : index
    %c0_105 = arith.constant 0 : index
    %94 = vector.load %arg7[%c1_103, %c0_104, %c0_105] : memref<6x32x32xf32, #tpu.memory_space<vmem>>, vector<1x32x32xf32>
    %95 = vector.shape_cast %94 : vector<1x32x32xf32> to vector<32x32xf32>
    %cst_106 = arith.constant dense<0.000000e+00> : vector<16x32xf32>
    %96 = tpu.matmul %93, %95, %cst_106 {dimension_numbers = #tpu.dot_dimension_numbers<[1], [0], [0], [1], [0, 0, 1, 1], [], []>} : vector<16x32xf32>, vector<32x32xf32>, vector<16x32xf32> -> vector<16x32xf32>
    %97 = arith.addf %92, %96 : vector<16x32xf32>
    %c4_107 = arith.constant 4 : index
    %c0_108 = arith.constant 0 : index
    %98 = vector.load %arg13[%c4_107, %c0_108] : memref<32x32xf32, #tpu.memory_space<vmem>>, vector<16x32xf32>
    %c2_109 = arith.constant 2 : index
    %c0_110 = arith.constant 0 : index
    %c0_111 = arith.constant 0 : index
    %99 = vector.load %arg7[%c2_109, %c0_110, %c0_111] : memref<6x32x32xf32, #tpu.memory_space<vmem>>, vector<1x32x32xf32>
    %100 = vector.shape_cast %99 : vector<1x32x32xf32> to vector<32x32xf32>
    %cst_112 = arith.constant dense<0.000000e+00> : vector<16x32xf32>
    %101 = tpu.matmul %98, %100, %cst_112 {dimension_numbers = #tpu.dot_dimension_numbers<[1], [0], [0], [1], [0, 0, 1, 1], [], []>} : vector<16x32xf32>, vector<32x32xf32>, vector<16x32xf32> -> vector<16x32xf32>
    %102 = arith.addf %97, %101 : vector<16x32xf32>
    %c5_113 = arith.constant 5 : index
    %c0_114 = arith.constant 0 : index
    %103 = vector.load %arg13[%c5_113, %c0_114] : memref<32x32xf32, #tpu.memory_space<vmem>>, vector<16x32xf32>
    %c3_115 = arith.constant 3 : index
    %c0_116 = arith.constant 0 : index
    %c0_117 = arith.constant 0 : index
    %104 = vector.load %arg7[%c3_115, %c0_116, %c0_117] : memref<6x32x32xf32, #tpu.memory_space<vmem>>, vector<1x32x32xf32>
    %105 = vector.shape_cast %104 : vector<1x32x32xf32> to vector<32x32xf32>
    %cst_118 = arith.constant dense<0.000000e+00> : vector<16x32xf32>
    %106 = tpu.matmul %103, %105, %cst_118 {dimension_numbers = #tpu.dot_dimension_numbers<[1], [0], [0], [1], [0, 0, 1, 1], [], []>} : vector<16x32xf32>, vector<32x32xf32>, vector<16x32xf32> -> vector<16x32xf32>
    %107 = arith.addf %102, %106 : vector<16x32xf32>
    %c8_119 = arith.constant 8 : index
    %c0_120 = arith.constant 0 : index
    %108 = vector.load %arg13[%c8_119, %c0_120] : memref<32x32xf32, #tpu.memory_space<vmem>>, vector<16x32xf32>
    %c4_121 = arith.constant 4 : index
    %c0_122 = arith.constant 0 : index
    %c0_123 = arith.constant 0 : index
    %109 = vector.load %arg7[%c4_121, %c0_122, %c0_123] : memref<6x32x32xf32, #tpu.memory_space<vmem>>, vector<1x32x32xf32>
    %110 = vector.shape_cast %109 : vector<1x32x32xf32> to vector<32x32xf32>
    %cst_124 = arith.constant dense<0.000000e+00> : vector<16x32xf32>
    %111 = tpu.matmul %108, %110, %cst_124 {dimension_numbers = #tpu.dot_dimension_numbers<[1], [0], [0], [1], [0, 0, 1, 1], [], []>} : vector<16x32xf32>, vector<32x32xf32>, vector<16x32xf32> -> vector<16x32xf32>
    %112 = arith.addf %107, %111 : vector<16x32xf32>
    %c9_125 = arith.constant 9 : index
    %c0_126 = arith.constant 0 : index
    %113 = vector.load %arg13[%c9_125, %c0_126] : memref<32x32xf32, #tpu.memory_space<vmem>>, vector<16x32xf32>
    %c5_127 = arith.constant 5 : index
    %c0_128 = arith.constant 0 : index
    %c0_129 = arith.constant 0 : index
    %114 = vector.load %arg7[%c5_127, %c0_128, %c0_129] : memref<6x32x32xf32, #tpu.memory_space<vmem>>, vector<1x32x32xf32>
    %115 = vector.shape_cast %114 : vector<1x32x32xf32> to vector<32x32xf32>
    %cst_130 = arith.constant dense<0.000000e+00> : vector<16x32xf32>
    %116 = tpu.matmul %113, %115, %cst_130 {dimension_numbers = #tpu.dot_dimension_numbers<[1], [0], [0], [1], [0, 0, 1, 1], [], []>} : vector<16x32xf32>, vector<32x32xf32>, vector<16x32xf32> -> vector<16x32xf32>
    %117 = arith.addf %112, %116 : vector<16x32xf32>
    %c0_131 = arith.constant 0 : index
    %c0_132 = arith.constant 0 : index
    %118 = vector.load %arg8[%c0_131, %c0_132] : memref<1x32xf32, #tpu.memory_space<vmem>>, vector<1x32xf32>
    %119 = vector.broadcast %118 : vector<1x32xf32> to vector<16x32xf32>
    %120 = arith.addf %117, %119 : vector<16x32xf32>
    %cst_133 = arith.constant 0.000000e+00 : f32
    %121 = vector.broadcast %cst_133 : f32 to vector<16x32xf32>
    %122 = arith.cmpf oge, %120, %121 : vector<16x32xf32>
    %cst_134 = arith.constant 0.00999999977 : f32
    %123 = vector.broadcast %cst_134 : f32 to vector<16x32xf32>
    %124 = arith.mulf %120, %123 : vector<16x32xf32>
    %125 = arith.select %122, %120, %124 : vector<16x32xi1>, vector<16x32xf32>
    %c0_135 = arith.constant 0 : index
    %c0_136 = arith.constant 0 : index
    %126 = vector.load %arg14[%c0_135, %c0_136] : memref<16x32xf32, #tpu.memory_space<vmem>>, vector<16x32xf32>
    tpu.vector_store %arg14[%c0_135, %c0_136], %125 {strides = array<i32>} : memref<16x32xf32, #tpu.memory_space<vmem>>, vector<16x32xf32>,
    %c0_i32_137 = arith.constant 0 : i32
    %c4_i32_138 = arith.constant 4 : i32
    %127 = arith.addi %c0_i32_137, %c4_i32_138 : i32
    %c1_i32_139 = arith.constant 1 : i32
    scf.for %arg15 = %c0_i32_137 to %127 step %c1_i32_139  : i32 {
      %c4_i32_141 = arith.constant 4 : i32
      %128 = arith.muli %arg15, %c4_i32_141 : i32
      %129 = arith.index_cast %128 : i32 to index
      %c0_142 = arith.constant 0 : index
      %130 = vector.load %arg14[%129, %c0_142] : memref<16x32xf32, #tpu.memory_space<vmem>>, vector<2x32xf32>
      %c2_i32 = arith.constant 2 : i32
      %131 = arith.muli %arg15, %c2_i32 : i32
      %c0_143 = arith.constant 0 : index
      %132 = arith.index_cast %131 : i32 to index
      %c0_144 = arith.constant 0 : index
      %133 = vector.load %arg9[%c0_143, %132, %c0_144] : memref<1x8x32xf32, #tpu.memory_space<vmem>>, vector<1x2x32xf32>
      %134 = vector.shape_cast %133 : vector<1x2x32xf32> to vector<2x32xf32>
      %135 = vector.shape_cast %130 : vector<2x32xf32> to vector<1x2x32xf32>
      tpu.vector_store %arg9[%c0_143, %132, %c0_144], %135 {strides = array<i32>} : memref<1x8x32xf32, #tpu.memory_space<vmem>>, vector<1x2x32xf32>,
    }
    %c4_i32_140 = arith.constant 4 : i32
    return
  }
  func.func @transform_0(%arg0: i32) -> (i32, i32, i32) {
    %c0_i32 = arith.constant 0 : i32
    %c0_i32_0 = arith.constant 0 : i32
    %c0_i32_1 = arith.constant 0 : i32
    return %arg0, %c0_i32, %c0_i32_0 : i32, i32, i32
  }
  func.func @transform_1(%arg0: i32) -> (i32, i32, i32) {
    %c0_i32 = arith.constant 0 : i32
    %c0_i32_0 = arith.constant 0 : i32
    %c0_i32_1 = arith.constant 0 : i32
    return %arg0, %c0_i32, %c0_i32_0 : i32, i32, i32
  }
  func.func @transform_2(%arg0: i32) -> (i32, i32, i32) {
    %c0_i32 = arith.constant 0 : i32
    %c0_i32_0 = arith.constant 0 : i32
    %c0_i32_1 = arith.constant 0 : i32
    %c0_i32_2 = arith.constant 0 : i32
    return %c0_i32, %c0_i32_0, %c0_i32_1 : i32, i32, i32
  }
  func.func @transform_3(%arg0: i32) -> (i32, i32, i32) {
    %c0_i32 = arith.constant 0 : i32
    %c0_i32_0 = arith.constant 0 : i32
    %c0_i32_1 = arith.constant 0 : i32
    %c0_i32_2 = arith.constant 0 : i32
    return %c0_i32, %c0_i32_0, %c0_i32_1 : i32, i32, i32
  }
  func.func @transform_4(%arg0: i32) -> (i32, i32, i32) {
    %c0_i32 = arith.constant 0 : i32
    %c0_i32_0 = arith.constant 0 : i32
    %c0_i32_1 = arith.constant 0 : i32
    %c0_i32_2 = arith.constant 0 : i32
    return %c0_i32, %c0_i32_0, %c0_i32_1 : i32, i32, i32
  }
  func.func @transform_5(%arg0: i32) -> (i32, i32) {
    %c0_i32 = arith.constant 0 : i32
    %c0_i32_0 = arith.constant 0 : i32
    %c0_i32_1 = arith.constant 0 : i32
    return %c0_i32, %c0_i32_0 : i32, i32
  }
  func.func @transform_6(%arg0: i32) -> (i32, i32, i32) {
    %c0_i32 = arith.constant 0 : i32
    %c0_i32_0 = arith.constant 0 : i32
    %c0_i32_1 = arith.constant 0 : i32
    %c0_i32_2 = arith.constant 0 : i32
    return %c0_i32, %c0_i32_0, %c0_i32_1 : i32, i32, i32
  }
  func.func @transform_7(%arg0: i32) -> (i32, i32) {
    %c0_i32 = arith.constant 0 : i32
    %c0_i32_0 = arith.constant 0 : i32
    %c0_i32_1 = arith.constant 0 : i32
    return %c0_i32, %c0_i32_0 : i32, i32
  }
  func.func @transform_8(%arg0: i32) -> (i32, i32, i32) {
    %c0_i32 = arith.constant 0 : i32
    %c0_i32_0 = arith.constant 0 : i32
    %c0_i32_1 = arith.constant 0 : i32
    return %arg0, %c0_i32, %c0_i32_0 : i32, i32, i32
  }
}

module attributes {stable_mosaic.version = 11 : i64} {
  func.func @_fused_stage_kernel(%arg0: i32, %arg1: memref<1x16x64xf32, #tpu.memory_space<vmem>>, %arg2: memref<1x40x64xf32, #tpu.memory_space<vmem>>, %arg3: memref<2x64x64xf32, #tpu.memory_space<vmem>>, %arg4: memref<6x64x64xf32, #tpu.memory_space<vmem>>, %arg5: memref<6x64x64xf32, #tpu.memory_space<vmem>>, %arg6: memref<1x64xf32, #tpu.memory_space<vmem>>, %arg7: memref<6x64x64xf32, #tpu.memory_space<vmem>>, %arg8: memref<1x64xf32, #tpu.memory_space<vmem>>, %arg9: memref<1x8x64xf32, #tpu.memory_space<vmem>>, %arg10: memref<16x64xf32, #tpu.memory_space<vmem>>, %arg11: memref<16x64xf32, #tpu.memory_space<vmem>>, %arg12: memref<40x64xf32, #tpu.memory_space<vmem>>, %arg13: memref<32x64xf32, #tpu.memory_space<vmem>>, %arg14: memref<16x64xf32, #tpu.memory_space<vmem>>) attributes {dimension_semantics = [#tpu.dimension_semantics<parallel>], iteration_bounds = array<i64: 2>, scalar_prefetch = 0 : i64, scratch_operands = 5 : i64, tpu.core_type = #tpu.core_type<tc>, window_params = [{transform_indices = @transform_0, window_bounds = array<i64: 1, 16, 64>}, {transform_indices = @transform_1, window_bounds = array<i64: 1, 40, 64>}, {pipeline_mode = #tpu.pipeline_mode<synchronous>, transform_indices = @transform_2, window_bounds = array<i64: 2, 64, 64>}, {pipeline_mode = #tpu.pipeline_mode<synchronous>, transform_indices = @transform_3, window_bounds = array<i64: 6, 64, 64>}, {pipeline_mode = #tpu.pipeline_mode<synchronous>, transform_indices = @transform_4, window_bounds = array<i64: 6, 64, 64>}, {pipeline_mode = #tpu.pipeline_mode<synchronous>, transform_indices = @transform_5, window_bounds = array<i64: 1, 64>}, {pipeline_mode = #tpu.pipeline_mode<synchronous>, transform_indices = @transform_6, window_bounds = array<i64: 6, 64, 64>}, {pipeline_mode = #tpu.pipeline_mode<synchronous>, transform_indices = @transform_7, window_bounds = array<i64: 1, 64>}, {transform_indices = @transform_8, window_bounds = array<i64: 1, 8, 64>}]} {
    %c0 = arith.constant 0 : index
    %c0_0 = arith.constant 0 : index
    %c0_1 = arith.constant 0 : index
    %0 = vector.load %arg1[%c0, %c0_0, %c0_1] : memref<1x16x64xf32, #tpu.memory_space<vmem>>, vector<1x16x64xf32>
    %1 = vector.shape_cast %0 : vector<1x16x64xf32> to vector<16x64xf32>
    %c0_2 = arith.constant 0 : index
    %c0_3 = arith.constant 0 : index
    %c0_4 = arith.constant 0 : index
    %2 = vector.load %arg3[%c0_2, %c0_3, %c0_4] : memref<2x64x64xf32, #tpu.memory_space<vmem>>, vector<1x64x64xf32>
    %3 = vector.shape_cast %2 : vector<1x64x64xf32> to vector<64x64xf32>
    %cst = arith.constant dense<0.000000e+00> : vector<16x64xf32>
    %4 = tpu.matmul %1, %3, %cst {dimension_numbers = #tpu.dot_dimension_numbers<[1], [0], [0], [1], [0, 0, 1, 1], [], []>} : vector<16x64xf32>, vector<64x64xf32>, vector<16x64xf32> -> vector<16x64xf32>
    %c0_5 = arith.constant 0 : index
    %c0_6 = arith.constant 0 : index
    %5 = vector.load %arg10[%c0_5, %c0_6] : memref<16x64xf32, #tpu.memory_space<vmem>>, vector<16x64xf32>
    tpu.vector_store %arg10[%c0_5, %c0_6], %4 {strides = array<i32>} : memref<16x64xf32, #tpu.memory_space<vmem>>, vector<16x64xf32>,
    %c1 = arith.constant 1 : index
    %c0_7 = arith.constant 0 : index
    %c0_8 = arith.constant 0 : index
    %6 = vector.load %arg3[%c1, %c0_7, %c0_8] : memref<2x64x64xf32, #tpu.memory_space<vmem>>, vector<1x64x64xf32>
    %7 = vector.shape_cast %6 : vector<1x64x64xf32> to vector<64x64xf32>
    %cst_9 = arith.constant dense<0.000000e+00> : vector<16x64xf32>
    %8 = tpu.matmul %1, %7, %cst_9 {dimension_numbers = #tpu.dot_dimension_numbers<[1], [0], [0], [1], [0, 0, 1, 1], [], []>} : vector<16x64xf32>, vector<64x64xf32>, vector<16x64xf32> -> vector<16x64xf32>
    %c0_10 = arith.constant 0 : index
    %c0_11 = arith.constant 0 : index
    %9 = vector.load %arg11[%c0_10, %c0_11] : memref<16x64xf32, #tpu.memory_space<vmem>>, vector<16x64xf32>
    tpu.vector_store %arg11[%c0_10, %c0_11], %8 {strides = array<i32>} : memref<16x64xf32, #tpu.memory_space<vmem>>, vector<16x64xf32>,
    %cst_12 = arith.constant 0.000000e+00 : f32
    %10 = vector.broadcast %cst_12 : f32 to vector<8x64xf32>
    %c32 = arith.constant 32 : index
    %c0_13 = arith.constant 0 : index
    %11 = vector.load %arg12[%c32, %c0_13] : memref<40x64xf32, #tpu.memory_space<vmem>>, vector<8x64xf32>
    tpu.vector_store %arg12[%c32, %c0_13], %10 {strides = array<i32>} : memref<40x64xf32, #tpu.memory_space<vmem>>, vector<8x64xf32>,
    %c0_i32 = arith.constant 0 : i32
    %c4_i32 = arith.constant 4 : i32
    %12 = arith.addi %c0_i32, %c4_i32 : i32
    %c1_i32 = arith.constant 1 : i32
    scf.for %arg15 = %c0_i32 to %12 step %c1_i32  : i32 {
      %c4_i32_141 = arith.constant 4 : i32
      %128 = arith.muli %arg15, %c4_i32_141 : i32
      %129 = arith.index_cast %128 : i32 to index
      %c0_142 = arith.constant 0 : index
      %130 = vector.load %arg10[%129, %c0_142] : memref<16x64xf32, #tpu.memory_space<vmem>>, vector<4x64xf32>
      %c2_i32 = arith.constant 2 : i32
      %131 = arith.muli %c2_i32, %arg15 : i32
      %c4_i32_143 = arith.constant 4 : i32
      %132 = arith.muli %131, %c4_i32_143 : i32
      %133 = arith.index_cast %132 : i32 to index
      %c0_144 = arith.constant 0 : index
      %134 = vector.load %arg12[%133, %c0_144] : memref<40x64xf32, #tpu.memory_space<vmem>>, vector<4x64xf32>
      tpu.vector_store %arg12[%133, %c0_144], %130 {strides = array<i32>} : memref<40x64xf32, #tpu.memory_space<vmem>>, vector<4x64xf32>,
      %c4_i32_145 = arith.constant 4 : i32
      %135 = arith.muli %arg15, %c4_i32_145 : i32
      %136 = arith.index_cast %135 : i32 to index
      %c0_146 = arith.constant 0 : index
      %137 = vector.load %arg11[%136, %c0_146] : memref<16x64xf32, #tpu.memory_space<vmem>>, vector<4x64xf32>
      %c2_i32_147 = arith.constant 2 : i32
      %138 = arith.muli %c2_i32_147, %arg15 : i32
      %c1_i32_148 = arith.constant 1 : i32
      %139 = arith.addi %138, %c1_i32_148 : i32
      %c4_i32_149 = arith.constant 4 : i32
      %140 = arith.muli %139, %c4_i32_149 : i32
      %141 = arith.index_cast %140 : i32 to index
      %c0_150 = arith.constant 0 : index
      %142 = vector.load %arg12[%141, %c0_150] : memref<40x64xf32, #tpu.memory_space<vmem>>, vector<4x64xf32>
      tpu.vector_store %arg12[%141, %c0_150], %137 {strides = array<i32>} : memref<40x64xf32, #tpu.memory_space<vmem>>, vector<4x64xf32>,
    }
    %c4_i32_14 = arith.constant 4 : i32
    %c0_15 = arith.constant 0 : index
    %c0_16 = arith.constant 0 : index
    %13 = vector.load %arg12[%c0_15, %c0_16] : memref<40x64xf32, #tpu.memory_space<vmem>>, vector<24x64xf32>
    %c0_17 = arith.constant 0 : index
    %c0_18 = arith.constant 0 : index
    %c0_19 = arith.constant 0 : index
    %14 = vector.load %arg4[%c0_17, %c0_18, %c0_19] : memref<6x64x64xf32, #tpu.memory_space<vmem>>, vector<1x64x64xf32>
    %15 = vector.shape_cast %14 : vector<1x64x64xf32> to vector<64x64xf32>
    %cst_20 = arith.constant dense<0.000000e+00> : vector<24x64xf32>
    %16 = tpu.matmul %13, %15, %cst_20 {dimension_numbers = #tpu.dot_dimension_numbers<[1], [0], [0], [1], [0, 0, 1, 1], [], []>} : vector<24x64xf32>, vector<64x64xf32>, vector<24x64xf32> -> vector<24x64xf32>
    %c0_21 = arith.constant 0 : index
    %c0_22 = arith.constant 0 : index
    %c0_23 = arith.constant 0 : index
    %17 = vector.load %arg2[%c0_21, %c0_22, %c0_23] : memref<1x40x64xf32, #tpu.memory_space<vmem>>, vector<1x24x64xf32>
    %18 = vector.shape_cast %17 : vector<1x24x64xf32> to vector<24x64xf32>
    %c0_24 = arith.constant 0 : index
    %c0_25 = arith.constant 0 : index
    %c0_26 = arith.constant 0 : index
    %19 = vector.load %arg5[%c0_24, %c0_25, %c0_26] : memref<6x64x64xf32, #tpu.memory_space<vmem>>, vector<1x64x64xf32>
    %20 = vector.shape_cast %19 : vector<1x64x64xf32> to vector<64x64xf32>
    %cst_27 = arith.constant dense<0.000000e+00> : vector<24x64xf32>
    %21 = tpu.matmul %18, %20, %cst_27 {dimension_numbers = #tpu.dot_dimension_numbers<[1], [0], [0], [1], [0, 0, 1, 1], [], []>} : vector<24x64xf32>, vector<64x64xf32>, vector<24x64xf32> -> vector<24x64xf32>
    %22 = arith.addf %16, %21 : vector<24x64xf32>
    %c1_28 = arith.constant 1 : index
    %c0_29 = arith.constant 0 : index
    %23 = vector.load %arg12[%c1_28, %c0_29] : memref<40x64xf32, #tpu.memory_space<vmem>>, vector<24x64xf32>
    %c1_30 = arith.constant 1 : index
    %c0_31 = arith.constant 0 : index
    %c0_32 = arith.constant 0 : index
    %24 = vector.load %arg4[%c1_30, %c0_31, %c0_32] : memref<6x64x64xf32, #tpu.memory_space<vmem>>, vector<1x64x64xf32>
    %25 = vector.shape_cast %24 : vector<1x64x64xf32> to vector<64x64xf32>
    %cst_33 = arith.constant dense<0.000000e+00> : vector<24x64xf32>
    %26 = tpu.matmul %23, %25, %cst_33 {dimension_numbers = #tpu.dot_dimension_numbers<[1], [0], [0], [1], [0, 0, 1, 1], [], []>} : vector<24x64xf32>, vector<64x64xf32>, vector<24x64xf32> -> vector<24x64xf32>
    %c0_34 = arith.constant 0 : index
    %c1_35 = arith.constant 1 : index
    %c0_36 = arith.constant 0 : index
    %27 = vector.load %arg2[%c0_34, %c1_35, %c0_36] : memref<1x40x64xf32, #tpu.memory_space<vmem>>, vector<1x24x64xf32>
    %28 = vector.shape_cast %27 : vector<1x24x64xf32> to vector<24x64xf32>
    %c1_37 = arith.constant 1 : index
    %c0_38 = arith.constant 0 : index
    %c0_39 = arith.constant 0 : index
    %29 = vector.load %arg5[%c1_37, %c0_38, %c0_39] : memref<6x64x64xf32, #tpu.memory_space<vmem>>, vector<1x64x64xf32>
    %30 = vector.shape_cast %29 : vector<1x64x64xf32> to vector<64x64xf32>
    %cst_40 = arith.constant dense<0.000000e+00> : vector<24x64xf32>
    %31 = tpu.matmul %28, %30, %cst_40 {dimension_numbers = #tpu.dot_dimension_numbers<[1], [0], [0], [1], [0, 0, 1, 1], [], []>} : vector<24x64xf32>, vector<64x64xf32>, vector<24x64xf32> -> vector<24x64xf32>
    %32 = arith.addf %26, %31 : vector<24x64xf32>
    %33 = arith.addf %22, %32 : vector<24x64xf32>
    %c4 = arith.constant 4 : index
    %c0_41 = arith.constant 0 : index
    %34 = vector.load %arg12[%c4, %c0_41] : memref<40x64xf32, #tpu.memory_space<vmem>>, vector<24x64xf32>
    %c2 = arith.constant 2 : index
    %c0_42 = arith.constant 0 : index
    %c0_43 = arith.constant 0 : index
    %35 = vector.load %arg4[%c2, %c0_42, %c0_43] : memref<6x64x64xf32, #tpu.memory_space<vmem>>, vector<1x64x64xf32>
    %36 = vector.shape_cast %35 : vector<1x64x64xf32> to vector<64x64xf32>
    %cst_44 = arith.constant dense<0.000000e+00> : vector<24x64xf32>
    %37 = tpu.matmul %34, %36, %cst_44 {dimension_numbers = #tpu.dot_dimension_numbers<[1], [0], [0], [1], [0, 0, 1, 1], [], []>} : vector<24x64xf32>, vector<64x64xf32>, vector<24x64xf32> -> vector<24x64xf32>
    %c0_45 = arith.constant 0 : index
    %c4_46 = arith.constant 4 : index
    %c0_47 = arith.constant 0 : index
    %38 = vector.load %arg2[%c0_45, %c4_46, %c0_47] : memref<1x40x64xf32, #tpu.memory_space<vmem>>, vector<1x24x64xf32>
    %39 = vector.shape_cast %38 : vector<1x24x64xf32> to vector<24x64xf32>
    %c2_48 = arith.constant 2 : index
    %c0_49 = arith.constant 0 : index
    %c0_50 = arith.constant 0 : index
    %40 = vector.load %arg5[%c2_48, %c0_49, %c0_50] : memref<6x64x64xf32, #tpu.memory_space<vmem>>, vector<1x64x64xf32>
    %41 = vector.shape_cast %40 : vector<1x64x64xf32> to vector<64x64xf32>
    %cst_51 = arith.constant dense<0.000000e+00> : vector<24x64xf32>
    %42 = tpu.matmul %39, %41, %cst_51 {dimension_numbers = #tpu.dot_dimension_numbers<[1], [0], [0], [1], [0, 0, 1, 1], [], []>} : vector<24x64xf32>, vector<64x64xf32>, vector<24x64xf32> -> vector<24x64xf32>
    %43 = arith.addf %37, %42 : vector<24x64xf32>
    %44 = arith.addf %33, %43 : vector<24x64xf32>
    %c5 = arith.constant 5 : index
    %c0_52 = arith.constant 0 : index
    %45 = vector.load %arg12[%c5, %c0_52] : memref<40x64xf32, #tpu.memory_space<vmem>>, vector<24x64xf32>
    %c3 = arith.constant 3 : index
    %c0_53 = arith.constant 0 : index
    %c0_54 = arith.constant 0 : index
    %46 = vector.load %arg4[%c3, %c0_53, %c0_54] : memref<6x64x64xf32, #tpu.memory_space<vmem>>, vector<1x64x64xf32>
    %47 = vector.shape_cast %46 : vector<1x64x64xf32> to vector<64x64xf32>
    %cst_55 = arith.constant dense<0.000000e+00> : vector<24x64xf32>
    %48 = tpu.matmul %45, %47, %cst_55 {dimension_numbers = #tpu.dot_dimension_numbers<[1], [0], [0], [1], [0, 0, 1, 1], [], []>} : vector<24x64xf32>, vector<64x64xf32>, vector<24x64xf32> -> vector<24x64xf32>
    %c0_56 = arith.constant 0 : index
    %c5_57 = arith.constant 5 : index
    %c0_58 = arith.constant 0 : index
    %49 = vector.load %arg2[%c0_56, %c5_57, %c0_58] : memref<1x40x64xf32, #tpu.memory_space<vmem>>, vector<1x24x64xf32>
    %50 = vector.shape_cast %49 : vector<1x24x64xf32> to vector<24x64xf32>
    %c3_59 = arith.constant 3 : index
    %c0_60 = arith.constant 0 : index
    %c0_61 = arith.constant 0 : index
    %51 = vector.load %arg5[%c3_59, %c0_60, %c0_61] : memref<6x64x64xf32, #tpu.memory_space<vmem>>, vector<1x64x64xf32>
    %52 = vector.shape_cast %51 : vector<1x64x64xf32> to vector<64x64xf32>
    %cst_62 = arith.constant dense<0.000000e+00> : vector<24x64xf32>
    %53 = tpu.matmul %50, %52, %cst_62 {dimension_numbers = #tpu.dot_dimension_numbers<[1], [0], [0], [1], [0, 0, 1, 1], [], []>} : vector<24x64xf32>, vector<64x64xf32>, vector<24x64xf32> -> vector<24x64xf32>
    %54 = arith.addf %48, %53 : vector<24x64xf32>
    %55 = arith.addf %44, %54 : vector<24x64xf32>
    %c8 = arith.constant 8 : index
    %c0_63 = arith.constant 0 : index
    %56 = vector.load %arg12[%c8, %c0_63] : memref<40x64xf32, #tpu.memory_space<vmem>>, vector<24x64xf32>
    %c4_64 = arith.constant 4 : index
    %c0_65 = arith.constant 0 : index
    %c0_66 = arith.constant 0 : index
    %57 = vector.load %arg4[%c4_64, %c0_65, %c0_66] : memref<6x64x64xf32, #tpu.memory_space<vmem>>, vector<1x64x64xf32>
    %58 = vector.shape_cast %57 : vector<1x64x64xf32> to vector<64x64xf32>
    %cst_67 = arith.constant dense<0.000000e+00> : vector<24x64xf32>
    %59 = tpu.matmul %56, %58, %cst_67 {dimension_numbers = #tpu.dot_dimension_numbers<[1], [0], [0], [1], [0, 0, 1, 1], [], []>} : vector<24x64xf32>, vector<64x64xf32>, vector<24x64xf32> -> vector<24x64xf32>
    %c0_68 = arith.constant 0 : index
    %c8_69 = arith.constant 8 : index
    %c0_70 = arith.constant 0 : index
    %60 = vector.load %arg2[%c0_68, %c8_69, %c0_70] : memref<1x40x64xf32, #tpu.memory_space<vmem>>, vector<1x24x64xf32>
    %61 = vector.shape_cast %60 : vector<1x24x64xf32> to vector<24x64xf32>
    %c4_71 = arith.constant 4 : index
    %c0_72 = arith.constant 0 : index
    %c0_73 = arith.constant 0 : index
    %62 = vector.load %arg5[%c4_71, %c0_72, %c0_73] : memref<6x64x64xf32, #tpu.memory_space<vmem>>, vector<1x64x64xf32>
    %63 = vector.shape_cast %62 : vector<1x64x64xf32> to vector<64x64xf32>
    %cst_74 = arith.constant dense<0.000000e+00> : vector<24x64xf32>
    %64 = tpu.matmul %61, %63, %cst_74 {dimension_numbers = #tpu.dot_dimension_numbers<[1], [0], [0], [1], [0, 0, 1, 1], [], []>} : vector<24x64xf32>, vector<64x64xf32>, vector<24x64xf32> -> vector<24x64xf32>
    %65 = arith.addf %59, %64 : vector<24x64xf32>
    %66 = arith.addf %55, %65 : vector<24x64xf32>
    %c9 = arith.constant 9 : index
    %c0_75 = arith.constant 0 : index
    %67 = vector.load %arg12[%c9, %c0_75] : memref<40x64xf32, #tpu.memory_space<vmem>>, vector<24x64xf32>
    %c5_76 = arith.constant 5 : index
    %c0_77 = arith.constant 0 : index
    %c0_78 = arith.constant 0 : index
    %68 = vector.load %arg4[%c5_76, %c0_77, %c0_78] : memref<6x64x64xf32, #tpu.memory_space<vmem>>, vector<1x64x64xf32>
    %69 = vector.shape_cast %68 : vector<1x64x64xf32> to vector<64x64xf32>
    %cst_79 = arith.constant dense<0.000000e+00> : vector<24x64xf32>
    %70 = tpu.matmul %67, %69, %cst_79 {dimension_numbers = #tpu.dot_dimension_numbers<[1], [0], [0], [1], [0, 0, 1, 1], [], []>} : vector<24x64xf32>, vector<64x64xf32>, vector<24x64xf32> -> vector<24x64xf32>
    %c0_80 = arith.constant 0 : index
    %c9_81 = arith.constant 9 : index
    %c0_82 = arith.constant 0 : index
    %71 = vector.load %arg2[%c0_80, %c9_81, %c0_82] : memref<1x40x64xf32, #tpu.memory_space<vmem>>, vector<1x24x64xf32>
    %72 = vector.shape_cast %71 : vector<1x24x64xf32> to vector<24x64xf32>
    %c5_83 = arith.constant 5 : index
    %c0_84 = arith.constant 0 : index
    %c0_85 = arith.constant 0 : index
    %73 = vector.load %arg5[%c5_83, %c0_84, %c0_85] : memref<6x64x64xf32, #tpu.memory_space<vmem>>, vector<1x64x64xf32>
    %74 = vector.shape_cast %73 : vector<1x64x64xf32> to vector<64x64xf32>
    %cst_86 = arith.constant dense<0.000000e+00> : vector<24x64xf32>
    %75 = tpu.matmul %72, %74, %cst_86 {dimension_numbers = #tpu.dot_dimension_numbers<[1], [0], [0], [1], [0, 0, 1, 1], [], []>} : vector<24x64xf32>, vector<64x64xf32>, vector<24x64xf32> -> vector<24x64xf32>
    %76 = arith.addf %70, %75 : vector<24x64xf32>
    %77 = arith.addf %66, %76 : vector<24x64xf32>
    %c0_87 = arith.constant 0 : index
    %c0_88 = arith.constant 0 : index
    %78 = vector.load %arg6[%c0_87, %c0_88] : memref<1x64xf32, #tpu.memory_space<vmem>>, vector<1x64xf32>
    %79 = vector.broadcast %78 : vector<1x64xf32> to vector<24x64xf32>
    %80 = arith.addf %77, %79 : vector<24x64xf32>
    %cst_89 = arith.constant 0.000000e+00 : f32
    %81 = vector.broadcast %cst_89 : f32 to vector<24x64xf32>
    %82 = arith.cmpf oge, %80, %81 : vector<24x64xf32>
    %cst_90 = arith.constant 0.00999999977 : f32
    %83 = vector.broadcast %cst_90 : f32 to vector<24x64xf32>
    %84 = arith.mulf %80, %83 : vector<24x64xf32>
    %85 = arith.select %82, %80, %84 : vector<24x64xi1>, vector<24x64xf32>
    %c0_91 = arith.constant 0 : index
    %c0_92 = arith.constant 0 : index
    %86 = vector.load %arg13[%c0_91, %c0_92] : memref<32x64xf32, #tpu.memory_space<vmem>>, vector<24x64xf32>
    tpu.vector_store %arg13[%c0_91, %c0_92], %85 {strides = array<i32>} : memref<32x64xf32, #tpu.memory_space<vmem>>, vector<24x64xf32>,
    %cst_93 = arith.constant 0.000000e+00 : f32
    %87 = vector.broadcast %cst_93 : f32 to vector<8x64xf32>
    %c24 = arith.constant 24 : index
    %c0_94 = arith.constant 0 : index
    %88 = vector.load %arg13[%c24, %c0_94] : memref<32x64xf32, #tpu.memory_space<vmem>>, vector<8x64xf32>
    tpu.vector_store %arg13[%c24, %c0_94], %87 {strides = array<i32>} : memref<32x64xf32, #tpu.memory_space<vmem>>, vector<8x64xf32>,
    %c0_95 = arith.constant 0 : index
    %c0_96 = arith.constant 0 : index
    %89 = vector.load %arg13[%c0_95, %c0_96] : memref<32x64xf32, #tpu.memory_space<vmem>>, vector<16x64xf32>
    %c0_97 = arith.constant 0 : index
    %c0_98 = arith.constant 0 : index
    %c0_99 = arith.constant 0 : index
    %90 = vector.load %arg7[%c0_97, %c0_98, %c0_99] : memref<6x64x64xf32, #tpu.memory_space<vmem>>, vector<1x64x64xf32>
    %91 = vector.shape_cast %90 : vector<1x64x64xf32> to vector<64x64xf32>
    %cst_100 = arith.constant dense<0.000000e+00> : vector<16x64xf32>
    %92 = tpu.matmul %89, %91, %cst_100 {dimension_numbers = #tpu.dot_dimension_numbers<[1], [0], [0], [1], [0, 0, 1, 1], [], []>} : vector<16x64xf32>, vector<64x64xf32>, vector<16x64xf32> -> vector<16x64xf32>
    %c1_101 = arith.constant 1 : index
    %c0_102 = arith.constant 0 : index
    %93 = vector.load %arg13[%c1_101, %c0_102] : memref<32x64xf32, #tpu.memory_space<vmem>>, vector<16x64xf32>
    %c1_103 = arith.constant 1 : index
    %c0_104 = arith.constant 0 : index
    %c0_105 = arith.constant 0 : index
    %94 = vector.load %arg7[%c1_103, %c0_104, %c0_105] : memref<6x64x64xf32, #tpu.memory_space<vmem>>, vector<1x64x64xf32>
    %95 = vector.shape_cast %94 : vector<1x64x64xf32> to vector<64x64xf32>
    %cst_106 = arith.constant dense<0.000000e+00> : vector<16x64xf32>
    %96 = tpu.matmul %93, %95, %cst_106 {dimension_numbers = #tpu.dot_dimension_numbers<[1], [0], [0], [1], [0, 0, 1, 1], [], []>} : vector<16x64xf32>, vector<64x64xf32>, vector<16x64xf32> -> vector<16x64xf32>
    %97 = arith.addf %92, %96 : vector<16x64xf32>
    %c4_107 = arith.constant 4 : index
    %c0_108 = arith.constant 0 : index
    %98 = vector.load %arg13[%c4_107, %c0_108] : memref<32x64xf32, #tpu.memory_space<vmem>>, vector<16x64xf32>
    %c2_109 = arith.constant 2 : index
    %c0_110 = arith.constant 0 : index
    %c0_111 = arith.constant 0 : index
    %99 = vector.load %arg7[%c2_109, %c0_110, %c0_111] : memref<6x64x64xf32, #tpu.memory_space<vmem>>, vector<1x64x64xf32>
    %100 = vector.shape_cast %99 : vector<1x64x64xf32> to vector<64x64xf32>
    %cst_112 = arith.constant dense<0.000000e+00> : vector<16x64xf32>
    %101 = tpu.matmul %98, %100, %cst_112 {dimension_numbers = #tpu.dot_dimension_numbers<[1], [0], [0], [1], [0, 0, 1, 1], [], []>} : vector<16x64xf32>, vector<64x64xf32>, vector<16x64xf32> -> vector<16x64xf32>
    %102 = arith.addf %97, %101 : vector<16x64xf32>
    %c5_113 = arith.constant 5 : index
    %c0_114 = arith.constant 0 : index
    %103 = vector.load %arg13[%c5_113, %c0_114] : memref<32x64xf32, #tpu.memory_space<vmem>>, vector<16x64xf32>
    %c3_115 = arith.constant 3 : index
    %c0_116 = arith.constant 0 : index
    %c0_117 = arith.constant 0 : index
    %104 = vector.load %arg7[%c3_115, %c0_116, %c0_117] : memref<6x64x64xf32, #tpu.memory_space<vmem>>, vector<1x64x64xf32>
    %105 = vector.shape_cast %104 : vector<1x64x64xf32> to vector<64x64xf32>
    %cst_118 = arith.constant dense<0.000000e+00> : vector<16x64xf32>
    %106 = tpu.matmul %103, %105, %cst_118 {dimension_numbers = #tpu.dot_dimension_numbers<[1], [0], [0], [1], [0, 0, 1, 1], [], []>} : vector<16x64xf32>, vector<64x64xf32>, vector<16x64xf32> -> vector<16x64xf32>
    %107 = arith.addf %102, %106 : vector<16x64xf32>
    %c8_119 = arith.constant 8 : index
    %c0_120 = arith.constant 0 : index
    %108 = vector.load %arg13[%c8_119, %c0_120] : memref<32x64xf32, #tpu.memory_space<vmem>>, vector<16x64xf32>
    %c4_121 = arith.constant 4 : index
    %c0_122 = arith.constant 0 : index
    %c0_123 = arith.constant 0 : index
    %109 = vector.load %arg7[%c4_121, %c0_122, %c0_123] : memref<6x64x64xf32, #tpu.memory_space<vmem>>, vector<1x64x64xf32>
    %110 = vector.shape_cast %109 : vector<1x64x64xf32> to vector<64x64xf32>
    %cst_124 = arith.constant dense<0.000000e+00> : vector<16x64xf32>
    %111 = tpu.matmul %108, %110, %cst_124 {dimension_numbers = #tpu.dot_dimension_numbers<[1], [0], [0], [1], [0, 0, 1, 1], [], []>} : vector<16x64xf32>, vector<64x64xf32>, vector<16x64xf32> -> vector<16x64xf32>
    %112 = arith.addf %107, %111 : vector<16x64xf32>
    %c9_125 = arith.constant 9 : index
    %c0_126 = arith.constant 0 : index
    %113 = vector.load %arg13[%c9_125, %c0_126] : memref<32x64xf32, #tpu.memory_space<vmem>>, vector<16x64xf32>
    %c5_127 = arith.constant 5 : index
    %c0_128 = arith.constant 0 : index
    %c0_129 = arith.constant 0 : index
    %114 = vector.load %arg7[%c5_127, %c0_128, %c0_129] : memref<6x64x64xf32, #tpu.memory_space<vmem>>, vector<1x64x64xf32>
    %115 = vector.shape_cast %114 : vector<1x64x64xf32> to vector<64x64xf32>
    %cst_130 = arith.constant dense<0.000000e+00> : vector<16x64xf32>
    %116 = tpu.matmul %113, %115, %cst_130 {dimension_numbers = #tpu.dot_dimension_numbers<[1], [0], [0], [1], [0, 0, 1, 1], [], []>} : vector<16x64xf32>, vector<64x64xf32>, vector<16x64xf32> -> vector<16x64xf32>
    %117 = arith.addf %112, %116 : vector<16x64xf32>
    %c0_131 = arith.constant 0 : index
    %c0_132 = arith.constant 0 : index
    %118 = vector.load %arg8[%c0_131, %c0_132] : memref<1x64xf32, #tpu.memory_space<vmem>>, vector<1x64xf32>
    %119 = vector.broadcast %118 : vector<1x64xf32> to vector<16x64xf32>
    %120 = arith.addf %117, %119 : vector<16x64xf32>
    %cst_133 = arith.constant 0.000000e+00 : f32
    %121 = vector.broadcast %cst_133 : f32 to vector<16x64xf32>
    %122 = arith.cmpf oge, %120, %121 : vector<16x64xf32>
    %cst_134 = arith.constant 0.00999999977 : f32
    %123 = vector.broadcast %cst_134 : f32 to vector<16x64xf32>
    %124 = arith.mulf %120, %123 : vector<16x64xf32>
    %125 = arith.select %122, %120, %124 : vector<16x64xi1>, vector<16x64xf32>
    %c0_135 = arith.constant 0 : index
    %c0_136 = arith.constant 0 : index
    %126 = vector.load %arg14[%c0_135, %c0_136] : memref<16x64xf32, #tpu.memory_space<vmem>>, vector<16x64xf32>
    tpu.vector_store %arg14[%c0_135, %c0_136], %125 {strides = array<i32>} : memref<16x64xf32, #tpu.memory_space<vmem>>, vector<16x64xf32>,
    %c0_i32_137 = arith.constant 0 : i32
    %c4_i32_138 = arith.constant 4 : i32
    %127 = arith.addi %c0_i32_137, %c4_i32_138 : i32
    %c1_i32_139 = arith.constant 1 : i32
    scf.for %arg15 = %c0_i32_137 to %127 step %c1_i32_139  : i32 {
      %c4_i32_141 = arith.constant 4 : i32
      %128 = arith.muli %arg15, %c4_i32_141 : i32
      %129 = arith.index_cast %128 : i32 to index
      %c0_142 = arith.constant 0 : index
      %130 = vector.load %arg14[%129, %c0_142] : memref<16x64xf32, #tpu.memory_space<vmem>>, vector<2x64xf32>
      %c2_i32 = arith.constant 2 : i32
      %131 = arith.muli %arg15, %c2_i32 : i32
      %c0_143 = arith.constant 0 : index
      %132 = arith.index_cast %131 : i32 to index
      %c0_144 = arith.constant 0 : index
      %133 = vector.load %arg9[%c0_143, %132, %c0_144] : memref<1x8x64xf32, #tpu.memory_space<vmem>>, vector<1x2x64xf32>
      %134 = vector.shape_cast %133 : vector<1x2x64xf32> to vector<2x64xf32>
      %135 = vector.shape_cast %130 : vector<2x64xf32> to vector<1x2x64xf32>
      tpu.vector_store %arg9[%c0_143, %132, %c0_144], %135 {strides = array<i32>} : memref<1x8x64xf32, #tpu.memory_space<vmem>>, vector<1x2x64xf32>,
    }
    %c4_i32_140 = arith.constant 4 : i32
    return
  }
  func.func @transform_0(%arg0: i32) -> (i32, i32, i32) {
    %c0_i32 = arith.constant 0 : i32
    %c0_i32_0 = arith.constant 0 : i32
    %c0_i32_1 = arith.constant 0 : i32
    return %arg0, %c0_i32, %c0_i32_0 : i32, i32, i32
  }
  func.func @transform_1(%arg0: i32) -> (i32, i32, i32) {
    %c0_i32 = arith.constant 0 : i32
    %c0_i32_0 = arith.constant 0 : i32
    %c0_i32_1 = arith.constant 0 : i32
    return %arg0, %c0_i32, %c0_i32_0 : i32, i32, i32
  }
  func.func @transform_2(%arg0: i32) -> (i32, i32, i32) {
    %c0_i32 = arith.constant 0 : i32
    %c0_i32_0 = arith.constant 0 : i32
    %c0_i32_1 = arith.constant 0 : i32
    %c0_i32_2 = arith.constant 0 : i32
    return %c0_i32, %c0_i32_0, %c0_i32_1 : i32, i32, i32
  }
  func.func @transform_3(%arg0: i32) -> (i32, i32, i32) {
    %c0_i32 = arith.constant 0 : i32
    %c0_i32_0 = arith.constant 0 : i32
    %c0_i32_1 = arith.constant 0 : i32
    %c0_i32_2 = arith.constant 0 : i32
    return %c0_i32, %c0_i32_0, %c0_i32_1 : i32, i32, i32
  }
  func.func @transform_4(%arg0: i32) -> (i32, i32, i32) {
    %c0_i32 = arith.constant 0 : i32
    %c0_i32_0 = arith.constant 0 : i32
    %c0_i32_1 = arith.constant 0 : i32
    %c0_i32_2 = arith.constant 0 : i32
    return %c0_i32, %c0_i32_0, %c0_i32_1 : i32, i32, i32
  }
  func.func @transform_5(%arg0: i32) -> (i32, i32) {
    %c0_i32 = arith.constant 0 : i32
    %c0_i32_0 = arith.constant 0 : i32
    %c0_i32_1 = arith.constant 0 : i32
    return %c0_i32, %c0_i32_0 : i32, i32
  }
  func.func @transform_6(%arg0: i32) -> (i32, i32, i32) {
    %c0_i32 = arith.constant 0 : i32
    %c0_i32_0 = arith.constant 0 : i32
    %c0_i32_1 = arith.constant 0 : i32
    %c0_i32_2 = arith.constant 0 : i32
    return %c0_i32, %c0_i32_0, %c0_i32_1 : i32, i32, i32
  }
  func.func @transform_7(%arg0: i32) -> (i32, i32) {
    %c0_i32 = arith.constant 0 : i32
    %c0_i32_0 = arith.constant 0 : i32
    %c0_i32_1 = arith.constant 0 : i32
    return %c0_i32, %c0_i32_0 : i32, i32
  }
  func.func @transform_8(%arg0: i32) -> (i32, i32, i32) {
    %c0_i32 = arith.constant 0 : i32
    %c0_i32_0 = arith.constant 0 : i32
    %c0_i32_1 = arith.constant 0 : i32
    return %arg0, %c0_i32, %c0_i32_0 : i32, i32, i32
  }
}

</mosaic_0001>

<llo_original>
// kernel: decoder_forward.5
$region0: #{decoder_forward.5}
  #allocation0 [shape = 'u32[]', space=smem, size = 0x4, offset = 0x4, fixed_abs, tag = 'smem constant byte address 0x4 - core index']
  #allocation1 [shape = 'u32[72,128]{1,0:T(1,128)}', space=vmem, size = 0x9000, scoped, tag = 'internal scratch']
  #allocation2 [shape = 'f32[16,32]{1,0:T(8,128)}', space=vmem, size = 0x2000, scoped, tag = 'scratch operand']
  #allocation3 [shape = 'f32[16,32]{1,0:T(8,128)}', space=vmem, size = 0x2000, scoped, tag = 'scratch operand']
  #allocation4 [shape = 'f32[40,32]{1,0:T(8,128)}', space=vmem, size = 0x5000, scoped, tag = 'scratch operand']
  #allocation5 [shape = 'f32[32,32]{1,0:T(8,128)}', space=vmem, size = 0x4000, scoped, tag = 'scratch operand']
  #allocation6 [shape = 'f32[16,32]{1,0:T(8,128)}', space=vmem, size = 0x2000, scoped, tag = 'scratch operand']
  %s0 = inlined_call_operand.vmem [shape: f32[2,16,32], index: 0, kind: input, shape index: {}]
  %s1 = inlined_call_operand.vmem [shape: f32[2,40,32], index: 1, kind: input, shape index: {}]
  %s2 = inlined_call_operand.vmem [shape: f32[2,32,32], index: 2, kind: input, shape index: {}]
  %s3 = inlined_call_operand.vmem [shape: f32[6,32,32], index: 3, kind: input, shape index: {}]
  %s4 = inlined_call_operand.vmem [shape: f32[6,32,32], index: 4, kind: input, shape index: {}]
  %s5 = inlined_call_operand.vmem [shape: f32[1,32], index: 5, kind: input, shape index: {}]
  %s6 = inlined_call_operand.vmem [shape: f32[6,32,32], index: 6, kind: input, shape index: {}]
  %s7 = inlined_call_operand.vmem [shape: f32[1,32], index: 7, kind: input, shape index: {}]
  %s8 = inlined_call_operand.vmem [shape: f32[2,8,32], index: 8, kind: output, shape index: {}]
  %s9 = sld [smem:[#allocation0]]
  $region79: #{decoder_forward.5} parent=0
    _
  %s11 = ssub.s32 1, %s9
  %s12 = scalar_select 0, %s11, %s9
  loop: start=0, step=1, limit=4
  $region2: #{decoder_forward.5} parent=0 // loop_pre_header
    _
  $region3: #{decoder_forward.5} parent=0 // loop_header
    %s14 = sphi 0, %s18
    %p15 = scmp.ge.s32.totalorder %s14, 4
    %s24 = sphi 0, %s26
    %s27 = sphi 0, %s24
    %s28 = sphi 0, %s27
    %s44 = sphi 0, %s28
    %s50 = sphi 0, %s52
    %s53 = sphi 0, %s50
    %s54 = sphi 0, %s53
    %s70 = sphi 0, %s54
    %s74 = sphi 0, %s74
    %s76 = sphi 0, %s74
    %s77 = sphi 0, %s76
    %s91 = sphi 0, %s77
    %s95 = sphi 0, %s95
    %s97 = sphi 0, %s95
    %s98 = sphi 0, %s97
    %s112 = sphi 0, %s98
    %s116 = sphi 0, %s116
    %s118 = sphi 0, %s116
    %s119 = sphi 0, %s118
    %s133 = sphi 0, %s119
    %s137 = sphi 0, %s137
    %s139 = sphi 0, %s137
    %s140 = sphi 0, %s139
    %s154 = sphi 0, %s140
    %s158 = sphi 0, %s158
    %s160 = sphi 0, %s158
    %s161 = sphi 0, %s160
    %s175 = sphi 0, %s161
    %s179 = sphi 0, %s179
    %s181 = sphi 0, %s179
    %s182 = sphi 0, %s181
    %s196 = sphi 0, %s182
    %s202 = sphi 0, %s204
    %s205 = sphi 0, %s202
    %s206 = sphi 0, %s205
    %s222 = sphi 0, %s206
  $region4: #{decoder_forward.5} parent=0 // loop_header_branch
    %17 = sbr.rel (%p15) target = $region8
  $region5: #{decoder_forward.5} parent=0 // loop_body
    %s19 = ssub.s32 %s14, 1
    %s20 = ssub.s32 %s14, 2
    %s21 = sadd.s32 %s14, 1
    %s22 = ssub.s32 %s14, %s21
    %p23 = scmp.eq.s32.totalorder %s22, 0
    %s25 = sadd.s32 %s24, 1
    %s26 = scalar_select %p23, %s24, %s25
    %p29 = pneg %p23
    %p30 = scmp.eq.s32.totalorder %s14, 1
    %p31 = por %p29, %p30
    %p32 = scmp.ne.s32.totalorder %s24, %s27
    %p33 = scmp.eq.s32.totalorder %s14, 0
    %p34 = por %p32, %p33
    %p35 = scmp.ne.s32.totalorder %s24, %s27
    %p36 = scmp.eq.s32.totalorder %s19, 1
    %p37 = por %p35, %p36
    %p38 = scmp.ne.s32.totalorder %s27, %s28
    %p39 = scmp.eq.s32.totalorder %s19, 0
    %p40 = por %p38, %p39
    %p41 = scmp.ne.s32.totalorder %s27, %s28
    %p42 = scmp.eq.s32.totalorder %s20, 1
    %p43 = por %p41, %p42
    %p45 = scmp.ne.s32.totalorder %s28, %s44
    %p46 = scmp.eq.s32.totalorder %s20, 0
    %p47 = por %p45, %p46
    %s48 = ssub.s32 %s14, %s21
    %p49 = scmp.eq.s32.totalorder %s48, 0
    %s51 = sadd.s32 %s50, 1
    %s52 = scalar_select %p49, %s50, %s51
    %p55 = pneg %p49
    %p56 = scmp.eq.s32.totalorder %s14, 1
    %p57 = por %p55, %p56
    %p58 = scmp.ne.s32.totalorder %s50, %s53
    %p59 = scmp.eq.s32.totalorder %s14, 0
    %p60 = por %p58, %p59
    %p61 = scmp.ne.s32.totalorder %s50, %s53
    %p62 = scmp.eq.s32.totalorder %s19, 1
    %p63 = por %p61, %p62
    %p64 = scmp.ne.s32.totalorder %s53, %s54
    %p65 = scmp.eq.s32.totalorder %s19, 0
    %p66 = por %p64, %p65
    %p67 = scmp.ne.s32.totalorder %s53, %s54
    %p68 = scmp.eq.s32.totalorder %s20, 1
    %p69 = por %p67, %p68
    %p71 = scmp.ne.s32.totalorder %s54, %s70
    %p72 = scmp.eq.s32.totalorder %s20, 0
    %p73 = por %p71, %p72
    %s75 = sadd.s32 %s74, 1
    %p78 = scmp.eq.s32.totalorder %s14, 1
    %p79 = scmp.ne.s32.totalorder %s74, %s76
    %p80 = scmp.eq.s32.totalorder %s14, 0
    %p81 = por %p79, %p80
    %p82 = scmp.ne.s32.totalorder %s74, %s76
    %p83 = scmp.eq.s32.totalorder %s19, 1
    %p84 = por %p82, %p83
    %p85 = scmp.ne.s32.totalorder %s76, %s77
    %p86 = scmp.eq.s32.totalorder %s19, 0
    %p87 = por %p85, %p86
    %p88 = scmp.ne.s32.totalorder %s76, %s77
    %p89 = scmp.eq.s32.totalorder %s20, 1
    %p90 = por %p88, %p89
    %p92 = scmp.ne.s32.totalorder %s77, %s91
    %p93 = scmp.eq.s32.totalorder %s20, 0
    %p94 = por %p92, %p93
    %s96 = sadd.s32 %s95, 1
    %p99 = scmp.eq.s32.totalorder %s14, 1
    %p100 = scmp.ne.s32.totalorder %s95, %s97
    %p101 = scmp.eq.s32.totalorder %s14, 0
    %p102 = por %p100, %p101
    %p103 = scmp.ne.s32.totalorder %s95, %s97
    %p104 = scmp.eq.s32.totalorder %s19, 1
    %p105 = por %p103, %p104
    %p106 = scmp.ne.s32.totalorder %s97, %s98
    %p107 = scmp.eq.s32.totalorder %s19, 0
    %p108 = por %p106, %p107
    %p109 = scmp.ne.s32.totalorder %s97, %s98
    %p110 = scmp.eq.s32.totalorder %s20, 1
    %p111 = por %p109, %p110
    %p113 = scmp.ne.s32.totalorder %s98, %s112
    %p114 = scmp.eq.s32.totalorder %s20, 0
    %p115 = por %p113, %p114
    %s117 = sadd.s32 %s116, 1
    %p120 = scmp.eq.s32.totalorder %s14, 1
    %p121 = scmp.ne.s32.totalorder %s116, %s118
    %p122 = scmp.eq.s32.totalorder %s14, 0
    %p123 = por %p121, %p122
    %p124 = scmp.ne.s32.totalorder %s116, %s118
    %p125 = scmp.eq.s32.totalorder %s19, 1
    %p126 = por %p124, %p125
    %p127 = scmp.ne.s32.totalorder %s118, %s119
    %p128 = scmp.eq.s32.totalorder %s19, 0
    %p129 = por %p127, %p128
    %p130 = scmp.ne.s32.totalorder %s118, %s119
    %p131 = scmp.eq.s32.totalorder %s20, 1
    %p132 = por %p130, %p131
    %p134 = scmp.ne.s32.totalorder %s119, %s133
    %p135 = scmp.eq.s32.totalorder %s20, 0
    %p136 = por %p134, %p135
    %s138 = sadd.s32 %s137, 1
    %p141 = scmp.eq.s32.totalorder %s14, 1
    %p142 = scmp.ne.s32.totalorder %s137, %s139
    %p143 = scmp.eq.s32.totalorder %s14, 0
    %p144 = por %p142, %p143
    %p145 = scmp.ne.s32.totalorder %s137, %s139
    %p146 = scmp.eq.s32.totalorder %s19, 1
    %p147 = por %p145, %p146
    %p148 = scmp.ne.s32.totalorder %s139, %s140
    %p149 = scmp.eq.s32.totalorder %s19, 0
    %p150 = por %p148, %p149
    %p151 = scmp.ne.s32.totalorder %s139, %s140
    %p152 = scmp.eq.s32.totalorder %s20, 1
    %p153 = por %p151, %p152
    %p155 = scmp.ne.s32.totalorder %s140, %s154
    %p156 = scmp.eq.s32.totalorder %s20, 0
    %p157 = por %p155, %p156
    %s159 = sadd.s32 %s158, 1
    %p162 = scmp.eq.s32.totalorder %s14, 1
    %p163 = scmp.ne.s32.totalorder %s158, %s160
    %p164 = scmp.eq.s32.totalorder %s14, 0
    %p165 = por %p163, %p164
    %p166 = scmp.ne.s32.totalorder %s158, %s160
    %p167 = scmp.eq.s32.totalorder %s19, 1
    %p168 = por %p166, %p167
    %p169 = scmp.ne.s32.totalorder %s160, %s161
    %p170 = scmp.eq.s32.totalorder %s19, 0
    %p171 = por %p169, %p170
    %p172 = scmp.ne.s32.totalorder %s160, %s161
    %p173 = scmp.eq.s32.totalorder %s20, 1
    %p174 = por %p172, %p173
    %p176 = scmp.ne.s32.totalorder %s161, %s175
    %p177 = scmp.eq.s32.totalorder %s20, 0
    %p178 = por %p176, %p177
    %s180 = sadd.s32 %s179, 1
    %p183 = scmp.eq.s32.totalorder %s14, 1
    %p184 = scmp.ne.s32.totalorder %s179, %s181
    %p185 = scmp.eq.s32.totalorder %s14, 0
    %p186 = por %p184, %p185
    %p187 = scmp.ne.s32.totalorder %s179, %s181
    %p188 = scmp.eq.s32.totalorder %s19, 1
    %p189 = por %p187, %p188
    %p190 = scmp.ne.s32.totalorder %s181, %s182
    %p191 = scmp.eq.s32.totalorder %s19, 0
    %p192 = por %p190, %p191
    %p193 = scmp.ne.s32.totalorder %s181, %s182
    %p194 = scmp.eq.s32.totalorder %s20, 1
    %p195 = por %p193, %p194
    %p197 = scmp.ne.s32.totalorder %s182, %s196
    %p198 = scmp.eq.s32.totalorder %s20, 0
    %p199 = por %p197, %p198
    %s200 = ssub.s32 %s14, %s21
    %p201 = scmp.eq.s32.totalorder %s200, 0
    %s203 = sadd.s32 %s202, 1
    %s204 = scalar_select %p201, %s202, %s203
    %p207 = pneg %p201
    %p208 = scmp.eq.s32.totalorder %s14, 1
    %p209 = por %p207, %p208
    %p210 = scmp.ne.s32.totalorder %s202, %s205
    %p211 = scmp.eq.s32.totalorder %s14, 0
    %p212 = por %p210, %p211
    %p213 = scmp.ne.s32.totalorder %s202, %s205
    %p214 = scmp.eq.s32.totalorder %s19, 1
    %p215 = por %p213, %p214
    %p216 = scmp.ne.s32.totalorder %s205, %s206
    %p217 = scmp.eq.s32.totalorder %s19, 0
    %p218 = por %p216, %p217
    %p219 = scmp.ne.s32.totalorder %s205, %s206
    %p220 = scmp.eq.s32.totalorder %s20, 1
    %p221 = por %p219, %p220
    %p223 = scmp.ne.s32.totalorder %s206, %s222
    %p224 = scmp.eq.s32.totalorder %s20, 0
    %p225 = por %p223, %p224
    %p226 = scmp.le.s32.totalorder 1, %s14
    %p227 = scmp.lt.s32.totalorder %s14, 3
    %p228 = pnand %p226, %p227
    %p229 = pneg %p228
    // Predicated region
    $region9: #{decoder_forward.5} parent=5 // pred_check
      _
    $region10: #{decoder_forward.5} parent=5 // pred_check_branch
      %231 = sbr.rel (%p228) target = $region12
    $region11: #{decoder_forward.5} parent=5 // pred_region
      %s232 = ssub.s32 %s14, 1
      // Predicated region
      $region13: #{decoder_forward.5} parent=11 // pred_check
        %p233 = pneg %p87
      $region14: #{decoder_forward.5} parent=11 // pred_check_branch
        %235 = sbr.rel (%p233) target = $region16
      $region15: #{decoder_forward.5} parent=11 // pred_region
        _
      $region16: #{decoder_forward.5} parent=11 // pred_fallthru
        _
      // Predicated region
      $region17: #{decoder_forward.5} parent=11 // pred_check
        %p236 = pneg %p108
      $region18: #{decoder_forward.5} parent=11 // pred_check_branch
        %238 = sbr.rel (%p236) target = $region20
      $region19: #{decoder_forward.5} parent=11 // pred_region
        _
      $region20: #{decoder_forward.5} parent=11 // pred_fallthru
        _
      // Predicated region
      $region21: #{decoder_forward.5} parent=11 // pred_check
        %p239 = pneg %p129
      $region22: #{decoder_forward.5} parent=11 // pred_check_branch
        %241 = sbr.rel (%p239) target = $region24
      $region23: #{decoder_forward.5} parent=11 // pred_region
        _
      $region24: #{decoder_forward.5} parent=11 // pred_fallthru
        _
      // Predicated region
      $region25: #{decoder_forward.5} parent=11 // pred_check
        %p242 = pneg %p150
      $region26: #{decoder_forward.5} parent=11 // pred_check_branch
        %244 = sbr.rel (%p242) target = $region28
      $region27: #{decoder_forward.5} parent=11 // pred_region
        _
      $region28: #{decoder_forward.5} parent=11 // pred_fallthru
        _
      // Predicated region
      $region29: #{decoder_forward.5} parent=11 // pred_check
        %p245 = pneg %p171
      $region30: #{decoder_forward.5} parent=11 // pred_check_branch
        %247 = sbr.rel (%p245) target = $region32
      $region31: #{decoder_forward.5} parent=11 // pred_region
        _
      $region32: #{decoder_forward.5} parent=11 // pred_fallthru
        _
      // Predicated region
      $region33: #{decoder_forward.5} parent=11 // pred_check
        %p248 = pneg %p192
      $region34: #{decoder_forward.5} parent=11 // pred_check_branch
        %250 = sbr.rel (%p248) target = $region36
      $region35: #{decoder_forward.5} parent=11 // pred_region
        _
      $region36: #{decoder_forward.5} parent=11 // pred_fallthru
        _
    $region12: #{decoder_forward.5} parent=5 // pred_fallthru
      _
    %p251 = scmp.lt.s32.totalorder %s14, 2
    // Predicated region
    $region37: #{decoder_forward.5} parent=5 // pred_check
      %p252 = pneg %p251
    $region38: #{decoder_forward.5} parent=5 // pred_check_branch
      %254 = sbr.rel (%p252) target = $region40
    $region39: #{decoder_forward.5} parent=5 // pred_region
      // Predicated region
      $region41: #{decoder_forward.5} parent=39 // pred_check
        %p255 = pneg %p34
      $region42: #{decoder_forward.5} parent=39 // pred_check_branch
        %257 = sbr.rel (%p255) target = $region44
      $region43: #{decoder_forward.5} parent=39 // pred_region
        %p258 = scmp.lt.s32.totalorder %s14, 1
        %s259 = scalar_select %p258, %s14, 1
        %s260 = smul.addr %s259, 2
        %s261 = smul.addr %s260, 8
        %s262 = scalar_lea.vmem %s0, %s261
      $region44: #{decoder_forward.5} parent=39 // pred_fallthru
        _
      // Predicated region
      $region45: #{decoder_forward.5} parent=39 // pred_check
        %p263 = pneg %p60
      $region46: #{decoder_forward.5} parent=39 // pred_check_branch
        %265 = sbr.rel (%p263) target = $region48
      $region47: #{decoder_forward.5} parent=39 // pred_region
        %p266 = scmp.lt.s32.totalorder %s14, 1
        %s267 = scalar_select %p266, %s14, 1
        %s268 = smul.addr %s267, 5
        %s269 = smul.addr %s268, 8
        %s270 = scalar_lea.vmem %s1, %s269
      $region48: #{decoder_forward.5} parent=39 // pred_fallthru
        _
    $region40: #{decoder_forward.5} parent=5 // pred_fallthru
      _
    %p271 = scmp.le.s32.totalorder 1, %s14
    %p272 = scmp.lt.s32.totalorder %s14, 3
    %p273 = pnand %p271, %p272
    %p274 = pneg %p273
    // Predicated region
    $region49: #{decoder_forward.5} parent=5 // pred_check
      _
    $region50: #{decoder_forward.5} parent=5 // pred_check_branch
      %276 = sbr.rel (%p273) target = $region52
    $region51: #{decoder_forward.5} parent=5 // pred_region
      %s277 = ssub.s32 %s14, 1
      %p278 = scmp.lt.s32.totalorder %s19, 1
      %s279 = scalar_select %p278, %s19, 1
      %s280 = smul.addr %s279, 2
      %s281 = smul.addr %s280, 8
      %s282 = scalar_lea.vmem %s0, %s281
      %p283 = pneg %p40
      %p284 = pneg %p37
      %p285 = scmp.lt.s32.totalorder %s19, 1
      %s286 = scalar_select %p285, %s19, 1
      %s287 = smul.addr %s286, 5
      %s288 = smul.addr %s287, 8
      %s289 = scalar_lea.vmem %s1, %s288
      %p290 = pneg %p66
      %p291 = pneg %p63
      %p292 = pneg %p87
      %p293 = pneg %p84
      %p294 = pneg %p108
      %p295 = pneg %p105
      %p296 = pneg %p129
      %p297 = pneg %p126
      %p298 = pneg %p150
      %p299 = pneg %p147
      %p300 = pneg %p171
      %p301 = pneg %p168
      %p302 = pneg %p192
      %p303 = pneg %p189
      %p304 = pneg %p218
      %p305 = pneg %p215
      %p306 = scmp.lt.s32.totalorder %s19, 1
      %s307 = scalar_select %p306, %s19, 1
      %s308 = smul.addr %s307, 8
      %s309 = scalar_lea.vmem %s8, %s308
      %p310 = scmp.lt.s32.totalorder %s19, 1
      %s311 = scalar_select %p310, %s19, 1
      %s312 = smul.addr %s311, 2
      %s313 = smul.addr %s312, 8
      %s314 = scalar_lea.vmem %s0, %s313
      %p315 = scmp.lt.s32.totalorder %s19, 1
      %s316 = scalar_select %p315, %s19, 1
      %s317 = smul.addr %s316, 5
      %s318 = smul.addr %s317, 8
      %s319 = scalar_lea.vmem %s1, %s318
      %p320 = scmp.lt.s32.totalorder %s19, 1
      %s321 = scalar_select %p320, %s19, 1
      %s322 = smul.addr %s321, 8
      %s323 = scalar_lea.vmem %s8, %s322
      %v324 = vld [vmem:[%s314] sm:$0xff]
      %v325 = vld [vmem:[%s314 + $0x8] sm:$0xff]
      %v326 = vld [vmem:[%s2] sm:$0xff]
      %v327 = vld [vmem:[%s2 + $0x8] sm:$0xff]
      %v328 = vld [vmem:[%s2 + $0x10] sm:$0xff]
      %v329 = vld [vmem:[%s2 + $0x18] sm:$0xff]
      %vm330 = vcmask 261120
      %v332 = vsel %vm330, %v324, 0
      %v335 = vsel %vm330, %v325, 0
      %337 = vmatpush.msra.mxu0 0.0
      %338 = vmatpush.msra.mxu0 0.0
      %339 = vmatpush.msra.mxu0 0.0
      %340 = vmatpush.msra.mxu0 0.0
      %341 = vmatpush.msra.mxu0 0.0
      %342 = vmatpush.msra.mxu0 0.0
      %343 = vmatpush.msra.mxu0 0.0
      %344 = vmatpush.msra.mxu0 0.0
      %345 = vmatpush.msra.mxu0 0.0
      %346 = vmatpush.msra.mxu0 0.0
      %347 = vmatpush.msra.mxu0 0.0
      %348 = vmatpush.msra.mxu0 0.0
      %349 = vmatpush.msra.mxu0 %v329
      %350 = vmatpush.msra.mxu0 %v328
      %351 = vmatpush.msra.mxu0 %v327
      %352 = vmatpush.msra.mxu0 %v326
      %353 = vmatmul.f32.gmra.mxu0 %v332
      %v354 = vpop.f32.mrf.mxu0
      %v355 = vadd.f32 0.0, %v354
      %356 = vmatmul.f32.gmra.mxu0 %v335
      %v357 = vpop.f32.mrf.mxu0
      %v358 = vadd.f32 0.0, %v357
      %359 = vdwg.mxu0
      %360 = vst.msk [vmem:[#allocation2] sm:$0xff] %vm330, %v355
      %361 = vst.msk [vmem:[#allocation2 + $0x8] sm:$0xff] %vm330, %v358
      %s362 = scalar_lea.vmem %s2, 32
      %v363 = vld [vmem:[%s362] sm:$0xff]
      %v364 = vld [vmem:[%s362 + $0x8] sm:$0xff]
      %v365 = vld [vmem:[%s362 + $0x10] sm:$0xff]
      %v366 = vld [vmem:[%s362 + $0x18] sm:$0xff]
      %367 = vmatpush.msra.mxu0 0.0
      %368 = vmatpush.msra.mxu0 0.0
      %369 = vmatpush.msra.mxu0 0.0
      %370 = vmatpush.msra.mxu0 0.0
      %371 = vmatpush.msra.mxu0 0.0
      %372 = vmatpush.msra.mxu0 0.0
      %373 = vmatpush.msra.mxu0 0.0
      %374 = vmatpush.msra.mxu0 0.0
      %375 = vmatpush.msra.mxu0 0.0
      %376 = vmatpush.msra.mxu0 0.0
      %377 = vmatpush.msra.mxu0 0.0
      %378 = vmatpush.msra.mxu0 0.0
      %379 = vmatpush.msra.mxu0 %v366
      %380 = vmatpush.msra.mxu0 %v365
      %381 = vmatpush.msra.mxu0 %v364
      %382 = vmatpush.msra.mxu0 %v363
      %383 = vmatmul.f32.gmra.mxu0 %v332
      %v384 = vpop.f32.mrf.mxu0
      %v385 = vadd.f32 0.0, %v384
      %386 = vmatmul.f32.gmra.mxu0 %v335
      %v387 = vpop.f32.mrf.mxu0
      %v388 = vadd.f32 0.0, %v387
      %389 = vdwg.mxu0
      %390 = vst.msk [vmem:[#allocation3] sm:$0xff] %vm330, %v385
      %391 = vst.msk [vmem:[#allocation3 + $0x8] sm:$0xff] %vm330, %v388
      %392 = vst.msk [vmem:[#allocation4 + $0x20] sm:$0xff] %vm330, 0.0
      loop: start=0, step=1, limit=4
      $region53: #{decoder_forward.5} parent=51 // loop_pre_header
        _
      $region54: #{decoder_forward.5} parent=51 // loop_header
        %s394 = sphi 0, %s398
        %p395 = scmp.ge.s32.totalorder %s394, 4
      $region55: #{decoder_forward.5} parent=51 // loop_header_branch
        %397 = sbr.rel (%p395) target = $region59
      $region56: #{decoder_forward.5} parent=51 // loop_body
        %s399 = smul.u32 %s394, 4
        %s400 = scalar_lea.vmem [#allocation2], %s399
        %v401 = vld [vmem:[%s400] sm:$0xf]
        %s402 = smul.u32 %s394, 8
        %s403 = scalar_lea.vmem [#allocation4], %s402
        %vm404 = vcmask 257024
        %405 = vst.msk [vmem:[%s403] sm:$0xf] %vm404, %v401
        %s406 = scalar_lea.vmem [#allocation3], %s399
        %v407 = vld [vmem:[%s406] sm:$0xf]
        %s408 = smul.u32 %s394, 2
        %s409 = sadd.s32 %s408, 1
        %s410 = smul.u32 %s409, 4
        %s411 = scalar_lea.vmem [#allocation4], %s410
        %412 = vst.msk [vmem:[%s411] sm:$0xf] %vm404, %v407
      $region57: #{decoder_forward.5} parent=51 // loop_footer
        %s398 = sadd.s32 1, %s394
      $region58: #{decoder_forward.5} parent=51 // loop_footer_branch
        %393 = sbr.rel target = $region54
      $region59: #{decoder_forward.5} parent=51 // loop_exit
        _
      %v413 = vld [vmem:[#allocation4] sm:$0xff]
      %v414 = vld [vmem:[#allocation4 + $0x8] sm:$0xff]
      %v415 = vld [vmem:[#allocation4 + $0x10] sm:$0xff]
      %v416 = vld [vmem:[%s3] sm:$0xff]
      %v417 = vld [vmem:[%s3 + $0x8] sm:$0xff]
      %v418 = vld [vmem:[%s3 + $0x10] sm:$0xff]
      %v419 = vld [vmem:[%s3 + $0x18] sm:$0xff]
      %v420 = vld [vmem:[%s319] sm:$0xff]
      %v421 = vld [vmem:[%s319 + $0x8] sm:$0xff]
      %v422 = vld [vmem:[%s319 + $0x10] sm:$0xff]
      %v423 = vld [vmem:[%s4] sm:$0xff]
      %v424 = vld [vmem:[%s4 + $0x8] sm:$0xff]
      %v425 = vld [vmem:[%s4 + $0x10] sm:$0xff]
      %v426 = vld [vmem:[%s4 + $0x18] sm:$0xff]
      %v428 = vsel %vm330, %v420, 0
      %v431 = vsel %vm330, %v421, 0
      %v434 = vsel %vm330, %v422, 0
      %436 = vmatpush.msra.mxu0 0.0
      %437 = vmatpush.msra.mxu0 0.0
      %438 = vmatpush.msra.mxu0 0.0
      %439 = vmatpush.msra.mxu0 0.0
      %440 = vmatpush.msra.mxu0 0.0
      %441 = vmatpush.msra.mxu0 0.0
      %442 = vmatpush.msra.mxu0 0.0
      %443 = vmatpush.msra.mxu0 0.0
      %444 = vmatpush.msra.mxu0 0.0
      %445 = vmatpush.msra.mxu0 0.0
      %446 = vmatpush.msra.mxu0 0.0
      %447 = vmatpush.msra.mxu0 0.0
      %448 = vmatpush.msra.mxu0 %v426
      %449 = vmatpush.msra.mxu0 %v425
      %450 = vmatpush.msra.mxu0 %v424
      %451 = vmatpush.msra.mxu0 %v423
      %452 = vmatmul.f32.gmra.mxu0 %v428
      %v453 = vpop.f32.mrf.mxu0
      %v454 = vadd.f32 0.0, %v453
      %455 = vmatmul.f32.gmra.mxu0 %v431
      %v456 = vpop.f32.mrf.mxu0
      %v457 = vadd.f32 0.0, %v456
      %458 = vmatmul.f32.gmra.mxu0 %v434
      %v459 = vpop.f32.mrf.mxu0
      %v460 = vadd.f32 0.0, %v459
      %461 = vdwg.mxu0
      %v463 = vsel %vm330, %v413, 0
      %v466 = vsel %vm330, %v414, 0
      %v469 = vsel %vm330, %v415, 0
      %471 = vmatpush.msra.mxu0 0.0
      %472 = vmatpush.msra.mxu0 0.0
      %473 = vmatpush.msra.mxu0 0.0
      %474 = vmatpush.msra.mxu0 0.0
      %475 = vmatpush.msra.mxu0 0.0
      %476 = vmatpush.msra.mxu0 0.0
      %477 = vmatpush.msra.mxu0 0.0
      %478 = vmatpush.msra.mxu0 0.0
      %479 = vmatpush.msra.mxu0 0.0
      %480 = vmatpush.msra.mxu0 0.0
      %481 = vmatpush.msra.mxu0 0.0
      %482 = vmatpush.msra.mxu0 0.0
      %483 = vmatpush.msra.mxu0 %v419
      %484 = vmatpush.msra.mxu0 %v418
      %485 = vmatpush.msra.mxu0 %v417
      %486 = vmatpush.msra.mxu0 %v416
      %487 = vmatmul.f32.gmra.mxu0 %v463
      %v488 = vpop.f32.mrf.mxu0
      %v489 = vadd.f32 %v454, %v488
      %490 = vmatmul.f32.gmra.mxu0 %v466
      %v491 = vpop.f32.mrf.mxu0
      %v492 = vadd.f32 %v457, %v491
      %493 = vmatmul.f32.gmra.mxu0 %v469
      %v494 = vpop.f32.mrf.mxu0
      %v495 = vadd.f32 %v460, %v494
      %496 = vdwg.mxu0
      %v497 = vld [vmem:[#allocation4 + $0x1] sm:$0xff]
      %v498 = vld [vmem:[#allocation4 + $0x9] sm:$0xff]
      %v499 = vld [vmem:[#allocation4 + $0x11] sm:$0xff]
      %s500 = scalar_lea.vmem %s3, 32
      %v501 = vld [vmem:[%s500] sm:$0xff]
      %v502 = vld [vmem:[%s500 + $0x8] sm:$0xff]
      %v503 = vld [vmem:[%s500 + $0x10] sm:$0xff]
      %v504 = vld [vmem:[%s500 + $0x18] sm:$0xff]
      %v505 = vld [vmem:[%s319 + $0x1] sm:$0xff]
      %v506 = vld [vmem:[%s319 + $0x9] sm:$0xff]
      %v507 = vld [vmem:[%s319 + $0x11] sm:$0xff]
      %s508 = scalar_lea.vmem %s4, 32
      %v509 = vld [vmem:[%s508] sm:$0xff]
      %v510 = vld [vmem:[%s508 + $0x8] sm:$0xff]
      %v511 = vld [vmem:[%s508 + $0x10] sm:$0xff]
      %v512 = vld [vmem:[%s508 + $0x18] sm:$0xff]
      %v514 = vsel %vm330, %v505, 0
      %v517 = vsel %vm330, %v506, 0
      %v520 = vsel %vm330, %v507, 0
      %522 = vmatpush.msra.mxu0 0.0
      %523 = vmatpush.msra.mxu0 0.0
      %524 = vmatpush.msra.mxu0 0.0
      %525 = vmatpush.msra.mxu0 0.0
      %526 = vmatpush.msra.mxu0 0.0
      %527 = vmatpush.msra.mxu0 0.0
      %528 = vmatpush.msra.mxu0 0.0
      %529 = vmatpush.msra.mxu0 0.0
      %530 = vmatpush.msra.mxu0 0.0
      %531 = vmatpush.msra.mxu0 0.0
      %532 = vmatpush.msra.mxu0 0.0
      %533 = vmatpush.msra.mxu0 0.0
      %534 = vmatpush.msra.mxu0 %v512
      %535 = vmatpush.msra.mxu0 %v511
      %536 = vmatpush.msra.mxu0 %v510
      %537 = vmatpush.msra.mxu0 %v509
      %538 = vmatmul.f32.gmra.mxu0 %v514
      %v539 = vpop.f32.mrf.mxu0
      %v540 = vadd.f32 0.0, %v539
      %541 = vmatmul.f32.gmra.mxu0 %v517
      %v542 = vpop.f32.mrf.mxu0
      %v543 = vadd.f32 0.0, %v542
      %544 = vmatmul.f32.gmra.mxu0 %v520
      %v545 = vpop.f32.mrf.mxu0
      %v546 = vadd.f32 0.0, %v545
      %547 = vdwg.mxu0
      %v549 = vsel %vm330, %v497, 0
      %v552 = vsel %vm330, %v498, 0
      %v555 = vsel %vm330, %v499, 0
      %557 = vmatpush.msra.mxu0 0.0
      %558 = vmatpush.msra.mxu0 0.0
      %559 = vmatpush.msra.mxu0 0.0
      %560 = vmatpush.msra.mxu0 0.0
      %561 = vmatpush.msra.mxu0 0.0
      %562 = vmatpush.msra.mxu0 0.0
      %563 = vmatpush.msra.mxu0 0.0
      %564 = vmatpush.msra.mxu0 0.0
      %565 = vmatpush.msra.mxu0 0.0
      %566 = vmatpush.msra.mxu0 0.0
      %567 = vmatpush.msra.mxu0 0.0
      %568 = vmatpush.msra.mxu0 0.0
      %569 = vmatpush.msra.mxu0 %v504
      %570 = vmatpush.msra.mxu0 %v503
      %571 = vmatpush.msra.mxu0 %v502
      %572 = vmatpush.msra.mxu0 %v501
      %573 = vmatmul.f32.gmra.mxu0 %v549
      %v574 = vpop.f32.mrf.mxu0
      %v575 = vadd.f32 %v540, %v574
      %576 = vmatmul.f32.gmra.mxu0 %v552
      %v577 = vpop.f32.mrf.mxu0
      %v578 = vadd.f32 %v543, %v577
      %579 = vmatmul.f32.gmra.mxu0 %v555
      %v580 = vpop.f32.mrf.mxu0
      %v581 = vadd.f32 %v546, %v580
      %582 = vdwg.mxu0
      %v583 = vadd.f32 %v489, %v575
      %v584 = vadd.f32 %v492, %v578
      %v585 = vadd.f32 %v495, %v581
      %v586 = vld [vmem:[#allocation4 + $0x4] sm:$0xff]
      %v587 = vld [vmem:[#allocation4 + $0xc] sm:$0xff]
      %v588 = vld [vmem:[#allocation4 + $0x14] sm:$0xff]
      %s589 = scalar_lea.vmem %s3, 64
      %v590 = vld [vmem:[%s589] sm:$0xff]
      %v591 = vld [vmem:[%s589 + $0x8] sm:$0xff]
      %v592 = vld [vmem:[%s589 + $0x10] sm:$0xff]
      %v593 = vld [vmem:[%s589 + $0x18] sm:$0xff]
      %v594 = vld [vmem:[%s319 + $0x4] sm:$0xff]
      %v595 = vld [vmem:[%s319 + $0xc] sm:$0xff]
      %v596 = vld [vmem:[%s319 + $0x14] sm:$0xff]
      %s597 = scalar_lea.vmem %s4, 64
      %v598 = vld [vmem:[%s597] sm:$0xff]
      %v599 = vld [vmem:[%s597 + $0x8] sm:$0xff]
      %v600 = vld [vmem:[%s597 + $0x10] sm:$0xff]
      %v601 = vld [vmem:[%s597 + $0x18] sm:$0xff]
      %v603 = vsel %vm330, %v594, 0
      %v606 = vsel %vm330, %v595, 0
      %v609 = vsel %vm330, %v596, 0
      %611 = vmatpush.msra.mxu0 0.0
      %612 = vmatpush.msra.mxu0 0.0
      %613 = vmatpush.msra.mxu0 0.0
      %614 = vmatpush.msra.mxu0 0.0
      %615 = vmatpush.msra.mxu0 0.0
      %616 = vmatpush.msra.mxu0 0.0
      %617 = vmatpush.msra.mxu0 0.0
      %618 = vmatpush.msra.mxu0 0.0
      %619 = vmatpush.msra.mxu0 0.0
      %620 = vmatpush.msra.mxu0 0.0
      %621 = vmatpush.msra.mxu0 0.0
      %622 = vmatpush.msra.mxu0 0.0
      %623 = vmatpush.msra.mxu0 %v601
      %624 = vmatpush.msra.mxu0 %v600
      %625 = vmatpush.msra.mxu0 %v599
      %626 = vmatpush.msra.mxu0 %v598
      %627 = vmatmul.f32.gmra.mxu0 %v603
      %v628 = vpop.f32.mrf.mxu0
      %v629 = vadd.f32 0.0, %v628
      %630 = vmatmul.f32.gmra.mxu0 %v606
      %v631 = vpop.f32.mrf.mxu0
      %v632 = vadd.f32 0.0, %v631
      %633 = vmatmul.f32.gmra.mxu0 %v609
      %v634 = vpop.f32.mrf.mxu0
      %v635 = vadd.f32 0.0, %v634
      %636 = vdwg.mxu0
      %v638 = vsel %vm330, %v586, 0
      %v641 = vsel %vm330, %v587, 0
      %v644 = vsel %vm330, %v588, 0
      %646 = vmatpush.msra.mxu0 0.0
      %647 = vmatpush.msra.mxu0 0.0
      %648 = vmatpush.msra.mxu0 0.0
      %649 = vmatpush.msra.mxu0 0.0
      %650 = vmatpush.msra.mxu0 0.0
      %651 = vmatpush.msra.mxu0 0.0
      %652 = vmatpush.msra.mxu0 0.0
      %653 = vmatpush.msra.mxu0 0.0
      %654 = vmatpush.msra.mxu0 0.0
      %655 = vmatpush.msra.mxu0 0.0
      %656 = vmatpush.msra.mxu0 0.0
      %657 = vmatpush.msra.mxu0 0.0
      %658 = vmatpush.msra.mxu0 %v593
      %659 = vmatpush.msra.mxu0 %v592
      %660 = vmatpush.msra.mxu0 %v591
      %661 = vmatpush.msra.mxu0 %v590
      %662 = vmatmul.f32.gmra.mxu0 %v638
      %v663 = vpop.f32.mrf.mxu0
      %v664 = vadd.f32 %v629, %v663
      %665 = vmatmul.f32.gmra.mxu0 %v641
      %v666 = vpop.f32.mrf.mxu0
      %v667 = vadd.f32 %v632, %v666
      %668 = vmatmul.f32.gmra.mxu0 %v644
      %v669 = vpop.f32.mrf.mxu0
      %v670 = vadd.f32 %v635, %v669
      %671 = vdwg.mxu0
      %v672 = vadd.f32 %v583, %v664
      %v673 = vadd.f32 %v584, %v667
      %v674 = vadd.f32 %v585, %v670
      %v675 = vld [vmem:[#allocation4 + $0x5] sm:$0xff]
      %v676 = vld [vmem:[#allocation4 + $0xd] sm:$0xff]
      %v677 = vld [vmem:[#allocation4 + $0x15] sm:$0xff]
      %s678 = scalar_lea.vmem %s3, 96
      %v679 = vld [vmem:[%s678] sm:$0xff]
      %v680 = vld [vmem:[%s678 + $0x8] sm:$0xff]
      %v681 = vld [vmem:[%s678 + $0x10] sm:$0xff]
      %v682 = vld [vmem:[%s678 + $0x18] sm:$0xff]
      %v683 = vld [vmem:[%s319 + $0x5] sm:$0xff]
      %v684 = vld [vmem:[%s319 + $0xd] sm:$0xff]
      %v685 = vld [vmem:[%s319 + $0x15] sm:$0xff]
      %s686 = scalar_lea.vmem %s4, 96
      %v687 = vld [vmem:[%s686] sm:$0xff]
      %v688 = vld [vmem:[%s686 + $0x8] sm:$0xff]
      %v689 = vld [vmem:[%s686 + $0x10] sm:$0xff]
      %v690 = vld [vmem:[%s686 + $0x18] sm:$0xff]
      %v692 = vsel %vm330, %v683, 0
      %v695 = vsel %vm330, %v684, 0
      %v698 = vsel %vm330, %v685, 0
      %700 = vmatpush.msra.mxu0 0.0
      %701 = vmatpush.msra.mxu0 0.0
      %702 = vmatpush.msra.mxu0 0.0
      %703 = vmatpush.msra.mxu0 0.0
      %704 = vmatpush.msra.mxu0 0.0
      %705 = vmatpush.msra.mxu0 0.0
      %706 = vmatpush.msra.mxu0 0.0
      %707 = vmatpush.msra.mxu0 0.0
      %708 = vmatpush.msra.mxu0 0.0
      %709 = vmatpush.msra.mxu0 0.0
      %710 = vmatpush.msra.mxu0 0.0
      %711 = vmatpush.msra.mxu0 0.0
      %712 = vmatpush.msra.mxu0 %v690
      %713 = vmatpush.msra.mxu0 %v689
      %714 = vmatpush.msra.mxu0 %v688
      %715 = vmatpush.msra.mxu0 %v687
      %716 = vmatmul.f32.gmra.mxu0 %v692
      %v717 = vpop.f32.mrf.mxu0
      %v718 = vadd.f32 0.0, %v717
      %719 = vmatmul.f32.gmra.mxu0 %v695
      %v720 = vpop.f32.mrf.mxu0
      %v721 = vadd.f32 0.0, %v720
      %722 = vmatmul.f32.gmra.mxu0 %v698
      %v723 = vpop.f32.mrf.mxu0
      %v724 = vadd.f32 0.0, %v723
      %725 = vdwg.mxu0
      %v727 = vsel %vm330, %v675, 0
      %v730 = vsel %vm330, %v676, 0
      %v733 = vsel %vm330, %v677, 0
      %735 = vmatpush.msra.mxu0 0.0
      %736 = vmatpush.msra.mxu0 0.0
      %737 = vmatpush.msra.mxu0 0.0
      %738 = vmatpush.msra.mxu0 0.0
      %739 = vmatpush.msra.mxu0 0.0
      %740 = vmatpush.msra.mxu0 0.0
      %741 = vmatpush.msra.mxu0 0.0
      %742 = vmatpush.msra.mxu0 0.0
      %743 = vmatpush.msra.mxu0 0.0
      %744 = vmatpush.msra.mxu0 0.0
      %745 = vmatpush.msra.mxu0 0.0
      %746 = vmatpush.msra.mxu0 0.0
      %747 = vmatpush.msra.mxu0 %v682
      %748 = vmatpush.msra.mxu0 %v681
      %749 = vmatpush.msra.mxu0 %v680
      %750 = vmatpush.msra.mxu0 %v679
      %751 = vmatmul.f32.gmra.mxu0 %v727
      %v752 = vpop.f32.mrf.mxu0
      %v753 = vadd.f32 %v718, %v752
      %754 = vmatmul.f32.gmra.mxu0 %v730
      %v755 = vpop.f32.mrf.mxu0
      %v756 = vadd.f32 %v721, %v755
      %757 = vmatmul.f32.gmra.mxu0 %v733
      %v758 = vpop.f32.mrf.mxu0
      %v759 = vadd.f32 %v724, %v758
      %760 = vdwg.mxu0
      %v761 = vadd.f32 %v672, %v753
      %v762 = vadd.f32 %v673, %v756
      %v763 = vadd.f32 %v674, %v759
      %v764 = vld [vmem:[#allocation4 + $0x8] sm:$0xff]
      %v765 = vld [vmem:[#allocation4 + $0x10] sm:$0xff]
      %v766 = vld [vmem:[#allocation4 + $0x18] sm:$0xff]
      %s767 = scalar_lea.vmem %s3, 128
      %v768 = vld [vmem:[%s767] sm:$0xff]
      %v769 = vld [vmem:[%s767 + $0x8] sm:$0xff]
      %v770 = vld [vmem:[%s767 + $0x10] sm:$0xff]
      %v771 = vld [vmem:[%s767 + $0x18] sm:$0xff]
      %v772 = vld [vmem:[%s319 + $0x8] sm:$0xff]
      %v773 = vld [vmem:[%s319 + $0x10] sm:$0xff]
      %v774 = vld [vmem:[%s319 + $0x18] sm:$0xff]
      %s775 = scalar_lea.vmem %s4, 128
      %v776 = vld [vmem:[%s775] sm:$0xff]
      %v777 = vld [vmem:[%s775 + $0x8] sm:$0xff]
      %v778 = vld [vmem:[%s775 + $0x10] sm:$0xff]
      %v779 = vld [vmem:[%s775 + $0x18] sm:$0xff]
      %v781 = vsel %vm330, %v772, 0
      %v784 = vsel %vm330, %v773, 0
      %v787 = vsel %vm330, %v774, 0
      %789 = vmatpush.msra.mxu0 0.0
      %790 = vmatpush.msra.mxu0 0.0
      %791 = vmatpush.msra.mxu0 0.0
      %792 = vmatpush.msra.mxu0 0.0
      %793 = vmatpush.msra.mxu0 0.0
      %794 = vmatpush.msra.mxu0 0.0
      %795 = vmatpush.msra.mxu0 0.0
      %796 = vmatpush.msra.mxu0 0.0
      %797 = vmatpush.msra.mxu0 0.0
      %798 = vmatpush.msra.mxu0 0.0
      %799 = vmatpush.msra.mxu0 0.0
      %800 = vmatpush.msra.mxu0 0.0
      %801 = vmatpush.msra.mxu0 %v779
      %802 = vmatpush.msra.mxu0 %v778
      %803 = vmatpush.msra.mxu0 %v777
      %804 = vmatpush.msra.mxu0 %v776
      %805 = vmatmul.f32.gmra.mxu0 %v781
      %v806 = vpop.f32.mrf.mxu0
      %v807 = vadd.f32 0.0, %v806
      %808 = vmatmul.f32.gmra.mxu0 %v784
      %v809 = vpop.f32.mrf.mxu0
      %v810 = vadd.f32 0.0, %v809
      %811 = vmatmul.f32.gmra.mxu0 %v787
      %v812 = vpop.f32.mrf.mxu0
      %v813 = vadd.f32 0.0, %v812
      %814 = vdwg.mxu0
      %v816 = vsel %vm330, %v764, 0
      %v819 = vsel %vm330, %v765, 0
      %v822 = vsel %vm330, %v766, 0
      %824 = vmatpush.msra.mxu0 0.0
      %825 = vmatpush.msra.mxu0 0.0
      %826 = vmatpush.msra.mxu0 0.0
      %827 = vmatpush.msra.mxu0 0.0
      %828 = vmatpush.msra.mxu0 0.0
      %829 = vmatpush.msra.mxu0 0.0
      %830 = vmatpush.msra.mxu0 0.0
      %831 = vmatpush.msra.mxu0 0.0
      %832 = vmatpush.msra.mxu0 0.0
      %833 = vmatpush.msra.mxu0 0.0
      %834 = vmatpush.msra.mxu0 0.0
      %835 = vmatpush.msra.mxu0 0.0
      %836 = vmatpush.msra.mxu0 %v771
      %837 = vmatpush.msra.mxu0 %v770
      %838 = vmatpush.msra.mxu0 %v769
      %839 = vmatpush.msra.mxu0 %v768
      %840 = vmatmul.f32.gmra.mxu0 %v816
      %v841 = vpop.f32.mrf.mxu0
      %v842 = vadd.f32 %v807, %v841
      %843 = vmatmul.f32.gmra.mxu0 %v819
      %v844 = vpop.f32.mrf.mxu0
      %v845 = vadd.f32 %v810, %v844
      %846 = vmatmul.f32.gmra.mxu0 %v822
      %v847 = vpop.f32.mrf.mxu0
      %v848 = vadd.f32 %v813, %v847
      %849 = vdwg.mxu0
      %v850 = vadd.f32 %v761, %v842
      %v851 = vadd.f32 %v762, %v845
      %v852 = vadd.f32 %v763, %v848
      %v853 = vld [vmem:[#allocation4 + $0x9] sm:$0xff]
      %v854 = vld [vmem:[#allocation4 + $0x11] sm:$0xff]
      %v855 = vld [vmem:[#allocation4 + $0x19] sm:$0xff]
      %s856 = scalar_lea.vmem %s3, 160
      %v857 = vld [vmem:[%s856] sm:$0xff]
      %v858 = vld [vmem:[%s856 + $0x8] sm:$0xff]
      %v859 = vld [vmem:[%s856 + $0x10] sm:$0xff]
      %v860 = vld [vmem:[%s856 + $0x18] sm:$0xff]
      %v861 = vld [vmem:[%s319 + $0x9] sm:$0xff]
      %v862 = vld [vmem:[%s319 + $0x11] sm:$0xff]
      %v863 = vld [vmem:[%s319 + $0x19] sm:$0xff]
      %s864 = scalar_lea.vmem %s4, 160
      %v865 = vld [vmem:[%s864] sm:$0xff]
      %v866 = vld [vmem:[%s864 + $0x8] sm:$0xff]
      %v867 = vld [vmem:[%s864 + $0x10] sm:$0xff]
      %v868 = vld [vmem:[%s864 + $0x18] sm:$0xff]
      %v870 = vsel %vm330, %v861, 0
      %v873 = vsel %vm330, %v862, 0
      %v876 = vsel %vm330, %v863, 0
      %878 = vmatpush.msra.mxu0 0.0
      %879 = vmatpush.msra.mxu0 0.0
      %880 = vmatpush.msra.mxu0 0.0
      %881 = vmatpush.msra.mxu0 0.0
      %882 = vmatpush.msra.mxu0 0.0
      %883 = vmatpush.msra.mxu0 0.0
      %884 = vmatpush.msra.mxu0 0.0
      %885 = vmatpush.msra.mxu0 0.0
      %886 = vmatpush.msra.mxu0 0.0
      %887 = vmatpush.msra.mxu0 0.0
      %888 = vmatpush.msra.mxu0 0.0
      %889 = vmatpush.msra.mxu0 0.0
      %890 = vmatpush.msra.mxu0 %v868
      %891 = vmatpush.msra.mxu0 %v867
      %892 = vmatpush.msra.mxu0 %v866
      %893 = vmatpush.msra.mxu0 %v865
      %894 = vmatmul.f32.gmra.mxu0 %v870
      %v895 = vpop.f32.mrf.mxu0
      %v896 = vadd.f32 0.0, %v895
      %897 = vmatmul.f32.gmra.mxu0 %v873
      %v898 = vpop.f32.mrf.mxu0
      %v899 = vadd.f32 0.0, %v898
      %900 = vmatmul.f32.gmra.mxu0 %v876
      %v901 = vpop.f32.mrf.mxu0
      %v902 = vadd.f32 0.0, %v901
      %903 = vdwg.mxu0
      %v905 = vsel %vm330, %v853, 0
      %v908 = vsel %vm330, %v854, 0
      %v911 = vsel %vm330, %v855, 0
      %913 = vmatpush.msra.mxu0 0.0
      %914 = vmatpush.msra.mxu0 0.0
      %915 = vmatpush.msra.mxu0 0.0
      %916 = vmatpush.msra.mxu0 0.0
      %917 = vmatpush.msra.mxu0 0.0
      %918 = vmatpush.msra.mxu0 0.0
      %919 = vmatpush.msra.mxu0 0.0
      %920 = vmatpush.msra.mxu0 0.0
      %921 = vmatpush.msra.mxu0 0.0
      %922 = vmatpush.msra.mxu0 0.0
      %923 = vmatpush.msra.mxu0 0.0
      %924 = vmatpush.msra.mxu0 0.0
      %925 = vmatpush.msra.mxu0 %v860
      %926 = vmatpush.msra.mxu0 %v859
      %927 = vmatpush.msra.mxu0 %v858
      %928 = vmatpush.msra.mxu0 %v857
      %929 = vmatmul.f32.gmra.mxu0 %v905
      %v930 = vpop.f32.mrf.mxu0
      %v931 = vadd.f32 %v896, %v930
      %932 = vmatmul.f32.gmra.mxu0 %v908
      %v933 = vpop.f32.mrf.mxu0
      %v934 = vadd.f32 %v899, %v933
      %935 = vmatmul.f32.gmra.mxu0 %v911
      %v936 = vpop.f32.mrf.mxu0
      %v937 = vadd.f32 %v902, %v936
      %938 = vdwg.mxu0
      %v939 = vadd.f32 %v850, %v931
      %v940 = vadd.f32 %v851, %v934
      %v941 = vadd.f32 %v852, %v937
      %v942 = vld [vmem:[%s5] sm:$0x1]
      %v944 = vperm.slane %v942, 0
      %v946 = vadd.f32 %v939, %v944
      %v947 = vadd.f32 %v940, %v944
      %v948 = vadd.f32 %v941, %v944
      %vm949 = vcmp.ge.f32.partialorder %v946, 0.0
      %vm950 = vcmp.ge.f32.partialorder %v947, 0.0
      %vm951 = vcmp.ge.f32.partialorder %v948, 0.0
      %v952 = vmul.f32 %v946, 0.01
      %v953 = vmul.f32 %v947, 0.01
      %v954 = vmul.f32 %v948, 0.01
      %v955 = vsel %vm949, %v946, %v952
      %v956 = vsel %vm950, %v947, %v953
      %v957 = vsel %vm951, %v948, %v954
      %958 = vst.msk [vmem:[#allocation5] sm:$0xff] %vm330, %v955
      %959 = vst.msk [vmem:[#allocation5 + $0x8] sm:$0xff] %vm330, %v956
      %960 = vst.msk [vmem:[#allocation5 + $0x10] sm:$0xff] %vm330, %v957
      %961 = vst.msk [vmem:[#allocation5 + $0x18] sm:$0xff] %vm330, 0.0
      %v962 = vld [vmem:[#allocation5] sm:$0xff]
      %v963 = vld [vmem:[#allocation5 + $0x8] sm:$0xff]
      %v964 = vld [vmem:[%s6] sm:$0xff]
      %v965 = vld [vmem:[%s6 + $0x8] sm:$0xff]
      %v966 = vld [vmem:[%s6 + $0x10] sm:$0xff]
      %v967 = vld [vmem:[%s6 + $0x18] sm:$0xff]
      %v968 = vld [vmem:[#allocation5 + $0x1] sm:$0xff]
      %v969 = vld [vmem:[#allocation5 + $0x9] sm:$0xff]
      %s970 = scalar_lea.vmem %s6, 32
      %v971 = vld [vmem:[%s970] sm:$0xff]
      %v972 = vld [vmem:[%s970 + $0x8] sm:$0xff]
      %v973 = vld [vmem:[%s970 + $0x10] sm:$0xff]
      %v974 = vld [vmem:[%s970 + $0x18] sm:$0xff]
      %v976 = vsel %vm330, %v968, 0
      %v979 = vsel %vm330, %v969, 0
      %981 = vmatpush.msra.mxu0 0.0
      %982 = vmatpush.msra.mxu0 0.0
      %983 = vmatpush.msra.mxu0 0.0
      %984 = vmatpush.msra.mxu0 0.0
      %985 = vmatpush.msra.mxu0 0.0
      %986 = vmatpush.msra.mxu0 0.0
      %987 = vmatpush.msra.mxu0 0.0
      %988 = vmatpush.msra.mxu0 0.0
      %989 = vmatpush.msra.mxu0 0.0
      %990 = vmatpush.msra.mxu0 0.0
      %991 = vmatpush.msra.mxu0 0.0
      %992 = vmatpush.msra.mxu0 0.0
      %993 = vmatpush.msra.mxu0 %v974
      %994 = vmatpush.msra.mxu0 %v973
      %995 = vmatpush.msra.mxu0 %v972
      %996 = vmatpush.msra.mxu0 %v971
      %997 = vmatmul.f32.gmra.mxu0 %v976
      %v998 = vpop.f32.mrf.mxu0
      %v999 = vadd.f32 0.0, %v998
      %1000 = vmatmul.f32.gmra.mxu0 %v979
      %v1001 = vpop.f32.mrf.mxu0
      %v1002 = vadd.f32 0.0, %v1001
      %1003 = vdwg.mxu0
      %v1005 = vsel %vm330, %v962, 0
      %v1008 = vsel %vm330, %v963, 0
      %1010 = vmatpush.msra.mxu0 0.0
      %1011 = vmatpush.msra.mxu0 0.0
      %1012 = vmatpush.msra.mxu0 0.0
      %1013 = vmatpush.msra.mxu0 0.0
      %1014 = vmatpush.msra.mxu0 0.0
      %1015 = vmatpush.msra.mxu0 0.0
      %1016 = vmatpush.msra.mxu0 0.0
      %1017 = vmatpush.msra.mxu0 0.0
      %1018 = vmatpush.msra.mxu0 0.0
      %1019 = vmatpush.msra.mxu0 0.0
      %1020 = vmatpush.msra.mxu0 0.0
      %1021 = vmatpush.msra.mxu0 0.0
      %1022 = vmatpush.msra.mxu0 %v967
      %1023 = vmatpush.msra.mxu0 %v966
      %1024 = vmatpush.msra.mxu0 %v965
      %1025 = vmatpush.msra.mxu0 %v964
      %1026 = vmatmul.f32.gmra.mxu0 %v1005
      %v1027 = vpop.f32.mrf.mxu0
      %v1028 = vadd.f32 %v999, %v1027
      %1029 = vmatmul.f32.gmra.mxu0 %v1008
      %v1030 = vpop.f32.mrf.mxu0
      %v1031 = vadd.f32 %v1002, %v1030
      %1032 = vdwg.mxu0
      %v1033 = vld [vmem:[#allocation5 + $0x4] sm:$0xff]
      %v1034 = vld [vmem:[#allocation5 + $0xc] sm:$0xff]
      %s1035 = scalar_lea.vmem %s6, 64
      %v1036 = vld [vmem:[%s1035] sm:$0xff]
      %v1037 = vld [vmem:[%s1035 + $0x8] sm:$0xff]
      %v1038 = vld [vmem:[%s1035 + $0x10] sm:$0xff]
      %v1039 = vld [vmem:[%s1035 + $0x18] sm:$0xff]
      %v1041 = vsel %vm330, %v1033, 0
      %v1044 = vsel %vm330, %v1034, 0
      %1046 = vmatpush.msra.mxu0 0.0
      %1047 = vmatpush.msra.mxu0 0.0
      %1048 = vmatpush.msra.mxu0 0.0
      %1049 = vmatpush.msra.mxu0 0.0
      %1050 = vmatpush.msra.mxu0 0.0
      %1051 = vmatpush.msra.mxu0 0.0
      %1052 = vmatpush.msra.mxu0 0.0
      %1053 = vmatpush.msra.mxu0 0.0
      %1054 = vmatpush.msra.mxu0 0.0
      %1055 = vmatpush.msra.mxu0 0.0
      %1056 = vmatpush.msra.mxu0 0.0
      %1057 = vmatpush.msra.mxu0 0.0
      %1058 = vmatpush.msra.mxu0 %v1039
      %1059 = vmatpush.msra.mxu0 %v1038
      %1060 = vmatpush.msra.mxu0 %v1037
      %1061 = vmatpush.msra.mxu0 %v1036
      %1062 = vmatmul.f32.gmra.mxu0 %v1041
      %v1063 = vpop.f32.mrf.mxu0
      %v1064 = vadd.f32 0.0, %v1063
      %1065 = vmatmul.f32.gmra.mxu0 %v1044
      %v1066 = vpop.f32.mrf.mxu0
      %v1067 = vadd.f32 0.0, %v1066
      %1068 = vdwg.mxu0
      %v1069 = vadd.f32 %v1028, %v1064
      %v1070 = vadd.f32 %v1031, %v1067
      %v1071 = vld [vmem:[#allocation5 + $0x5] sm:$0xff]
      %v1072 = vld [vmem:[#allocation5 + $0xd] sm:$0xff]
      %s1073 = scalar_lea.vmem %s6, 96
      %v1074 = vld [vmem:[%s1073] sm:$0xff]
      %v1075 = vld [vmem:[%s1073 + $0x8] sm:$0xff]
      %v1076 = vld [vmem:[%s1073 + $0x10] sm:$0xff]
      %v1077 = vld [vmem:[%s1073 + $0x18] sm:$0xff]
      %v1079 = vsel %vm330, %v1071, 0
      %v1082 = vsel %vm330, %v1072, 0
      %1084 = vmatpush.msra.mxu0 0.0
      %1085 = vmatpush.msra.mxu0 0.0
      %1086 = vmatpush.msra.mxu0 0.0
      %1087 = vmatpush.msra.mxu0 0.0
      %1088 = vmatpush.msra.mxu0 0.0
      %1089 = vmatpush.msra.mxu0 0.0
      %1090 = vmatpush.msra.mxu0 0.0
      %1091 = vmatpush.msra.mxu0 0.0
      %1092 = vmatpush.msra.mxu0 0.0
      %1093 = vmatpush.msra.mxu0 0.0
      %1094 = vmatpush.msra.mxu0 0.0
      %1095 = vmatpush.msra.mxu0 0.0
      %1096 = vmatpush.msra.mxu0 %v1077
      %1097 = vmatpush.msra.mxu0 %v1076
      %1098 = vmatpush.msra.mxu0 %v1075
      %1099 = vmatpush.msra.mxu0 %v1074
      %1100 = vmatmul.f32.gmra.mxu0 %v1079
      %v1101 = vpop.f32.mrf.mxu0
      %v1102 = vadd.f32 0.0, %v1101
      %1103 = vmatmul.f32.gmra.mxu0 %v1082
      %v1104 = vpop.f32.mrf.mxu0
      %v1105 = vadd.f32 0.0, %v1104
      %1106 = vdwg.mxu0
      %v1107 = vadd.f32 %v1069, %v1102
      %v1108 = vadd.f32 %v1070, %v1105
      %v1109 = vld [vmem:[#allocation5 + $0x8] sm:$0xff]
      %v1110 = vld [vmem:[#allocation5 + $0x10] sm:$0xff]
      %s1111 = scalar_lea.vmem %s6, 128
      %v1112 = vld [vmem:[%s1111] sm:$0xff]
      %v1113 = vld [vmem:[%s1111 + $0x8] sm:$0xff]
      %v1114 = vld [vmem:[%s1111 + $0x10] sm:$0xff]
      %v1115 = vld [vmem:[%s1111 + $0x18] sm:$0xff]
      %v1117 = vsel %vm330, %v1109, 0
      %v1120 = vsel %vm330, %v1110, 0
      %1122 = vmatpush.msra.mxu0 0.0
      %1123 = vmatpush.msra.mxu0 0.0
      %1124 = vmatpush.msra.mxu0 0.0
      %1125 = vmatpush.msra.mxu0 0.0
      %1126 = vmatpush.msra.mxu0 0.0
      %1127 = vmatpush.msra.mxu0 0.0
      %1128 = vmatpush.msra.mxu0 0.0
      %1129 = vmatpush.msra.mxu0 0.0
      %1130 = vmatpush.msra.mxu0 0.0
      %1131 = vmatpush.msra.mxu0 0.0
      %1132 = vmatpush.msra.mxu0 0.0
      %1133 = vmatpush.msra.mxu0 0.0
      %1134 = vmatpush.msra.mxu0 %v1115
      %1135 = vmatpush.msra.mxu0 %v1114
      %1136 = vmatpush.msra.mxu0 %v1113
      %1137 = vmatpush.msra.mxu0 %v1112
      %1138 = vmatmul.f32.gmra.mxu0 %v1117
      %v1139 = vpop.f32.mrf.mxu0
      %v1140 = vadd.f32 0.0, %v1139
      %1141 = vmatmul.f32.gmra.mxu0 %v1120
      %v1142 = vpop.f32.mrf.mxu0
      %v1143 = vadd.f32 0.0, %v1142
      %1144 = vdwg.mxu0
      %v1145 = vadd.f32 %v1107, %v1140
      %v1146 = vadd.f32 %v1108, %v1143
      %v1147 = vld [vmem:[#allocation5 + $0x9] sm:$0xff]
      %v1148 = vld [vmem:[#allocation5 + $0x11] sm:$0xff]
      %s1149 = scalar_lea.vmem %s6, 160
      %v1150 = vld [vmem:[%s1149] sm:$0xff]
      %v1151 = vld [vmem:[%s1149 + $0x8] sm:$0xff]
      %v1152 = vld [vmem:[%s1149 + $0x10] sm:$0xff]
      %v1153 = vld [vmem:[%s1149 + $0x18] sm:$0xff]
      %v1155 = vsel %vm330, %v1147, 0
      %v1158 = vsel %vm330, %v1148, 0
      %1160 = vmatpush.msra.mxu0 0.0
      %1161 = vmatpush.msra.mxu0 0.0
      %1162 = vmatpush.msra.mxu0 0.0
      %1163 = vmatpush.msra.mxu0 0.0
      %1164 = vmatpush.msra.mxu0 0.0
      %1165 = vmatpush.msra.mxu0 0.0
      %1166 = vmatpush.msra.mxu0 0.0
      %1167 = vmatpush.msra.mxu0 0.0
      %1168 = vmatpush.msra.mxu0 0.0
      %1169 = vmatpush.msra.mxu0 0.0
      %1170 = vmatpush.msra.mxu0 0.0
      %1171 = vmatpush.msra.mxu0 0.0
      %1172 = vmatpush.msra.mxu0 %v1153
      %1173 = vmatpush.msra.mxu0 %v1152
      %1174 = vmatpush.msra.mxu0 %v1151
      %1175 = vmatpush.msra.mxu0 %v1150
      %1176 = vmatmul.f32.gmra.mxu0 %v1155
      %v1177 = vpop.f32.mrf.mxu0
      %v1178 = vadd.f32 0.0, %v1177
      %1179 = vmatmul.f32.gmra.mxu0 %v1158
      %v1180 = vpop.f32.mrf.mxu0
      %v1181 = vadd.f32 0.0, %v1180
      %1182 = vdwg.mxu0
      %v1183 = vadd.f32 %v1145, %v1178
      %v1184 = vadd.f32 %v1146, %v1181
      %v1185 = vld [vmem:[%s7] sm:$0x1]
      %v1187 = vperm.slane %v1185, 0
      %v1189 = vadd.f32 %v1183, %v1187
      %v1190 = vadd.f32 %v1184, %v1187
      %vm1191 = vcmp.ge.f32.partialorder %v1189, 0.0
      %vm1192 = vcmp.ge.f32.partialorder %v1190, 0.0
      %v1193 = vmul.f32 %v1189, 0.01
      %v1194 = vmul.f32 %v1190, 0.01
      %v1195 = vsel %vm1191, %v1189, %v1193
      %v1196 = vsel %vm1192, %v1190, %v1194
      %1197 = vst.msk [vmem:[#allocation6] sm:$0xff] %vm330, %v1195
      %1198 = vst.msk [vmem:[#allocation6 + $0x8] sm:$0xff] %vm330, %v1196
      loop: start=0, step=1, limit=4
      $region60: #{decoder_forward.5} parent=51 // loop_pre_header
        _
      $region61: #{decoder_forward.5} parent=51 // loop_header
        %s1200 = sphi 0, %s1204
        %p1201 = scmp.ge.s32.totalorder %s1200, 4
      $region62: #{decoder_forward.5} parent=51 // loop_header_branch
        %1203 = sbr.rel (%p1201) target = $region66
      $region63: #{decoder_forward.5} parent=51 // loop_body
        %s1205 = smul.u32 %s1200, 4
        %s1206 = scalar_lea.vmem [#allocation6], %s1205
        %v1207 = vld [vmem:[%s1206] sm:$0x3]
        %s1208 = smul.u32 %s1200, 2
        %s1209 = scalar_lea.vmem %s323, %s1208
        %vm1210 = vcmask 254976
        %1211 = vst.msk [vmem:[%s1209] sm:$0x3] %vm1210, %v1207
      $region64: #{decoder_forward.5} parent=51 // loop_footer
        %s1204 = sadd.s32 1, %s1200
      $region65: #{decoder_forward.5} parent=51 // loop_footer_branch
        %1199 = sbr.rel target = $region61
      $region66: #{decoder_forward.5} parent=51 // loop_exit
        _
      %p1212 = scmp.lt.s32.totalorder %s19, 1
      %s1213 = scalar_select %p1212, %s19, 1
      %s1214 = smul.addr %s1213, 8
      %s1215 = scalar_lea.vmem %s8, %s1214
      // Predicated region
      $region67: #{decoder_forward.5} parent=51 // pred_check
        %p1216 = pneg %p215
      $region68: #{decoder_forward.5} parent=51 // pred_check_branch
        %1218 = sbr.rel (%p1216) target = $region70
      $region69: #{decoder_forward.5} parent=51 // pred_region
        _
      $region70: #{decoder_forward.5} parent=51 // pred_fallthru
        _
    $region52: #{decoder_forward.5} parent=5 // pred_fallthru
      _
    %p1219 = scmp.le.s32.totalorder 2, %s14
    // Predicated region
    $region71: #{decoder_forward.5} parent=5 // pred_check
      %p1220 = pneg %p1219
    $region72: #{decoder_forward.5} parent=5 // pred_check_branch
      %1222 = sbr.rel (%p1220) target = $region74
    $region73: #{decoder_forward.5} parent=5 // pred_region
      %s1223 = ssub.s32 %s14, 2
      // Predicated region
      $region75: #{decoder_forward.5} parent=73 // pred_check
        %p1224 = pneg %p221
      $region76: #{decoder_forward.5} parent=73 // pred_check_branch
        %1226 = sbr.rel (%p1224) target = $region78
      $region77: #{decoder_forward.5} parent=73 // pred_region
        %p1227 = scmp.lt.s32.totalorder %s20, 1
        %s1228 = scalar_select %p1227, %s20, 1
        %s1229 = smul.addr %s1228, 8
        %s1230 = scalar_lea.vmem %s8, %s1229
      $region78: #{decoder_forward.5} parent=73 // pred_fallthru
        _
    $region74: #{decoder_forward.5} parent=5 // pred_fallthru
      _
  $region6: #{decoder_forward.5} parent=0 // loop_footer
    %s18 = sadd.s32 1, %s14
  $region7: #{decoder_forward.5} parent=0 // loop_footer_branch
    %13 = sbr.rel target = $region3
  $region8: #{decoder_forward.5} parent=0 // loop_exit
    _

// kernel: decoder_forward.3
$region0: #{decoder_forward.3}
  #allocation0 [shape = 'u32[]', space=smem, size = 0x4, offset = 0x4, fixed_abs, tag = 'smem constant byte address 0x4 - core index']
  #allocation1 [shape = 'u32[72,128]{1,0:T(1,128)}', space=vmem, size = 0x9000, scoped, tag = 'internal scratch']
  #allocation2 [shape = 'f32[16,128]{1,0:T(8,128)}', space=vmem, size = 0x2000, scoped, tag = 'scratch operand']
  #allocation3 [shape = 'f32[16,128]{1,0:T(8,128)}', space=vmem, size = 0x2000, scoped, tag = 'scratch operand']
  #allocation4 [shape = 'f32[40,128]{1,0:T(8,128)}', space=vmem, size = 0x5000, scoped, tag = 'scratch operand']
  #allocation5 [shape = 'f32[32,128]{1,0:T(8,128)}', space=vmem, size = 0x4000, scoped, tag = 'scratch operand']
  #allocation6 [shape = 'f32[16,128]{1,0:T(8,128)}', space=vmem, size = 0x2000, scoped, tag = 'scratch operand']
  %s0 = inlined_call_operand.vmem [shape: f32[2,16,128], index: 0, kind: input, shape index: {}]
  %s1 = inlined_call_operand.vmem [shape: f32[2,40,128], index: 1, kind: input, shape index: {}]
  %s2 = inlined_call_operand.hbm [shape: f32[2,128,128], index: 2, kind: input, shape index: {}]
  %s3 = inlined_call_operand.vmem [shape: f32[6,128,128], index: 3, kind: input, shape index: {}]
  %s4 = inlined_call_operand.hbm [shape: f32[6,128,128], index: 4, kind: input, shape index: {}]
  %s5 = inlined_call_operand.vmem [shape: f32[1,128], index: 5, kind: input, shape index: {}]
  %s6 = inlined_call_operand.hbm [shape: f32[6,128,128], index: 6, kind: input, shape index: {}]
  %s7 = inlined_call_operand.vmem [shape: f32[1,128], index: 7, kind: input, shape index: {}]
  %s8 = inlined_call_operand.vmem [shape: f32[2,8,128], index: 8, kind: output, shape index: {}]
  %s9 = sld [smem:[#allocation0]]
  $region91: #{decoder_forward.3} parent=0
    _
  %s11 = ssub.s32 1, %s9
  %s12 = scalar_select 0, %s11, %s9
  $region1: #{decoder_forward.3} parent=0
    #allocation7 [shape = 'u8[131072]{0}', space=vmem, size = 0x20000, scoped, tag = 'input window, operand 2, single buffered']
    #allocation8 [shape = 's32[2]{0}', space=sflag, size = 0x8, scoped, tag = 'scoped memory for decoder_forward.3']
    #allocation9 [shape = 'u8[393216]{0}', space=vmem, size = 0x60000, scoped, tag = 'input window, operand 4, single buffered']
    #allocation10 [shape = 's32[1]{0}', space=sflag, size = 0x4, scoped, tag = 'scoped memory for decoder_forward.3']
    #allocation11 [shape = 'u8[393216]{0}', space=vmem, size = 0x60000, scoped, tag = 'input window, operand 6, single buffered']
    %13 = vsyncpa [#allocation8], 0
    %14 = vsyncpa [#allocation10], 0
    loop: start=0, step=1, limit=4
    $region2: #{decoder_forward.3} parent=1 // loop_pre_header
      _
    $region3: #{decoder_forward.3} parent=1 // loop_header
      %s16 = sphi 0, %s20
      %p17 = scmp.ge.s32.totalorder %s16, 4
      %s26 = sphi 0, %s28
      %s29 = sphi 0, %s26
      %s30 = sphi 0, %s29
      %s46 = sphi 0, %s30
      %s52 = sphi 0, %s54
      %s55 = sphi 0, %s52
      %s56 = sphi 0, %s55
      %s72 = sphi 0, %s56
      %s76 = sphi 0, %s76
      %s78 = sphi 0, %s76
      %s79 = sphi 0, %s78
      %s93 = sphi 0, %s79
      %s97 = sphi 0, %s97
      %s99 = sphi 0, %s97
      %s100 = sphi 0, %s99
      %s114 = sphi 0, %s100
      %s118 = sphi 0, %s118
      %s120 = sphi 0, %s118
      %s121 = sphi 0, %s120
      %s135 = sphi 0, %s121
      %s139 = sphi 0, %s139
      %s141 = sphi 0, %s139
      %s142 = sphi 0, %s141
      %s156 = sphi 0, %s142
      %s160 = sphi 0, %s160
      %s162 = sphi 0, %s160
      %s163 = sphi 0, %s162
      %s177 = sphi 0, %s163
      %s181 = sphi 0, %s181
      %s183 = sphi 0, %s181
      %s184 = sphi 0, %s183
      %s198 = sphi 0, %s184
      %s204 = sphi 0, %s206
      %s207 = sphi 0, %s204
      %s208 = sphi 0, %s207
      %s224 = sphi 0, %s208
    $region4: #{decoder_forward.3} parent=1 // loop_header_branch
      %19 = sbr.rel (%p17) target = $region8
    $region5: #{decoder_forward.3} parent=1 // loop_body
      %s21 = ssub.s32 %s16, 1
      %s22 = ssub.s32 %s16, 2
      %s23 = sadd.s32 %s16, 1
      %s24 = ssub.s32 %s16, %s23
      %p25 = scmp.eq.s32.totalorder %s24, 0
      %s27 = sadd.s32 %s26, 1
      %s28 = scalar_select %p25, %s26, %s27
      %p31 = pneg %p25
      %p32 = scmp.eq.s32.totalorder %s16, 1
      %p33 = por %p31, %p32
      %p34 = scmp.ne.s32.totalorder %s26, %s29
      %p35 = scmp.eq.s32.totalorder %s16, 0
      %p36 = por %p34, %p35
      %p37 = scmp.ne.s32.totalorder %s26, %s29
      %p38 = scmp.eq.s32.totalorder %s21, 1
      %p39 = por %p37, %p38
      %p40 = scmp.ne.s32.totalorder %s29, %s30
      %p41 = scmp.eq.s32.totalorder %s21, 0
      %p42 = por %p40, %p41
      %p43 = scmp.ne.s32.totalorder %s29, %s30
      %p44 = scmp.eq.s32.totalorder %s22, 1
      %p45 = por %p43, %p44
      %p47 = scmp.ne.s32.totalorder %s30, %s46
      %p48 = scmp.eq.s32.totalorder %s22, 0
      %p49 = por %p47, %p48
      %s50 = ssub.s32 %s16, %s23
      %p51 = scmp.eq.s32.totalorder %s50, 0
      %s53 = sadd.s32 %s52, 1
      %s54 = scalar_select %p51, %s52, %s53
      %p57 = pneg %p51
      %p58 = scmp.eq.s32.totalorder %s16, 1
      %p59 = por %p57, %p58
      %p60 = scmp.ne.s32.totalorder %s52, %s55
      %p61 = scmp.eq.s32.totalorder %s16, 0
      %p62 = por %p60, %p61
      %p63 = scmp.ne.s32.totalorder %s52, %s55
      %p64 = scmp.eq.s32.totalorder %s21, 1
      %p65 = por %p63, %p64
      %p66 = scmp.ne.s32.totalorder %s55, %s56
      %p67 = scmp.eq.s32.totalorder %s21, 0
      %p68 = por %p66, %p67
      %p69 = scmp.ne.s32.totalorder %s55, %s56
      %p70 = scmp.eq.s32.totalorder %s22, 1
      %p71 = por %p69, %p70
      %p73 = scmp.ne.s32.totalorder %s56, %s72
      %p74 = scmp.eq.s32.totalorder %s22, 0
      %p75 = por %p73, %p74
      %s77 = sadd.s32 %s76, 1
      %p80 = scmp.eq.s32.totalorder %s16, 1
      %p81 = scmp.ne.s32.totalorder %s76, %s78
      %p82 = scmp.eq.s32.totalorder %s16, 0
      %p83 = por %p81, %p82
      %p84 = scmp.ne.s32.totalorder %s76, %s78
      %p85 = scmp.eq.s32.totalorder %s21, 1
      %p86 = por %p84, %p85
      %p87 = scmp.ne.s32.totalorder %s78, %s79
      %p88 = scmp.eq.s32.totalorder %s21, 0
      %p89 = por %p87, %p88
      %p90 = scmp.ne.s32.totalorder %s78, %s79
      %p91 = scmp.eq.s32.totalorder %s22, 1
      %p92 = por %p90, %p91
      %p94 = scmp.ne.s32.totalorder %s79, %s93
      %p95 = scmp.eq.s32.totalorder %s22, 0
      %p96 = por %p94, %p95
      %s98 = sadd.s32 %s97, 1
      %p101 = scmp.eq.s32.totalorder %s16, 1
      %p102 = scmp.ne.s32.totalorder %s97, %s99
      %p103 = scmp.eq.s32.totalorder %s16, 0
      %p104 = por %p102, %p103
      %p105 = scmp.ne.s32.totalorder %s97, %s99
      %p106 = scmp.eq.s32.totalorder %s21, 1
      %p107 = por %p105, %p106
      %p108 = scmp.ne.s32.totalorder %s99, %s100
      %p109 = scmp.eq.s32.totalorder %s21, 0
      %p110 = por %p108, %p109
      %p111 = scmp.ne.s32.totalorder %s99, %s100
      %p112 = scmp.eq.s32.totalorder %s22, 1
      %p113 = por %p111, %p112
      %p115 = scmp.ne.s32.totalorder %s100, %s114
      %p116 = scmp.eq.s32.totalorder %s22, 0
      %p117 = por %p115, %p116
      %s119 = sadd.s32 %s118, 1
      %p122 = scmp.eq.s32.totalorder %s16, 1
      %p123 = scmp.ne.s32.totalorder %s118, %s120
      %p124 = scmp.eq.s32.totalorder %s16, 0
      %p125 = por %p123, %p124
      %p126 = scmp.ne.s32.totalorder %s118, %s120
      %p127 = scmp.eq.s32.totalorder %s21, 1
      %p128 = por %p126, %p127
      %p129 = scmp.ne.s32.totalorder %s120, %s121
      %p130 = scmp.eq.s32.totalorder %s21, 0
      %p131 = por %p129, %p130
      %p132 = scmp.ne.s32.totalorder %s120, %s121
      %p133 = scmp.eq.s32.totalorder %s22, 1
      %p134 = por %p132, %p133
      %p136 = scmp.ne.s32.totalorder %s121, %s135
      %p137 = scmp.eq.s32.totalorder %s22, 0
      %p138 = por %p136, %p137
      %s140 = sadd.s32 %s139, 1
      %p143 = scmp.eq.s32.totalorder %s16, 1
      %p144 = scmp.ne.s32.totalorder %s139, %s141
      %p145 = scmp.eq.s32.totalorder %s16, 0
      %p146 = por %p144, %p145
      %p147 = scmp.ne.s32.totalorder %s139, %s141
      %p148 = scmp.eq.s32.totalorder %s21, 1
      %p149 = por %p147, %p148
      %p150 = scmp.ne.s32.totalorder %s141, %s142
      %p151 = scmp.eq.s32.totalorder %s21, 0
      %p152 = por %p150, %p151
      %p153 = scmp.ne.s32.totalorder %s141, %s142
      %p154 = scmp.eq.s32.totalorder %s22, 1
      %p155 = por %p153, %p154
      %p157 = scmp.ne.s32.totalorder %s142, %s156
      %p158 = scmp.eq.s32.totalorder %s22, 0
      %p159 = por %p157, %p158
      %s161 = sadd.s32 %s160, 1
      %p164 = scmp.eq.s32.totalorder %s16, 1
      %p165 = scmp.ne.s32.totalorder %s160, %s162
      %p166 = scmp.eq.s32.totalorder %s16, 0
      %p167 = por %p165, %p166
      %p168 = scmp.ne.s32.totalorder %s160, %s162
      %p169 = scmp.eq.s32.totalorder %s21, 1
      %p170 = por %p168, %p169
      %p171 = scmp.ne.s32.totalorder %s162, %s163
      %p172 = scmp.eq.s32.totalorder %s21, 0
      %p173 = por %p171, %p172
      %p174 = scmp.ne.s32.totalorder %s162, %s163
      %p175 = scmp.eq.s32.totalorder %s22, 1
      %p176 = por %p174, %p175
      %p178 = scmp.ne.s32.totalorder %s163, %s177
      %p179 = scmp.eq.s32.totalorder %s22, 0
      %p180 = por %p178, %p179
      %s182 = sadd.s32 %s181, 1
      %p185 = scmp.eq.s32.totalorder %s16, 1
      %p186 = scmp.ne.s32.totalorder %s181, %s183
      %p187 = scmp.eq.s32.totalorder %s16, 0
      %p188 = por %p186, %p187
      %p189 = scmp.ne.s32.totalorder %s181, %s183
      %p190 = scmp.eq.s32.totalorder %s21, 1
      %p191 = por %p189, %p190
      %p192 = scmp.ne.s32.totalorder %s183, %s184
      %p193 = scmp.eq.s32.totalorder %s21, 0
      %p194 = por %p192, %p193
      %p195 = scmp.ne.s32.totalorder %s183, %s184
      %p196 = scmp.eq.s32.totalorder %s22, 1
      %p197 = por %p195, %p196
      %p199 = scmp.ne.s32.totalorder %s184, %s198
      %p200 = scmp.eq.s32.totalorder %s22, 0
      %p201 = por %p199, %p200
      %s202 = ssub.s32 %s16, %s23
      %p203 = scmp.eq.s32.totalorder %s202, 0
      %s205 = sadd.s32 %s204, 1
      %s206 = scalar_select %p203, %s204, %s205
      %p209 = pneg %p203
      %p210 = scmp.eq.s32.totalorder %s16, 1
      %p211 = por %p209, %p210
      %p212 = scmp.ne.s32.totalorder %s204, %s207
      %p213 = scmp.eq.s32.totalorder %s16, 0
      %p214 = por %p212, %p213
      %p215 = scmp.ne.s32.totalorder %s204, %s207
      %p216 = scmp.eq.s32.totalorder %s21, 1
      %p217 = por %p215, %p216
      %p218 = scmp.ne.s32.totalorder %s207, %s208
      %p219 = scmp.eq.s32.totalorder %s21, 0
      %p220 = por %p218, %p219
      %p221 = scmp.ne.s32.totalorder %s207, %s208
      %p222 = scmp.eq.s32.totalorder %s22, 1
      %p223 = por %p221, %p222
      %p225 = scmp.ne.s32.totalorder %s208, %s224
      %p226 = scmp.eq.s32.totalorder %s22, 0
      %p227 = por %p225, %p226
      %p228 = scmp.le.s32.totalorder 1, %s16
      %p229 = scmp.lt.s32.totalorder %s16, 3
      %p230 = pnand %p228, %p229
      %p231 = pneg %p230
      // Predicated region
      $region9: #{decoder_forward.3} parent=5 // pred_check
        _
      $region10: #{decoder_forward.3} parent=5 // pred_check_branch
        %233 = sbr.rel (%p230) target = $region12
      $region11: #{decoder_forward.3} parent=5 // pred_region
        %s234 = ssub.s32 %s16, 1
        // Predicated region
        $region13: #{decoder_forward.3} parent=11 // pred_check
          %p235 = pneg %p89
        $region14: #{decoder_forward.3} parent=11 // pred_check_branch
          %237 = sbr.rel (%p235) target = $region16
        $region15: #{decoder_forward.3} parent=11 // pred_region
          %239 = vsyncadd [#allocation8], 0
          %s240 = sshll.u32 %s2, 4
          %s241 = int_to_ptr.hbm [resolvable:$true] %s240
          %s242 = sshll.u32 [#allocation7], 4
          %s243 = int_to_ptr.vmem [resolvable:$true] %s242
          %248 = dma.hbm_to_vmem [thread:$0]  %s241, 4096, %s243, [#allocation8], 128, 128, 8
        $region16: #{decoder_forward.3} parent=11 // pred_fallthru
          _
        // Predicated region
        $region17: #{decoder_forward.3} parent=11 // pred_check
          %p249 = pneg %p110
        $region18: #{decoder_forward.3} parent=11 // pred_check_branch
          %251 = sbr.rel (%p249) target = $region20
        $region19: #{decoder_forward.3} parent=11 // pred_region
          _
        $region20: #{decoder_forward.3} parent=11 // pred_fallthru
          _
        // Predicated region
        $region21: #{decoder_forward.3} parent=11 // pred_check
          %p252 = pneg %p131
        $region22: #{decoder_forward.3} parent=11 // pred_check_branch
          %254 = sbr.rel (%p252) target = $region24
        $region23: #{decoder_forward.3} parent=11 // pred_region
          %256 = vsyncadd [#allocation10], 0
          %s257 = sshll.u32 %s4, 4
          %s258 = int_to_ptr.hbm [resolvable:$true] %s257
          %s259 = sshll.u32 [#allocation9], 4
          %s260 = int_to_ptr.vmem [resolvable:$true] %s259
          %265 = dma.hbm_to_vmem [thread:$0]  %s258, 12288, %s260, [#allocation10], 128, 128, 8
        $region24: #{decoder_forward.3} parent=11 // pred_fallthru
          _
        // Predicated region
        $region25: #{decoder_forward.3} parent=11 // pred_check
          %p266 = pneg %p152
        $region26: #{decoder_forward.3} parent=11 // pred_check_branch
          %268 = sbr.rel (%p266) target = $region28
        $region27: #{decoder_forward.3} parent=11 // pred_region
          _
        $region28: #{decoder_forward.3} parent=11 // pred_fallthru
          _
        // Predicated region
        $region29: #{decoder_forward.3} parent=11 // pred_check
          %p269 = pneg %p173
        $region30: #{decoder_forward.3} parent=11 // pred_check_branch
          %271 = sbr.rel (%p269) target = $region32
        $region31: #{decoder_forward.3} parent=11 // pred_region
          %273 = vsyncadd [#allocation10], 0
          %s274 = sshll.u32 %s6, 4
          %s275 = int_to_ptr.hbm [resolvable:$true] %s274
          %s276 = sshll.u32 [#allocation11], 4
          %s277 = int_to_ptr.vmem [resolvable:$true] %s276
          %282 = dma.hbm_to_vmem [thread:$0]  %s275, 12288, %s277, [#allocation10], 128, 128, 8
        $region32: #{decoder_forward.3} parent=11 // pred_fallthru
          _
        // Predicated region
        $region33: #{decoder_forward.3} parent=11 // pred_check
          %p283 = pneg %p194
        $region34: #{decoder_forward.3} parent=11 // pred_check_branch
          %285 = sbr.rel (%p283) target = $region36
        $region35: #{decoder_forward.3} parent=11 // pred_region
          _
        $region36: #{decoder_forward.3} parent=11 // pred_fallthru
          _
      $region12: #{decoder_forward.3} parent=5 // pred_fallthru
        _
      %p286 = scmp.lt.s32.totalorder %s16, 2
      // Predicated region
      $region37: #{decoder_forward.3} parent=5 // pred_check
        %p287 = pneg %p286
      $region38: #{decoder_forward.3} parent=5 // pred_check_branch
        %289 = sbr.rel (%p287) target = $region40
      $region39: #{decoder_forward.3} parent=5 // pred_region
        // Predicated region
        $region41: #{decoder_forward.3} parent=39 // pred_check
          %p290 = pneg %p36
        $region42: #{decoder_forward.3} parent=39 // pred_check_branch
          %292 = sbr.rel (%p290) target = $region44
        $region43: #{decoder_forward.3} parent=39 // pred_region
          %p293 = scmp.lt.s32.totalorder %s16, 1
          %s294 = scalar_select %p293, %s16, 1
          %s295 = smul.addr %s294, 2
          %s296 = smul.addr %s295, 8
          %s297 = scalar_lea.vmem %s0, %s296
        $region44: #{decoder_forward.3} parent=39 // pred_fallthru
          _
        // Predicated region
        $region45: #{decoder_forward.3} parent=39 // pred_check
          %p298 = pneg %p62
        $region46: #{decoder_forward.3} parent=39 // pred_check_branch
          %300 = sbr.rel (%p298) target = $region48
        $region47: #{decoder_forward.3} parent=39 // pred_region
          %p301 = scmp.lt.s32.totalorder %s16, 1
          %s302 = scalar_select %p301, %s16, 1
          %s303 = smul.addr %s302, 5
          %s304 = smul.addr %s303, 8
          %s305 = scalar_lea.vmem %s1, %s304
        $region48: #{decoder_forward.3} parent=39 // pred_fallthru
          _
      $region40: #{decoder_forward.3} parent=5 // pred_fallthru
        _
      %p306 = scmp.le.s32.totalorder 1, %s16
      %p307 = scmp.lt.s32.totalorder %s16, 3
      %p308 = pnand %p306, %p307
      %p309 = pneg %p308
      // Predicated region
      $region49: #{decoder_forward.3} parent=5 // pred_check
        _
      $region50: #{decoder_forward.3} parent=5 // pred_check_branch
        %311 = sbr.rel (%p308) target = $region52
      $region51: #{decoder_forward.3} parent=5 // pred_region
        %s312 = ssub.s32 %s16, 1
        // Predicated region
        $region53: #{decoder_forward.3} parent=51 // pred_check
          %p313 = pneg %p89
        $region54: #{decoder_forward.3} parent=51 // pred_check_branch
          %315 = sbr.rel (%p313) target = $region56
        $region55: #{decoder_forward.3} parent=51 // pred_region
          %317 = dma.done [#allocation8], 4096
        $region56: #{decoder_forward.3} parent=51 // pred_fallthru
          _
        // Predicated region
        $region57: #{decoder_forward.3} parent=51 // pred_check
          %p318 = pneg %p131
        $region58: #{decoder_forward.3} parent=51 // pred_check_branch
          %320 = sbr.rel (%p318) target = $region60
        $region59: #{decoder_forward.3} parent=51 // pred_region
          %322 = dma.done [#allocation10], 12288
        $region60: #{decoder_forward.3} parent=51 // pred_fallthru
          _
        // Predicated region
        $region61: #{decoder_forward.3} parent=51 // pred_check
          %p323 = pneg %p173
        $region62: #{decoder_forward.3} parent=51 // pred_check_branch
          %325 = sbr.rel (%p323) target = $region64
        $region63: #{decoder_forward.3} parent=51 // pred_region
          %327 = dma.done [#allocation10], 12288
        $region64: #{decoder_forward.3} parent=51 // pred_fallthru
          _
        %p328 = scmp.lt.s32.totalorder %s21, 1
        %s329 = scalar_select %p328, %s21, 1
        %s330 = smul.addr %s329, 2
        %s331 = smul.addr %s330, 8
        %s332 = scalar_lea.vmem %s0, %s331
        %p333 = pneg %p42
        %p334 = pneg %p39
        %p335 = scmp.lt.s32.totalorder %s21, 1
        %s336 = scalar_select %p335, %s21, 1
        %s337 = smul.addr %s336, 5
        %s338 = smul.addr %s337, 8
        %s339 = scalar_lea.vmem %s1, %s338
        %p340 = pneg %p68
        %p341 = pneg %p65
        %p342 = pneg %p89
        %p343 = pneg %p86
        %p344 = pneg %p110
        %p345 = pneg %p107
        %p346 = pneg %p131
        %p347 = pneg %p128
        %p348 = pneg %p152
        %p349 = pneg %p149
        %p350 = pneg %p173
        %p351 = pneg %p170
        %p352 = pneg %p194
        %p353 = pneg %p191
        %p354 = pneg %p220
        %p355 = pneg %p217
        %p356 = scmp.lt.s32.totalorder %s21, 1
        %s357 = scalar_select %p356, %s21, 1
        %s358 = smul.addr %s357, 8
        %s359 = scalar_lea.vmem %s8, %s358
        %p360 = scmp.lt.s32.totalorder %s21, 1
        %s361 = scalar_select %p360, %s21, 1
        %s362 = smul.addr %s361, 2
        %s363 = smul.addr %s362, 8
        %s364 = scalar_lea.vmem %s0, %s363
        %p365 = scmp.lt.s32.totalorder %s21, 1
        %s366 = scalar_select %p365, %s21, 1
        %s367 = smul.addr %s366, 5
        %s368 = smul.addr %s367, 8
        %s369 = scalar_lea.vmem %s1, %s368
        %p370 = scmp.lt.s32.totalorder %s21, 1
        %s371 = scalar_select %p370, %s21, 1
        %s372 = smul.addr %s371, 8
        %s373 = scalar_lea.vmem %s8, %s372
        %v374 = vld [vmem:[%s364] sm:$0xff]
        %v375 = vld [vmem:[%s364 + $0x8] sm:$0xff]
        %v376 = vld [vmem:[#allocation7] sm:$0xff]
        %v377 = vld [vmem:[#allocation7 + $0x8] sm:$0xff]
        %v378 = vld [vmem:[#allocation7 + $0x10] sm:$0xff]
        %v379 = vld [vmem:[#allocation7 + $0x18] sm:$0xff]
        %v380 = vld [vmem:[#allocation7 + $0x20] sm:$0xff]
        %v381 = vld [vmem:[#allocation7 + $0x28] sm:$0xff]
        %v382 = vld [vmem:[#allocation7 + $0x30] sm:$0xff]
        %v383 = vld [vmem:[#allocation7 + $0x38] sm:$0xff]
        %v384 = vld [vmem:[#allocation7 + $0x40] sm:$0xff]
        %v385 = vld [vmem:[#allocation7 + $0x48] sm:$0xff]
        %v386 = vld [vmem:[#allocation7 + $0x50] sm:$0xff]
        %v387 = vld [vmem:[#allocation7 + $0x58] sm:$0xff]
        %v388 = vld [vmem:[#allocation7 + $0x60] sm:$0xff]
        %v389 = vld [vmem:[#allocation7 + $0x68] sm:$0xff]
        %v390 = vld [vmem:[#allocation7 + $0x70] sm:$0xff]
        %v391 = vld [vmem:[#allocation7 + $0x78] sm:$0xff]
        %392 = vmatpush.msra.mxu0 %v391
        %393 = vmatpush.msra.mxu0 %v390
        %394 = vmatpush.msra.mxu0 %v389
        %395 = vmatpush.msra.mxu0 %v388
        %396 = vmatpush.msra.mxu0 %v387
        %397 = vmatpush.msra.mxu0 %v386
        %398 = vmatpush.msra.mxu0 %v385
        %399 = vmatpush.msra.mxu0 %v384
        %400 = vmatpush.msra.mxu0 %v383
        %401 = vmatpush.msra.mxu0 %v382
        %402 = vmatpush.msra.mxu0 %v381
        %403 = vmatpush.msra.mxu0 %v380
        %404 = vmatpush.msra.mxu0 %v379
        %405 = vmatpush.msra.mxu0 %v378
        %406 = vmatpush.msra.mxu0 %v377
        %407 = vmatpush.msra.mxu0 %v376
        %408 = vmatmul.f32.gmra.mxu0 %v374
        %v409 = vpop.f32.mrf.mxu0
        %v410 = vadd.f32 0.0, %v409
        %411 = vmatmul.f32.gmra.mxu0 %v375
        %v412 = vpop.f32.mrf.mxu0
        %v413 = vadd.f32 0.0, %v412
        %414 = vdwg.mxu0
        %415 = vst [vmem:[#allocation2] sm:$0xff] %v410
        %416 = vst [vmem:[#allocation2 + $0x8] sm:$0xff] %v413
        %s417 = scalar_lea.vmem [#allocation7], 128
        %v418 = vld [vmem:[%s417] sm:$0xff]
        %v419 = vld [vmem:[%s417 + $0x8] sm:$0xff]
        %v420 = vld [vmem:[%s417 + $0x10] sm:$0xff]
        %v421 = vld [vmem:[%s417 + $0x18] sm:$0xff]
        %v422 = vld [vmem:[%s417 + $0x20] sm:$0xff]
        %v423 = vld [vmem:[%s417 + $0x28] sm:$0xff]
        %v424 = vld [vmem:[%s417 + $0x30] sm:$0xff]
        %v425 = vld [vmem:[%s417 + $0x38] sm:$0xff]
        %v426 = vld [vmem:[%s417 + $0x40] sm:$0xff]
        %v427 = vld [vmem:[%s417 + $0x48] sm:$0xff]
        %v428 = vld [vmem:[%s417 + $0x50] sm:$0xff]
        %v429 = vld [vmem:[%s417 + $0x58] sm:$0xff]
        %v430 = vld [vmem:[%s417 + $0x60] sm:$0xff]
        %v431 = vld [vmem:[%s417 + $0x68] sm:$0xff]
        %v432 = vld [vmem:[%s417 + $0x70] sm:$0xff]
        %v433 = vld [vmem:[%s417 + $0x78] sm:$0xff]
        %434 = vmatpush.msra.mxu0 %v433
        %435 = vmatpush.msra.mxu0 %v432
        %436 = vmatpush.msra.mxu0 %v431
        %437 = vmatpush.msra.mxu0 %v430
        %438 = vmatpush.msra.mxu0 %v429
        %439 = vmatpush.msra.mxu0 %v428
        %440 = vmatpush.msra.mxu0 %v427
        %441 = vmatpush.msra.mxu0 %v426
        %442 = vmatpush.msra.mxu0 %v425
        %443 = vmatpush.msra.mxu0 %v424
        %444 = vmatpush.msra.mxu0 %v423
        %445 = vmatpush.msra.mxu0 %v422
        %446 = vmatpush.msra.mxu0 %v421
        %447 = vmatpush.msra.mxu0 %v420
        %448 = vmatpush.msra.mxu0 %v419
        %449 = vmatpush.msra.mxu0 %v418
        %450 = vmatmul.f32.gmra.mxu0 %v374
        %v451 = vpop.f32.mrf.mxu0
        %v452 = vadd.f32 0.0, %v451
        %453 = vmatmul.f32.gmra.mxu0 %v375
        %v454 = vpop.f32.mrf.mxu0
        %v455 = vadd.f32 0.0, %v454
        %456 = vdwg.mxu0
        %457 = vst [vmem:[#allocation3] sm:$0xff] %v452
        %458 = vst [vmem:[#allocation3 + $0x8] sm:$0xff] %v455
        %459 = vst [vmem:[#allocation4 + $0x20] sm:$0xff] 0.0
        loop: start=0, step=1, limit=4
        $region65: #{decoder_forward.3} parent=51 // loop_pre_header
          _
        $region66: #{decoder_forward.3} parent=51 // loop_header
          %s461 = sphi 0, %s465
          %p462 = scmp.ge.s32.totalorder %s461, 4
        $region67: #{decoder_forward.3} parent=51 // loop_header_branch
          %464 = sbr.rel (%p462) target = $region71
        $region68: #{decoder_forward.3} parent=51 // loop_body
          %s466 = smul.u32 %s461, 4
          %s467 = scalar_lea.vmem [#allocation2], %s466
          %v468 = vld [vmem:[%s467] sm:$0xf]
          %s469 = smul.u32 %s461, 8
          %s470 = scalar_lea.vmem [#allocation4], %s469
          %471 = vst [vmem:[%s470] sm:$0xf] %v468
          %s472 = scalar_lea.vmem [#allocation3], %s466
          %v473 = vld [vmem:[%s472] sm:$0xf]
          %s474 = smul.u32 %s461, 2
          %s475 = sadd.s32 %s474, 1
          %s476 = smul.u32 %s475, 4
          %s477 = scalar_lea.vmem [#allocation4], %s476
          %478 = vst [vmem:[%s477] sm:$0xf] %v473
        $region69: #{decoder_forward.3} parent=51 // loop_footer
          %s465 = sadd.s32 1, %s461
        $region70: #{decoder_forward.3} parent=51 // loop_footer_branch
          %460 = sbr.rel target = $region66
        $region71: #{decoder_forward.3} parent=51 // loop_exit
          _
        %v479 = vld [vmem:[#allocation4] sm:$0xff]
        %v480 = vld [vmem:[#allocation4 + $0x8] sm:$0xff]
        %v481 = vld [vmem:[#allocation4 + $0x10] sm:$0xff]
        %v482 = vld [vmem:[%s3] sm:$0xff]
        %v483 = vld [vmem:[%s3 + $0x8] sm:$0xff]
        %v484 = vld [vmem:[%s3 + $0x10] sm:$0xff]
        %v485 = vld [vmem:[%s3 + $0x18] sm:$0xff]
        %v486 = vld [vmem:[%s3 + $0x20] sm:$0xff]
        %v487 = vld [vmem:[%s3 + $0x28] sm:$0xff]
        %v488 = vld [vmem:[%s3 + $0x30] sm:$0xff]
        %v489 = vld [vmem:[%s3 + $0x38] sm:$0xff]
        %v490 = vld [vmem:[%s3 + $0x40] sm:$0xff]
        %v491 = vld [vmem:[%s3 + $0x48] sm:$0xff]
        %v492 = vld [vmem:[%s3 + $0x50] sm:$0xff]
        %v493 = vld [vmem:[%s3 + $0x58] sm:$0xff]
        %v494 = vld [vmem:[%s3 + $0x60] sm:$0xff]
        %v495 = vld [vmem:[%s3 + $0x68] sm:$0xff]
        %v496 = vld [vmem:[%s3 + $0x70] sm:$0xff]
        %v497 = vld [vmem:[%s3 + $0x78] sm:$0xff]
        %v498 = vld [vmem:[%s369] sm:$0xff]
        %v499 = vld [vmem:[%s369 + $0x8] sm:$0xff]
        %v500 = vld [vmem:[%s369 + $0x10] sm:$0xff]
        %v501 = vld [vmem:[#allocation9] sm:$0xff]
        %v502 = vld [vmem:[#allocation9 + $0x8] sm:$0xff]
        %v503 = vld [vmem:[#allocation9 + $0x10] sm:$0xff]
        %v504 = vld [vmem:[#allocation9 + $0x18] sm:$0xff]
        %v505 = vld [vmem:[#allocation9 + $0x20] sm:$0xff]
        %v506 = vld [vmem:[#allocation9 + $0x28] sm:$0xff]
        %v507 = vld [vmem:[#allocation9 + $0x30] sm:$0xff]
        %v508 = vld [vmem:[#allocation9 + $0x38] sm:$0xff]
        %v509 = vld [vmem:[#allocation9 + $0x40] sm:$0xff]
        %v510 = vld [vmem:[#allocation9 + $0x48] sm:$0xff]
        %v511 = vld [vmem:[#allocation9 + $0x50] sm:$0xff]
        %v512 = vld [vmem:[#allocation9 + $0x58] sm:$0xff]
        %v513 = vld [vmem:[#allocation9 + $0x60] sm:$0xff]
        %v514 = vld [vmem:[#allocation9 + $0x68] sm:$0xff]
        %v515 = vld [vmem:[#allocation9 + $0x70] sm:$0xff]
        %v516 = vld [vmem:[#allocation9 + $0x78] sm:$0xff]
        %517 = vmatpush.msra.mxu0 %v516
        %518 = vmatpush.msra.mxu0 %v515
        %519 = vmatpush.msra.mxu0 %v514
        %520 = vmatpush.msra.mxu0 %v513
        %521 = vmatpush.msra.mxu0 %v512
        %522 = vmatpush.msra.mxu0 %v511
        %523 = vmatpush.msra.mxu0 %v510
        %524 = vmatpush.msra.mxu0 %v509
        %525 = vmatpush.msra.mxu0 %v508
        %526 = vmatpush.msra.mxu0 %v507
        %527 = vmatpush.msra.mxu0 %v506
        %528 = vmatpush.msra.mxu0 %v505
        %529 = vmatpush.msra.mxu0 %v504
        %530 = vmatpush.msra.mxu0 %v503
        %531 = vmatpush.msra.mxu0 %v502
        %532 = vmatpush.msra.mxu0 %v501
        %533 = vmatmul.f32.gmra.mxu0 %v498
        %v534 = vpop.f32.mrf.mxu0
        %v535 = vadd.f32 0.0, %v534
        %536 = vmatmul.f32.gmra.mxu0 %v499
        %v537 = vpop.f32.mrf.mxu0
        %v538 = vadd.f32 0.0, %v537
        %539 = vmatmul.f32.gmra.mxu0 %v500
        %v540 = vpop.f32.mrf.mxu0
        %v541 = vadd.f32 0.0, %v540
        %542 = vdwg.mxu0
        %543 = vmatpush.msra.mxu0 %v497
        %544 = vmatpush.msra.mxu0 %v496
        %545 = vmatpush.msra.mxu0 %v495
        %546 = vmatpush.msra.mxu0 %v494
        %547 = vmatpush.msra.mxu0 %v493
        %548 = vmatpush.msra.mxu0 %v492
        %549 = vmatpush.msra.mxu0 %v491
        %550 = vmatpush.msra.mxu0 %v490
        %551 = vmatpush.msra.mxu0 %v489
        %552 = vmatpush.msra.mxu0 %v488
        %553 = vmatpush.msra.mxu0 %v487
        %554 = vmatpush.msra.mxu0 %v486
        %555 = vmatpush.msra.mxu0 %v485
        %556 = vmatpush.msra.mxu0 %v484
        %557 = vmatpush.msra.mxu0 %v483
        %558 = vmatpush.msra.mxu0 %v482
        %559 = vmatmul.f32.gmra.mxu0 %v479
        %v560 = vpop.f32.mrf.mxu0
        %v561 = vadd.f32 %v535, %v560
        %562 = vmatmul.f32.gmra.mxu0 %v480
        %v563 = vpop.f32.mrf.mxu0
        %v564 = vadd.f32 %v538, %v563
        %565 = vmatmul.f32.gmra.mxu0 %v481
        %v566 = vpop.f32.mrf.mxu0
        %v567 = vadd.f32 %v541, %v566
        %568 = vdwg.mxu0
        %v569 = vld [vmem:[#allocation4 + $0x1] sm:$0xff]
        %v570 = vld [vmem:[#allocation4 + $0x9] sm:$0xff]
        %v571 = vld [vmem:[#allocation4 + $0x11] sm:$0xff]
        %s572 = scalar_lea.vmem %s3, 128
        %v573 = vld [vmem:[%s572] sm:$0xff]
        %v574 = vld [vmem:[%s572 + $0x8] sm:$0xff]
        %v575 = vld [vmem:[%s572 + $0x10] sm:$0xff]
        %v576 = vld [vmem:[%s572 + $0x18] sm:$0xff]
        %v577 = vld [vmem:[%s572 + $0x20] sm:$0xff]
        %v578 = vld [vmem:[%s572 + $0x28] sm:$0xff]
        %v579 = vld [vmem:[%s572 + $0x30] sm:$0xff]
        %v580 = vld [vmem:[%s572 + $0x38] sm:$0xff]
        %v581 = vld [vmem:[%s572 + $0x40] sm:$0xff]
        %v582 = vld [vmem:[%s572 + $0x48] sm:$0xff]
        %v583 = vld [vmem:[%s572 + $0x50] sm:$0xff]
        %v584 = vld [vmem:[%s572 + $0x58] sm:$0xff]
        %v585 = vld [vmem:[%s572 + $0x60] sm:$0xff]
        %v586 = vld [vmem:[%s572 + $0x68] sm:$0xff]
        %v587 = vld [vmem:[%s572 + $0x70] sm:$0xff]
        %v588 = vld [vmem:[%s572 + $0x78] sm:$0xff]
        %v589 = vld [vmem:[%s369 + $0x1] sm:$0xff]
        %v590 = vld [vmem:[%s369 + $0x9] sm:$0xff]
        %v591 = vld [vmem:[%s369 + $0x11] sm:$0xff]
        %s592 = scalar_lea.vmem [#allocation9], 128
        %v593 = vld [vmem:[%s592] sm:$0xff]
        %v594 = vld [vmem:[%s592 + $0x8] sm:$0xff]
        %v595 = vld [vmem:[%s592 + $0x10] sm:$0xff]
        %v596 = vld [vmem:[%s592 + $0x18] sm:$0xff]
        %v597 = vld [vmem:[%s592 + $0x20] sm:$0xff]
        %v598 = vld [vmem:[%s592 + $0x28] sm:$0xff]
        %v599 = vld [vmem:[%s592 + $0x30] sm:$0xff]
        %v600 = vld [vmem:[%s592 + $0x38] sm:$0xff]
        %v601 = vld [vmem:[%s592 + $0x40] sm:$0xff]
        %v602 = vld [vmem:[%s592 + $0x48] sm:$0xff]
        %v603 = vld [vmem:[%s592 + $0x50] sm:$0xff]
        %v604 = vld [vmem:[%s592 + $0x58] sm:$0xff]
        %v605 = vld [vmem:[%s592 + $0x60] sm:$0xff]
        %v606 = vld [vmem:[%s592 + $0x68] sm:$0xff]
        %v607 = vld [vmem:[%s592 + $0x70] sm:$0xff]
        %v608 = vld [vmem:[%s592 + $0x78] sm:$0xff]
        %609 = vmatpush.msra.mxu0 %v608
        %610 = vmatpush.msra.mxu0 %v607
        %611 = vmatpush.msra.mxu0 %v606
        %612 = vmatpush.msra.mxu0 %v605
        %613 = vmatpush.msra.mxu0 %v604
        %614 = vmatpush.msra.mxu0 %v603
        %615 = vmatpush.msra.mxu0 %v602
        %616 = vmatpush.msra.mxu0 %v601
        %617 = vmatpush.msra.mxu0 %v600
        %618 = vmatpush.msra.mxu0 %v599
        %619 = vmatpush.msra.mxu0 %v598
        %620 = vmatpush.msra.mxu0 %v597
        %621 = vmatpush.msra.mxu0 %v596
        %622 = vmatpush.msra.mxu0 %v595
        %623 = vmatpush.msra.mxu0 %v594
        %624 = vmatpush.msra.mxu0 %v593
        %625 = vmatmul.f32.gmra.mxu0 %v589
        %v626 = vpop.f32.mrf.mxu0
        %v627 = vadd.f32 0.0, %v626
        %628 = vmatmul.f32.gmra.mxu0 %v590
        %v629 = vpop.f32.mrf.mxu0
        %v630 = vadd.f32 0.0, %v629
        %631 = vmatmul.f32.gmra.mxu0 %v591
        %v632 = vpop.f32.mrf.mxu0
        %v633 = vadd.f32 0.0, %v632
        %634 = vdwg.mxu0
        %635 = vmatpush.msra.mxu0 %v588
        %636 = vmatpush.msra.mxu0 %v587
        %637 = vmatpush.msra.mxu0 %v586
        %638 = vmatpush.msra.mxu0 %v585
        %639 = vmatpush.msra.mxu0 %v584
        %640 = vmatpush.msra.mxu0 %v583
        %641 = vmatpush.msra.mxu0 %v582
        %642 = vmatpush.msra.mxu0 %v581
        %643 = vmatpush.msra.mxu0 %v580
        %644 = vmatpush.msra.mxu0 %v579
        %645 = vmatpush.msra.mxu0 %v578
        %646 = vmatpush.msra.mxu0 %v577
        %647 = vmatpush.msra.mxu0 %v576
        %648 = vmatpush.msra.mxu0 %v575
        %649 = vmatpush.msra.mxu0 %v574
        %650 = vmatpush.msra.mxu0 %v573
        %651 = vmatmul.f32.gmra.mxu0 %v569
        %v652 = vpop.f32.mrf.mxu0
        %v653 = vadd.f32 %v627, %v652
        %654 = vmatmul.f32.gmra.mxu0 %v570
        %v655 = vpop.f32.mrf.mxu0
        %v656 = vadd.f32 %v630, %v655
        %657 = vmatmul.f32.gmra.mxu0 %v571
        %v658 = vpop.f32.mrf.mxu0
        %v659 = vadd.f32 %v633, %v658
        %660 = vdwg.mxu0
        %v661 = vadd.f32 %v561, %v653
        %v662 = vadd.f32 %v564, %v656
        %v663 = vadd.f32 %v567, %v659
        %v664 = vld [vmem:[#allocation4 + $0x4] sm:$0xff]
        %v665 = vld [vmem:[#allocation4 + $0xc] sm:$0xff]
        %v666 = vld [vmem:[#allocation4 + $0x14] sm:$0xff]
        %s667 = scalar_lea.vmem %s3, 256
        %v668 = vld [vmem:[%s667] sm:$0xff]
        %v669 = vld [vmem:[%s667 + $0x8] sm:$0xff]
        %v670 = vld [vmem:[%s667 + $0x10] sm:$0xff]
        %v671 = vld [vmem:[%s667 + $0x18] sm:$0xff]
        %v672 = vld [vmem:[%s667 + $0x20] sm:$0xff]
        %v673 = vld [vmem:[%s667 + $0x28] sm:$0xff]
        %v674 = vld [vmem:[%s667 + $0x30] sm:$0xff]
        %v675 = vld [vmem:[%s667 + $0x38] sm:$0xff]
        %v676 = vld [vmem:[%s667 + $0x40] sm:$0xff]
        %v677 = vld [vmem:[%s667 + $0x48] sm:$0xff]
        %v678 = vld [vmem:[%s667 + $0x50] sm:$0xff]
        %v679 = vld [vmem:[%s667 + $0x58] sm:$0xff]
        %v680 = vld [vmem:[%s667 + $0x60] sm:$0xff]
        %v681 = vld [vmem:[%s667 + $0x68] sm:$0xff]
        %v682 = vld [vmem:[%s667 + $0x70] sm:$0xff]
        %v683 = vld [vmem:[%s667 + $0x78] sm:$0xff]
        %v684 = vld [vmem:[%s369 + $0x4] sm:$0xff]
        %v685 = vld [vmem:[%s369 + $0xc] sm:$0xff]
        %v686 = vld [vmem:[%s369 + $0x14] sm:$0xff]
        %s687 = scalar_lea.vmem [#allocation9], 256
        %v688 = vld [vmem:[%s687] sm:$0xff]
        %v689 = vld [vmem:[%s687 + $0x8] sm:$0xff]
        %v690 = vld [vmem:[%s687 + $0x10] sm:$0xff]
        %v691 = vld [vmem:[%s687 + $0x18] sm:$0xff]
        %v692 = vld [vmem:[%s687 + $0x20] sm:$0xff]
        %v693 = vld [vmem:[%s687 + $0x28] sm:$0xff]
        %v694 = vld [vmem:[%s687 + $0x30] sm:$0xff]
        %v695 = vld [vmem:[%s687 + $0x38] sm:$0xff]
        %v696 = vld [vmem:[%s687 + $0x40] sm:$0xff]
        %v697 = vld [vmem:[%s687 + $0x48] sm:$0xff]
        %v698 = vld [vmem:[%s687 + $0x50] sm:$0xff]
        %v699 = vld [vmem:[%s687 + $0x58] sm:$0xff]
        %v700 = vld [vmem:[%s687 + $0x60] sm:$0xff]
        %v701 = vld [vmem:[%s687 + $0x68] sm:$0xff]
        %v702 = vld [vmem:[%s687 + $0x70] sm:$0xff]
        %v703 = vld [vmem:[%s687 + $0x78] sm:$0xff]
        %704 = vmatpush.msra.mxu0 %v703
        %705 = vmatpush.msra.mxu0 %v702
        %706 = vmatpush.msra.mxu0 %v701
        %707 = vmatpush.msra.mxu0 %v700
        %708 = vmatpush.msra.mxu0 %v699
        %709 = vmatpush.msra.mxu0 %v698
        %710 = vmatpush.msra.mxu0 %v697
        %711 = vmatpush.msra.mxu0 %v696
        %712 = vmatpush.msra.mxu0 %v695
        %713 = vmatpush.msra.mxu0 %v694
        %714 = vmatpush.msra.mxu0 %v693
        %715 = vmatpush.msra.mxu0 %v692
        %716 = vmatpush.msra.mxu0 %v691
        %717 = vmatpush.msra.mxu0 %v690
        %718 = vmatpush.msra.mxu0 %v689
        %719 = vmatpush.msra.mxu0 %v688
        %720 = vmatmul.f32.gmra.mxu0 %v684
        %v721 = vpop.f32.mrf.mxu0
        %v722 = vadd.f32 0.0, %v721
        %723 = vmatmul.f32.gmra.mxu0 %v685
        %v724 = vpop.f32.mrf.mxu0
        %v725 = vadd.f32 0.0, %v724
        %726 = vmatmul.f32.gmra.mxu0 %v686
        %v727 = vpop.f32.mrf.mxu0
        %v728 = vadd.f32 0.0, %v727
        %729 = vdwg.mxu0
        %730 = vmatpush.msra.mxu0 %v683
        %731 = vmatpush.msra.mxu0 %v682
        %732 = vmatpush.msra.mxu0 %v681
        %733 = vmatpush.msra.mxu0 %v680
        %734 = vmatpush.msra.mxu0 %v679
        %735 = vmatpush.msra.mxu0 %v678
        %736 = vmatpush.msra.mxu0 %v677
        %737 = vmatpush.msra.mxu0 %v676
        %738 = vmatpush.msra.mxu0 %v675
        %739 = vmatpush.msra.mxu0 %v674
        %740 = vmatpush.msra.mxu0 %v673
        %741 = vmatpush.msra.mxu0 %v672
        %742 = vmatpush.msra.mxu0 %v671
        %743 = vmatpush.msra.mxu0 %v670
        %744 = vmatpush.msra.mxu0 %v669
        %745 = vmatpush.msra.mxu0 %v668
        %746 = vmatmul.f32.gmra.mxu0 %v664
        %v747 = vpop.f32.mrf.mxu0
        %v748 = vadd.f32 %v722, %v747
        %749 = vmatmul.f32.gmra.mxu0 %v665
        %v750 = vpop.f32.mrf.mxu0
        %v751 = vadd.f32 %v725, %v750
        %752 = vmatmul.f32.gmra.mxu0 %v666
        %v753 = vpop.f32.mrf.mxu0
        %v754 = vadd.f32 %v728, %v753
        %755 = vdwg.mxu0
        %v756 = vadd.f32 %v661, %v748
        %v757 = vadd.f32 %v662, %v751
        %v758 = vadd.f32 %v663, %v754
        %v759 = vld [vmem:[#allocation4 + $0x5] sm:$0xff]
        %v760 = vld [vmem:[#allocation4 + $0xd] sm:$0xff]
        %v761 = vld [vmem:[#allocation4 + $0x15] sm:$0xff]
        %s762 = scalar_lea.vmem %s3, 384
        %v763 = vld [vmem:[%s762] sm:$0xff]
        %v764 = vld [vmem:[%s762 + $0x8] sm:$0xff]
        %v765 = vld [vmem:[%s762 + $0x10] sm:$0xff]
        %v766 = vld [vmem:[%s762 + $0x18] sm:$0xff]
        %v767 = vld [vmem:[%s762 + $0x20] sm:$0xff]
        %v768 = vld [vmem:[%s762 + $0x28] sm:$0xff]
        %v769 = vld [vmem:[%s762 + $0x30] sm:$0xff]
        %v770 = vld [vmem:[%s762 + $0x38] sm:$0xff]
        %v771 = vld [vmem:[%s762 + $0x40] sm:$0xff]
        %v772 = vld [vmem:[%s762 + $0x48] sm:$0xff]
        %v773 = vld [vmem:[%s762 + $0x50] sm:$0xff]
        %v774 = vld [vmem:[%s762 + $0x58] sm:$0xff]
        %v775 = vld [vmem:[%s762 + $0x60] sm:$0xff]
        %v776 = vld [vmem:[%s762 + $0x68] sm:$0xff]
        %v777 = vld [vmem:[%s762 + $0x70] sm:$0xff]
        %v778 = vld [vmem:[%s762 + $0x78] sm:$0xff]
        %v779 = vld [vmem:[%s369 + $0x5] sm:$0xff]
        %v780 = vld [vmem:[%s369 + $0xd] sm:$0xff]
        %v781 = vld [vmem:[%s369 + $0x15] sm:$0xff]
        %s782 = scalar_lea.vmem [#allocation9], 384
        %v783 = vld [vmem:[%s782] sm:$0xff]
        %v784 = vld [vmem:[%s782 + $0x8] sm:$0xff]
        %v785 = vld [vmem:[%s782 + $0x10] sm:$0xff]
        %v786 = vld [vmem:[%s782 + $0x18] sm:$0xff]
        %v787 = vld [vmem:[%s782 + $0x20] sm:$0xff]
        %v788 = vld [vmem:[%s782 + $0x28] sm:$0xff]
        %v789 = vld [vmem:[%s782 + $0x30] sm:$0xff]
        %v790 = vld [vmem:[%s782 + $0x38] sm:$0xff]
        %v791 = vld [vmem:[%s782 + $0x40] sm:$0xff]
        %v792 = vld [vmem:[%s782 + $0x48] sm:$0xff]
        %v793 = vld [vmem:[%s782 + $0x50] sm:$0xff]
        %v794 = vld [vmem:[%s782 + $0x58] sm:$0xff]
        %v795 = vld [vmem:[%s782 + $0x60] sm:$0xff]
        %v796 = vld [vmem:[%s782 + $0x68] sm:$0xff]
        %v797 = vld [vmem:[%s782 + $0x70] sm:$0xff]
        %v798 = vld [vmem:[%s782 + $0x78] sm:$0xff]
        %799 = vmatpush.msra.mxu0 %v798
        %800 = vmatpush.msra.mxu0 %v797
        %801 = vmatpush.msra.mxu0 %v796
        %802 = vmatpush.msra.mxu0 %v795
        %803 = vmatpush.msra.mxu0 %v794
        %804 = vmatpush.msra.mxu0 %v793
        %805 = vmatpush.msra.mxu0 %v792
        %806 = vmatpush.msra.mxu0 %v791
        %807 = vmatpush.msra.mxu0 %v790
        %808 = vmatpush.msra.mxu0 %v789
        %809 = vmatpush.msra.mxu0 %v788
        %810 = vmatpush.msra.mxu0 %v787
        %811 = vmatpush.msra.mxu0 %v786
        %812 = vmatpush.msra.mxu0 %v785
        %813 = vmatpush.msra.mxu0 %v784
        %814 = vmatpush.msra.mxu0 %v783
        %815 = vmatmul.f32.gmra.mxu0 %v779
        %v816 = vpop.f32.mrf.mxu0
        %v817 = vadd.f32 0.0, %v816
        %818 = vmatmul.f32.gmra.mxu0 %v780
        %v819 = vpop.f32.mrf.mxu0
        %v820 = vadd.f32 0.0, %v819
        %821 = vmatmul.f32.gmra.mxu0 %v781
        %v822 = vpop.f32.mrf.mxu0
        %v823 = vadd.f32 0.0, %v822
        %824 = vdwg.mxu0
        %825 = vmatpush.msra.mxu0 %v778
        %826 = vmatpush.msra.mxu0 %v777
        %827 = vmatpush.msra.mxu0 %v776
        %828 = vmatpush.msra.mxu0 %v775
        %829 = vmatpush.msra.mxu0 %v774
        %830 = vmatpush.msra.mxu0 %v773
        %831 = vmatpush.msra.mxu0 %v772
        %832 = vmatpush.msra.mxu0 %v771
        %833 = vmatpush.msra.mxu0 %v770
        %834 = vmatpush.msra.mxu0 %v769
        %835 = vmatpush.msra.mxu0 %v768
        %836 = vmatpush.msra.mxu0 %v767
        %837 = vmatpush.msra.mxu0 %v766
        %838 = vmatpush.msra.mxu0 %v765
        %839 = vmatpush.msra.mxu0 %v764
        %840 = vmatpush.msra.mxu0 %v763
        %841 = vmatmul.f32.gmra.mxu0 %v759
        %v842 = vpop.f32.mrf.mxu0
        %v843 = vadd.f32 %v817, %v842
        %844 = vmatmul.f32.gmra.mxu0 %v760
        %v845 = vpop.f32.mrf.mxu0
        %v846 = vadd.f32 %v820, %v845
        %847 = vmatmul.f32.gmra.mxu0 %v761
        %v848 = vpop.f32.mrf.mxu0
        %v849 = vadd.f32 %v823, %v848
        %850 = vdwg.mxu0
        %v851 = vadd.f32 %v756, %v843
        %v852 = vadd.f32 %v757, %v846
        %v853 = vadd.f32 %v758, %v849
        %v854 = vld [vmem:[#allocation4 + $0x8] sm:$0xff]
        %v855 = vld [vmem:[#allocation4 + $0x10] sm:$0xff]
        %v856 = vld [vmem:[#allocation4 + $0x18] sm:$0xff]
        %s857 = scalar_lea.vmem %s3, 512
        %v858 = vld [vmem:[%s857] sm:$0xff]
        %v859 = vld [vmem:[%s857 + $0x8] sm:$0xff]
        %v860 = vld [vmem:[%s857 + $0x10] sm:$0xff]
        %v861 = vld [vmem:[%s857 + $0x18] sm:$0xff]
        %v862 = vld [vmem:[%s857 + $0x20] sm:$0xff]
        %v863 = vld [vmem:[%s857 + $0x28] sm:$0xff]
        %v864 = vld [vmem:[%s857 + $0x30] sm:$0xff]
        %v865 = vld [vmem:[%s857 + $0x38] sm:$0xff]
        %v866 = vld [vmem:[%s857 + $0x40] sm:$0xff]
        %v867 = vld [vmem:[%s857 + $0x48] sm:$0xff]
        %v868 = vld [vmem:[%s857 + $0x50] sm:$0xff]
        %v869 = vld [vmem:[%s857 + $0x58] sm:$0xff]
        %v870 = vld [vmem:[%s857 + $0x60] sm:$0xff]
        %v871 = vld [vmem:[%s857 + $0x68] sm:$0xff]
        %v872 = vld [vmem:[%s857 + $0x70] sm:$0xff]
        %v873 = vld [vmem:[%s857 + $0x78] sm:$0xff]
        %v874 = vld [vmem:[%s369 + $0x8] sm:$0xff]
        %v875 = vld [vmem:[%s369 + $0x10] sm:$0xff]
        %v876 = vld [vmem:[%s369 + $0x18] sm:$0xff]
        %s877 = scalar_lea.vmem [#allocation9], 512
        %v878 = vld [vmem:[%s877] sm:$0xff]
        %v879 = vld [vmem:[%s877 + $0x8] sm:$0xff]
        %v880 = vld [vmem:[%s877 + $0x10] sm:$0xff]
        %v881 = vld [vmem:[%s877 + $0x18] sm:$0xff]
        %v882 = vld [vmem:[%s877 + $0x20] sm:$0xff]
        %v883 = vld [vmem:[%s877 + $0x28] sm:$0xff]
        %v884 = vld [vmem:[%s877 + $0x30] sm:$0xff]
        %v885 = vld [vmem:[%s877 + $0x38] sm:$0xff]
        %v886 = vld [vmem:[%s877 + $0x40] sm:$0xff]
        %v887 = vld [vmem:[%s877 + $0x48] sm:$0xff]
        %v888 = vld [vmem:[%s877 + $0x50] sm:$0xff]
        %v889 = vld [vmem:[%s877 + $0x58] sm:$0xff]
        %v890 = vld [vmem:[%s877 + $0x60] sm:$0xff]
        %v891 = vld [vmem:[%s877 + $0x68] sm:$0xff]
        %v892 = vld [vmem:[%s877 + $0x70] sm:$0xff]
        %v893 = vld [vmem:[%s877 + $0x78] sm:$0xff]
        %894 = vmatpush.msra.mxu0 %v893
        %895 = vmatpush.msra.mxu0 %v892
        %896 = vmatpush.msra.mxu0 %v891
        %897 = vmatpush.msra.mxu0 %v890
        %898 = vmatpush.msra.mxu0 %v889
        %899 = vmatpush.msra.mxu0 %v888
        %900 = vmatpush.msra.mxu0 %v887
        %901 = vmatpush.msra.mxu0 %v886
        %902 = vmatpush.msra.mxu0 %v885
        %903 = vmatpush.msra.mxu0 %v884
        %904 = vmatpush.msra.mxu0 %v883
        %905 = vmatpush.msra.mxu0 %v882
        %906 = vmatpush.msra.mxu0 %v881
        %907 = vmatpush.msra.mxu0 %v880
        %908 = vmatpush.msra.mxu0 %v879
        %909 = vmatpush.msra.mxu0 %v878
        %910 = vmatmul.f32.gmra.mxu0 %v874
        %v911 = vpop.f32.mrf.mxu0
        %v912 = vadd.f32 0.0, %v911
        %913 = vmatmul.f32.gmra.mxu0 %v875
        %v914 = vpop.f32.mrf.mxu0
        %v915 = vadd.f32 0.0, %v914
        %916 = vmatmul.f32.gmra.mxu0 %v876
        %v917 = vpop.f32.mrf.mxu0
        %v918 = vadd.f32 0.0, %v917
        %919 = vdwg.mxu0
        %920 = vmatpush.msra.mxu0 %v873
        %921 = vmatpush.msra.mxu0 %v872
        %922 = vmatpush.msra.mxu0 %v871
        %923 = vmatpush.msra.mxu0 %v870
        %924 = vmatpush.msra.mxu0 %v869
        %925 = vmatpush.msra.mxu0 %v868
        %926 = vmatpush.msra.mxu0 %v867
        %927 = vmatpush.msra.mxu0 %v866
        %928 = vmatpush.msra.mxu0 %v865
        %929 = vmatpush.msra.mxu0 %v864
        %930 = vmatpush.msra.mxu0 %v863
        %931 = vmatpush.msra.mxu0 %v862
        %932 = vmatpush.msra.mxu0 %v861
        %933 = vmatpush.msra.mxu0 %v860
        %934 = vmatpush.msra.mxu0 %v859
        %935 = vmatpush.msra.mxu0 %v858
        %936 = vmatmul.f32.gmra.mxu0 %v854
        %v937 = vpop.f32.mrf.mxu0
        %v938 = vadd.f32 %v912, %v937
        %939 = vmatmul.f32.gmra.mxu0 %v855
        %v940 = vpop.f32.mrf.mxu0
        %v941 = vadd.f32 %v915, %v940
        %942 = vmatmul.f32.gmra.mxu0 %v856
        %v943 = vpop.f32.mrf.mxu0
        %v944 = vadd.f32 %v918, %v943
        %945 = vdwg.mxu0
        %v946 = vadd.f32 %v851, %v938
        %v947 = vadd.f32 %v852, %v941
        %v948 = vadd.f32 %v853, %v944
        %v949 = vld [vmem:[#allocation4 + $0x9] sm:$0xff]
        %v950 = vld [vmem:[#allocation4 + $0x11] sm:$0xff]
        %v951 = vld [vmem:[#allocation4 + $0x19] sm:$0xff]
        %s952 = scalar_lea.vmem %s3, 640
        %v953 = vld [vmem:[%s952] sm:$0xff]
        %v954 = vld [vmem:[%s952 + $0x8] sm:$0xff]
        %v955 = vld [vmem:[%s952 + $0x10] sm:$0xff]
        %v956 = vld [vmem:[%s952 + $0x18] sm:$0xff]
        %v957 = vld [vmem:[%s952 + $0x20] sm:$0xff]
        %v958 = vld [vmem:[%s952 + $0x28] sm:$0xff]
        %v959 = vld [vmem:[%s952 + $0x30] sm:$0xff]
        %v960 = vld [vmem:[%s952 + $0x38] sm:$0xff]
        %v961 = vld [vmem:[%s952 + $0x40] sm:$0xff]
        %v962 = vld [vmem:[%s952 + $0x48] sm:$0xff]
        %v963 = vld [vmem:[%s952 + $0x50] sm:$0xff]
        %v964 = vld [vmem:[%s952 + $0x58] sm:$0xff]
        %v965 = vld [vmem:[%s952 + $0x60] sm:$0xff]
        %v966 = vld [vmem:[%s952 + $0x68] sm:$0xff]
        %v967 = vld [vmem:[%s952 + $0x70] sm:$0xff]
        %v968 = vld [vmem:[%s952 + $0x78] sm:$0xff]
        %v969 = vld [vmem:[%s369 + $0x9] sm:$0xff]
        %v970 = vld [vmem:[%s369 + $0x11] sm:$0xff]
        %v971 = vld [vmem:[%s369 + $0x19] sm:$0xff]
        %s972 = scalar_lea.vmem [#allocation9], 640
        %v973 = vld [vmem:[%s972] sm:$0xff]
        %v974 = vld [vmem:[%s972 + $0x8] sm:$0xff]
        %v975 = vld [vmem:[%s972 + $0x10] sm:$0xff]
        %v976 = vld [vmem:[%s972 + $0x18] sm:$0xff]
        %v977 = vld [vmem:[%s972 + $0x20] sm:$0xff]
        %v978 = vld [vmem:[%s972 + $0x28] sm:$0xff]
        %v979 = vld [vmem:[%s972 + $0x30] sm:$0xff]
        %v980 = vld [vmem:[%s972 + $0x38] sm:$0xff]
        %v981 = vld [vmem:[%s972 + $0x40] sm:$0xff]
        %v982 = vld [vmem:[%s972 + $0x48] sm:$0xff]
        %v983 = vld [vmem:[%s972 + $0x50] sm:$0xff]
        %v984 = vld [vmem:[%s972 + $0x58] sm:$0xff]
        %v985 = vld [vmem:[%s972 + $0x60] sm:$0xff]
        %v986 = vld [vmem:[%s972 + $0x68] sm:$0xff]
        %v987 = vld [vmem:[%s972 + $0x70] sm:$0xff]
        %v988 = vld [vmem:[%s972 + $0x78] sm:$0xff]
        %989 = vmatpush.msra.mxu0 %v988
        %990 = vmatpush.msra.mxu0 %v987
        %991 = vmatpush.msra.mxu0 %v986
        %992 = vmatpush.msra.mxu0 %v985
        %993 = vmatpush.msra.mxu0 %v984
        %994 = vmatpush.msra.mxu0 %v983
        %995 = vmatpush.msra.mxu0 %v982
        %996 = vmatpush.msra.mxu0 %v981
        %997 = vmatpush.msra.mxu0 %v980
        %998 = vmatpush.msra.mxu0 %v979
        %999 = vmatpush.msra.mxu0 %v978
        %1000 = vmatpush.msra.mxu0 %v977
        %1001 = vmatpush.msra.mxu0 %v976
        %1002 = vmatpush.msra.mxu0 %v975
        %1003 = vmatpush.msra.mxu0 %v974
        %1004 = vmatpush.msra.mxu0 %v973
        %1005 = vmatmul.f32.gmra.mxu0 %v969
        %v1006 = vpop.f32.mrf.mxu0
        %v1007 = vadd.f32 0.0, %v1006
        %1008 = vmatmul.f32.gmra.mxu0 %v970
        %v1009 = vpop.f32.mrf.mxu0
        %v1010 = vadd.f32 0.0, %v1009
        %1011 = vmatmul.f32.gmra.mxu0 %v971
        %v1012 = vpop.f32.mrf.mxu0
        %v1013 = vadd.f32 0.0, %v1012
        %1014 = vdwg.mxu0
        %1015 = vmatpush.msra.mxu0 %v968
        %1016 = vmatpush.msra.mxu0 %v967
        %1017 = vmatpush.msra.mxu0 %v966
        %1018 = vmatpush.msra.mxu0 %v965
        %1019 = vmatpush.msra.mxu0 %v964
        %1020 = vmatpush.msra.mxu0 %v963
        %1021 = vmatpush.msra.mxu0 %v962
        %1022 = vmatpush.msra.mxu0 %v961
        %1023 = vmatpush.msra.mxu0 %v960
        %1024 = vmatpush.msra.mxu0 %v959
        %1025 = vmatpush.msra.mxu0 %v958
        %1026 = vmatpush.msra.mxu0 %v957
        %1027 = vmatpush.msra.mxu0 %v956
        %1028 = vmatpush.msra.mxu0 %v955
        %1029 = vmatpush.msra.mxu0 %v954
        %1030 = vmatpush.msra.mxu0 %v953
        %1031 = vmatmul.f32.gmra.mxu0 %v949
        %v1032 = vpop.f32.mrf.mxu0
        %v1033 = vadd.f32 %v1007, %v1032
        %1034 = vmatmul.f32.gmra.mxu0 %v950
        %v1035 = vpop.f32.mrf.mxu0
        %v1036 = vadd.f32 %v1010, %v1035
        %1037 = vmatmul.f32.gmra.mxu0 %v951
        %v1038 = vpop.f32.mrf.mxu0
        %v1039 = vadd.f32 %v1013, %v1038
        %1040 = vdwg.mxu0
        %v1041 = vadd.f32 %v946, %v1033
        %v1042 = vadd.f32 %v947, %v1036
        %v1043 = vadd.f32 %v948, %v1039
        %v1044 = vld [vmem:[%s5] sm:$0x1]
        %v1046 = vperm.slane %v1044, 0
        %v1048 = vadd.f32 %v1041, %v1046
        %v1049 = vadd.f32 %v1042, %v1046
        %v1050 = vadd.f32 %v1043, %v1046
        %vm1051 = vcmp.ge.f32.partialorder %v1048, 0.0
        %vm1052 = vcmp.ge.f32.partialorder %v1049, 0.0
        %vm1053 = vcmp.ge.f32.partialorder %v1050, 0.0
        %v1054 = vmul.f32 %v1048, 0.01
        %v1055 = vmul.f32 %v1049, 0.01
        %v1056 = vmul.f32 %v1050, 0.01
        %v1057 = vsel %vm1051, %v1048, %v1054
        %v1058 = vsel %vm1052, %v1049, %v1055
        %v1059 = vsel %vm1053, %v1050, %v1056
        %1060 = vst [vmem:[#allocation5] sm:$0xff] %v1057
        %1061 = vst [vmem:[#allocation5 + $0x8] sm:$0xff] %v1058
        %1062 = vst [vmem:[#allocation5 + $0x10] sm:$0xff] %v1059
        %1063 = vst [vmem:[#allocation5 + $0x18] sm:$0xff] 0.0
        %v1064 = vld [vmem:[#allocation5] sm:$0xff]
        %v1065 = vld [vmem:[#allocation5 + $0x8] sm:$0xff]
        %v1066 = vld [vmem:[#allocation11] sm:$0xff]
        %v1067 = vld [vmem:[#allocation11 + $0x8] sm:$0xff]
        %v1068 = vld [vmem:[#allocation11 + $0x10] sm:$0xff]
        %v1069 = vld [vmem:[#allocation11 + $0x18] sm:$0xff]
        %v1070 = vld [vmem:[#allocation11 + $0x20] sm:$0xff]
        %v1071 = vld [vmem:[#allocation11 + $0x28] sm:$0xff]
        %v1072 = vld [vmem:[#allocation11 + $0x30] sm:$0xff]
        %v1073 = vld [vmem:[#allocation11 + $0x38] sm:$0xff]
        %v1074 = vld [vmem:[#allocation11 + $0x40] sm:$0xff]
        %v1075 = vld [vmem:[#allocation11 + $0x48] sm:$0xff]
        %v1076 = vld [vmem:[#allocation11 + $0x50] sm:$0xff]
        %v1077 = vld [vmem:[#allocation11 + $0x58] sm:$0xff]
        %v1078 = vld [vmem:[#allocation11 + $0x60] sm:$0xff]
        %v1079 = vld [vmem:[#allocation11 + $0x68] sm:$0xff]
        %v1080 = vld [vmem:[#allocation11 + $0x70] sm:$0xff]
        %v1081 = vld [vmem:[#allocation11 + $0x78] sm:$0xff]
        %v1082 = vld [vmem:[#allocation5 + $0x1] sm:$0xff]
        %v1083 = vld [vmem:[#allocation5 + $0x9] sm:$0xff]
        %s1084 = scalar_lea.vmem [#allocation11], 128
        %v1085 = vld [vmem:[%s1084] sm:$0xff]
        %v1086 = vld [vmem:[%s1084 + $0x8] sm:$0xff]
        %v1087 = vld [vmem:[%s1084 + $0x10] sm:$0xff]
        %v1088 = vld [vmem:[%s1084 + $0x18] sm:$0xff]
        %v1089 = vld [vmem:[%s1084 + $0x20] sm:$0xff]
        %v1090 = vld [vmem:[%s1084 + $0x28] sm:$0xff]
        %v1091 = vld [vmem:[%s1084 + $0x30] sm:$0xff]
        %v1092 = vld [vmem:[%s1084 + $0x38] sm:$0xff]
        %v1093 = vld [vmem:[%s1084 + $0x40] sm:$0xff]
        %v1094 = vld [vmem:[%s1084 + $0x48] sm:$0xff]
        %v1095 = vld [vmem:[%s1084 + $0x50] sm:$0xff]
        %v1096 = vld [vmem:[%s1084 + $0x58] sm:$0xff]
        %v1097 = vld [vmem:[%s1084 + $0x60] sm:$0xff]
        %v1098 = vld [vmem:[%s1084 + $0x68] sm:$0xff]
        %v1099 = vld [vmem:[%s1084 + $0x70] sm:$0xff]
        %v1100 = vld [vmem:[%s1084 + $0x78] sm:$0xff]
        %1101 = vmatpush.msra.mxu0 %v1100
        %1102 = vmatpush.msra.mxu0 %v1099
        %1103 = vmatpush.msra.mxu0 %v1098
        %1104 = vmatpush.msra.mxu0 %v1097
        %1105 = vmatpush.msra.mxu0 %v1096
        %1106 = vmatpush.msra.mxu0 %v1095
        %1107 = vmatpush.msra.mxu0 %v1094
        %1108 = vmatpush.msra.mxu0 %v1093
        %1109 = vmatpush.msra.mxu0 %v1092
        %1110 = vmatpush.msra.mxu0 %v1091
        %1111 = vmatpush.msra.mxu0 %v1090
        %1112 = vmatpush.msra.mxu0 %v1089
        %1113 = vmatpush.msra.mxu0 %v1088
        %1114 = vmatpush.msra.mxu0 %v1087
        %1115 = vmatpush.msra.mxu0 %v1086
        %1116 = vmatpush.msra.mxu0 %v1085
        %1117 = vmatmul.f32.gmra.mxu0 %v1082
        %v1118 = vpop.f32.mrf.mxu0
        %v1119 = vadd.f32 0.0, %v1118
        %1120 = vmatmul.f32.gmra.mxu0 %v1083
        %v1121 = vpop.f32.mrf.mxu0
        %v1122 = vadd.f32 0.0, %v1121
        %1123 = vdwg.mxu0
        %1124 = vmatpush.msra.mxu0 %v1081
        %1125 = vmatpush.msra.mxu0 %v1080
        %1126 = vmatpush.msra.mxu0 %v1079
        %1127 = vmatpush.msra.mxu0 %v1078
        %1128 = vmatpush.msra.mxu0 %v1077
        %1129 = vmatpush.msra.mxu0 %v1076
        %1130 = vmatpush.msra.mxu0 %v1075
        %1131 = vmatpush.msra.mxu0 %v1074
        %1132 = vmatpush.msra.mxu0 %v1073
        %1133 = vmatpush.msra.mxu0 %v1072
        %1134 = vmatpush.msra.mxu0 %v1071
        %1135 = vmatpush.msra.mxu0 %v1070
        %1136 = vmatpush.msra.mxu0 %v1069
        %1137 = vmatpush.msra.mxu0 %v1068
        %1138 = vmatpush.msra.mxu0 %v1067
        %1139 = vmatpush.msra.mxu0 %v1066
        %1140 = vmatmul.f32.gmra.mxu0 %v1064
        %v1141 = vpop.f32.mrf.mxu0
        %v1142 = vadd.f32 %v1119, %v1141
        %1143 = vmatmul.f32.gmra.mxu0 %v1065
        %v1144 = vpop.f32.mrf.mxu0
        %v1145 = vadd.f32 %v1122, %v1144
        %1146 = vdwg.mxu0
        %v1147 = vld [vmem:[#allocation5 + $0x4] sm:$0xff]
        %v1148 = vld [vmem:[#allocation5 + $0xc] sm:$0xff]
        %s1149 = scalar_lea.vmem [#allocation11], 256
        %v1150 = vld [vmem:[%s1149] sm:$0xff]
        %v1151 = vld [vmem:[%s1149 + $0x8] sm:$0xff]
        %v1152 = vld [vmem:[%s1149 + $0x10] sm:$0xff]
        %v1153 = vld [vmem:[%s1149 + $0x18] sm:$0xff]
        %v1154 = vld [vmem:[%s1149 + $0x20] sm:$0xff]
        %v1155 = vld [vmem:[%s1149 + $0x28] sm:$0xff]
        %v1156 = vld [vmem:[%s1149 + $0x30] sm:$0xff]
        %v1157 = vld [vmem:[%s1149 + $0x38] sm:$0xff]
        %v1158 = vld [vmem:[%s1149 + $0x40] sm:$0xff]
        %v1159 = vld [vmem:[%s1149 + $0x48] sm:$0xff]
        %v1160 = vld [vmem:[%s1149 + $0x50] sm:$0xff]
        %v1161 = vld [vmem:[%s1149 + $0x58] sm:$0xff]
        %v1162 = vld [vmem:[%s1149 + $0x60] sm:$0xff]
        %v1163 = vld [vmem:[%s1149 + $0x68] sm:$0xff]
        %v1164 = vld [vmem:[%s1149 + $0x70] sm:$0xff]
        %v1165 = vld [vmem:[%s1149 + $0x78] sm:$0xff]
        %1166 = vmatpush.msra.mxu0 %v1165
        %1167 = vmatpush.msra.mxu0 %v1164
        %1168 = vmatpush.msra.mxu0 %v1163
        %1169 = vmatpush.msra.mxu0 %v1162
        %1170 = vmatpush.msra.mxu0 %v1161
        %1171 = vmatpush.msra.mxu0 %v1160
        %1172 = vmatpush.msra.mxu0 %v1159
        %1173 = vmatpush.msra.mxu0 %v1158
        %1174 = vmatpush.msra.mxu0 %v1157
        %1175 = vmatpush.msra.mxu0 %v1156
        %1176 = vmatpush.msra.mxu0 %v1155
        %1177 = vmatpush.msra.mxu0 %v1154
        %1178 = vmatpush.msra.mxu0 %v1153
        %1179 = vmatpush.msra.mxu0 %v1152
        %1180 = vmatpush.msra.mxu0 %v1151
        %1181 = vmatpush.msra.mxu0 %v1150
        %1182 = vmatmul.f32.gmra.mxu0 %v1147
        %v1183 = vpop.f32.mrf.mxu0
        %v1184 = vadd.f32 0.0, %v1183
        %1185 = vmatmul.f32.gmra.mxu0 %v1148
        %v1186 = vpop.f32.mrf.mxu0
        %v1187 = vadd.f32 0.0, %v1186
        %1188 = vdwg.mxu0
        %v1189 = vadd.f32 %v1142, %v1184
        %v1190 = vadd.f32 %v1145, %v1187
        %v1191 = vld [vmem:[#allocation5 + $0x5] sm:$0xff]
        %v1192 = vld [vmem:[#allocation5 + $0xd] sm:$0xff]
        %s1193 = scalar_lea.vmem [#allocation11], 384
        %v1194 = vld [vmem:[%s1193] sm:$0xff]
        %v1195 = vld [vmem:[%s1193 + $0x8] sm:$0xff]
        %v1196 = vld [vmem:[%s1193 + $0x10] sm:$0xff]
        %v1197 = vld [vmem:[%s1193 + $0x18] sm:$0xff]
        %v1198 = vld [vmem:[%s1193 + $0x20] sm:$0xff]
        %v1199 = vld [vmem:[%s1193 + $0x28] sm:$0xff]
        %v1200 = vld [vmem:[%s1193 + $0x30] sm:$0xff]
        %v1201 = vld [vmem:[%s1193 + $0x38] sm:$0xff]
        %v1202 = vld [vmem:[%s1193 + $0x40] sm:$0xff]
        %v1203 = vld [vmem:[%s1193 + $0x48] sm:$0xff]
        %v1204 = vld [vmem:[%s1193 + $0x50] sm:$0xff]
        %v1205 = vld [vmem:[%s1193 + $0x58] sm:$0xff]
        %v1206 = vld [vmem:[%s1193 + $0x60] sm:$0xff]
        %v1207 = vld [vmem:[%s1193 + $0x68] sm:$0xff]
        %v1208 = vld [vmem:[%s1193 + $0x70] sm:$0xff]
        %v1209 = vld [vmem:[%s1193 + $0x78] sm:$0xff]
        %1210 = vmatpush.msra.mxu0 %v1209
        %1211 = vmatpush.msra.mxu0 %v1208
        %1212 = vmatpush.msra.mxu0 %v1207
        %1213 = vmatpush.msra.mxu0 %v1206
        %1214 = vmatpush.msra.mxu0 %v1205
        %1215 = vmatpush.msra.mxu0 %v1204
        %1216 = vmatpush.msra.mxu0 %v1203
        %1217 = vmatpush.msra.mxu0 %v1202
        %1218 = vmatpush.msra.mxu0 %v1201
        %1219 = vmatpush.msra.mxu0 %v1200
        %1220 = vmatpush.msra.mxu0 %v1199
        %1221 = vmatpush.msra.mxu0 %v1198
        %1222 = vmatpush.msra.mxu0 %v1197
        %1223 = vmatpush.msra.mxu0 %v1196
        %1224 = vmatpush.msra.mxu0 %v1195
        %1225 = vmatpush.msra.mxu0 %v1194
        %1226 = vmatmul.f32.gmra.mxu0 %v1191
        %v1227 = vpop.f32.mrf.mxu0
        %v1228 = vadd.f32 0.0, %v1227
        %1229 = vmatmul.f32.gmra.mxu0 %v1192
        %v1230 = vpop.f32.mrf.mxu0
        %v1231 = vadd.f32 0.0, %v1230
        %1232 = vdwg.mxu0
        %v1233 = vadd.f32 %v1189, %v1228
        %v1234 = vadd.f32 %v1190, %v1231
        %v1235 = vld [vmem:[#allocation5 + $0x8] sm:$0xff]
        %v1236 = vld [vmem:[#allocation5 + $0x10] sm:$0xff]
        %s1237 = scalar_lea.vmem [#allocation11], 512
        %v1238 = vld [vmem:[%s1237] sm:$0xff]
        %v1239 = vld [vmem:[%s1237 + $0x8] sm:$0xff]
        %v1240 = vld [vmem:[%s1237 + $0x10] sm:$0xff]
        %v1241 = vld [vmem:[%s1237 + $0x18] sm:$0xff]
        %v1242 = vld [vmem:[%s1237 + $0x20] sm:$0xff]
        %v1243 = vld [vmem:[%s1237 + $0x28] sm:$0xff]
        %v1244 = vld [vmem:[%s1237 + $0x30] sm:$0xff]
        %v1245 = vld [vmem:[%s1237 + $0x38] sm:$0xff]
        %v1246 = vld [vmem:[%s1237 + $0x40] sm:$0xff]
        %v1247 = vld [vmem:[%s1237 + $0x48] sm:$0xff]
        %v1248 = vld [vmem:[%s1237 + $0x50] sm:$0xff]
        %v1249 = vld [vmem:[%s1237 + $0x58] sm:$0xff]
        %v1250 = vld [vmem:[%s1237 + $0x60] sm:$0xff]
        %v1251 = vld [vmem:[%s1237 + $0x68] sm:$0xff]
        %v1252 = vld [vmem:[%s1237 + $0x70] sm:$0xff]
        %v1253 = vld [vmem:[%s1237 + $0x78] sm:$0xff]
        %1254 = vmatpush.msra.mxu0 %v1253
        %1255 = vmatpush.msra.mxu0 %v1252
        %1256 = vmatpush.msra.mxu0 %v1251
        %1257 = vmatpush.msra.mxu0 %v1250
        %1258 = vmatpush.msra.mxu0 %v1249
        %1259 = vmatpush.msra.mxu0 %v1248
        %1260 = vmatpush.msra.mxu0 %v1247
        %1261 = vmatpush.msra.mxu0 %v1246
        %1262 = vmatpush.msra.mxu0 %v1245
        %1263 = vmatpush.msra.mxu0 %v1244
        %1264 = vmatpush.msra.mxu0 %v1243
        %1265 = vmatpush.msra.mxu0 %v1242
        %1266 = vmatpush.msra.mxu0 %v1241
        %1267 = vmatpush.msra.mxu0 %v1240
        %1268 = vmatpush.msra.mxu0 %v1239
        %1269 = vmatpush.msra.mxu0 %v1238
        %1270 = vmatmul.f32.gmra.mxu0 %v1235
        %v1271 = vpop.f32.mrf.mxu0
        %v1272 = vadd.f32 0.0, %v1271
        %1273 = vmatmul.f32.gmra.mxu0 %v1236
        %v1274 = vpop.f32.mrf.mxu0
        %v1275 = vadd.f32 0.0, %v1274
        %1276 = vdwg.mxu0
        %v1277 = vadd.f32 %v1233, %v1272
        %v1278 = vadd.f32 %v1234, %v1275
        %v1279 = vld [vmem:[#allocation5 + $0x9] sm:$0xff]
        %v1280 = vld [vmem:[#allocation5 + $0x11] sm:$0xff]
        %s1281 = scalar_lea.vmem [#allocation11], 640
        %v1282 = vld [vmem:[%s1281] sm:$0xff]
        %v1283 = vld [vmem:[%s1281 + $0x8] sm:$0xff]
        %v1284 = vld [vmem:[%s1281 + $0x10] sm:$0xff]
        %v1285 = vld [vmem:[%s1281 + $0x18] sm:$0xff]
        %v1286 = vld [vmem:[%s1281 + $0x20] sm:$0xff]
        %v1287 = vld [vmem:[%s1281 + $0x28] sm:$0xff]
        %v1288 = vld [vmem:[%s1281 + $0x30] sm:$0xff]
        %v1289 = vld [vmem:[%s1281 + $0x38] sm:$0xff]
        %v1290 = vld [vmem:[%s1281 + $0x40] sm:$0xff]
        %v1291 = vld [vmem:[%s1281 + $0x48] sm:$0xff]
        %v1292 = vld [vmem:[%s1281 + $0x50] sm:$0xff]
        %v1293 = vld [vmem:[%s1281 + $0x58] sm:$0xff]
        %v1294 = vld [vmem:[%s1281 + $0x60] sm:$0xff]
        %v1295 = vld [vmem:[%s1281 + $0x68] sm:$0xff]
        %v1296 = vld [vmem:[%s1281 + $0x70] sm:$0xff]
        %v1297 = vld [vmem:[%s1281 + $0x78] sm:$0xff]
        %1298 = vmatpush.msra.mxu0 %v1297
        %1299 = vmatpush.msra.mxu0 %v1296
        %1300 = vmatpush.msra.mxu0 %v1295
        %1301 = vmatpush.msra.mxu0 %v1294
        %1302 = vmatpush.msra.mxu0 %v1293
        %1303 = vmatpush.msra.mxu0 %v1292
        %1304 = vmatpush.msra.mxu0 %v1291
        %1305 = vmatpush.msra.mxu0 %v1290
        %1306 = vmatpush.msra.mxu0 %v1289
        %1307 = vmatpush.msra.mxu0 %v1288
        %1308 = vmatpush.msra.mxu0 %v1287
        %1309 = vmatpush.msra.mxu0 %v1286
        %1310 = vmatpush.msra.mxu0 %v1285
        %1311 = vmatpush.msra.mxu0 %v1284
        %1312 = vmatpush.msra.mxu0 %v1283
        %1313 = vmatpush.msra.mxu0 %v1282
        %1314 = vmatmul.f32.gmra.mxu0 %v1279
        %v1315 = vpop.f32.mrf.mxu0
        %v1316 = vadd.f32 0.0, %v1315
        %1317 = vmatmul.f32.gmra.mxu0 %v1280
        %v1318 = vpop.f32.mrf.mxu0
        %v1319 = vadd.f32 0.0, %v1318
        %1320 = vdwg.mxu0
        %v1321 = vadd.f32 %v1277, %v1316
        %v1322 = vadd.f32 %v1278, %v1319
        %v1323 = vld [vmem:[%s7] sm:$0x1]
        %v1325 = vperm.slane %v1323, 0
        %v1327 = vadd.f32 %v1321, %v1325
        %v1328 = vadd.f32 %v1322, %v1325
        %vm1329 = vcmp.ge.f32.partialorder %v1327, 0.0
        %vm1330 = vcmp.ge.f32.partialorder %v1328, 0.0
        %v1331 = vmul.f32 %v1327, 0.01
        %v1332 = vmul.f32 %v1328, 0.01
        %v1333 = vsel %vm1329, %v1327, %v1331
        %v1334 = vsel %vm1330, %v1328, %v1332
        %1335 = vst [vmem:[#allocation6] sm:$0xff] %v1333
        %1336 = vst [vmem:[#allocation6 + $0x8] sm:$0xff] %v1334
        loop: start=0, step=1, limit=4
        $region72: #{decoder_forward.3} parent=51 // loop_pre_header
          _
        $region73: #{decoder_forward.3} parent=51 // loop_header
          %s1338 = sphi 0, %s1342
          %p1339 = scmp.ge.s32.totalorder %s1338, 4
        $region74: #{decoder_forward.3} parent=51 // loop_header_branch
          %1341 = sbr.rel (%p1339) target = $region78
        $region75: #{decoder_forward.3} parent=51 // loop_body
          %s1343 = smul.u32 %s1338, 4
          %s1344 = scalar_lea.vmem [#allocation6], %s1343
          %v1345 = vld [vmem:[%s1344] sm:$0x3]
          %s1346 = smul.u32 %s1338, 2
          %s1347 = scalar_lea.vmem %s373, %s1346
          %1348 = vst [vmem:[%s1347] sm:$0x3] %v1345
        $region76: #{decoder_forward.3} parent=51 // loop_footer
          %s1342 = sadd.s32 1, %s1338
        $region77: #{decoder_forward.3} parent=51 // loop_footer_branch
          %1337 = sbr.rel target = $region73
        $region78: #{decoder_forward.3} parent=51 // loop_exit
          _
        %p1349 = scmp.lt.s32.totalorder %s21, 1
        %s1350 = scalar_select %p1349, %s21, 1
        %s1351 = smul.addr %s1350, 8
        %s1352 = scalar_lea.vmem %s8, %s1351
        // Predicated region
        $region79: #{decoder_forward.3} parent=51 // pred_check
          %p1353 = pneg %p217
        $region80: #{decoder_forward.3} parent=51 // pred_check_branch
          %1355 = sbr.rel (%p1353) target = $region82
        $region81: #{decoder_forward.3} parent=51 // pred_region
          _
        $region82: #{decoder_forward.3} parent=51 // pred_fallthru
          _
      $region52: #{decoder_forward.3} parent=5 // pred_fallthru
        _
      %p1356 = scmp.le.s32.totalorder 2, %s16
      // Predicated region
      $region83: #{decoder_forward.3} parent=5 // pred_check
        %p1357 = pneg %p1356
      $region84: #{decoder_forward.3} parent=5 // pred_check_branch
        %1359 = sbr.rel (%p1357) target = $region86
      $region85: #{decoder_forward.3} parent=5 // pred_region
        %s1360 = ssub.s32 %s16, 2
        // Predicated region
        $region87: #{decoder_forward.3} parent=85 // pred_check
          %p1361 = pneg %p223
        $region88: #{decoder_forward.3} parent=85 // pred_check_branch
          %1363 = sbr.rel (%p1361) target = $region90
        $region89: #{decoder_forward.3} parent=85 // pred_region
          %p1364 = scmp.lt.s32.totalorder %s22, 1
          %s1365 = scalar_select %p1364, %s22, 1
          %s1366 = smul.addr %s1365, 8
          %s1367 = scalar_lea.vmem %s8, %s1366
        $region90: #{decoder_forward.3} parent=85 // pred_fallthru
          _
      $region86: #{decoder_forward.3} parent=5 // pred_fallthru
        _
    $region6: #{decoder_forward.3} parent=1 // loop_footer
      %s20 = sadd.s32 1, %s16
    $region7: #{decoder_forward.3} parent=1 // loop_footer_branch
      %15 = sbr.rel target = $region3
    $region8: #{decoder_forward.3} parent=1 // loop_exit
      _
    %1368 = vsyncpa [#allocation8], 1
    %s1369 = scalar_lea.sflag [#allocation8], 1
    %1370 = vsyncpa %s1369, 1
    %1371 = vsyncpa [#allocation10], 1

// kernel: decoder_forward.4
$region0: #{decoder_forward.4}
  #allocation0 [shape = 'u32[]', space=smem, size = 0x4, offset = 0x4, fixed_abs, tag = 'smem constant byte address 0x4 - core index']
  #allocation1 [shape = 'u32[72,128]{1,0:T(1,128)}', space=vmem, size = 0x9000, scoped, tag = 'internal scratch']
  #allocation2 [shape = 'f32[16,64]{1,0:T(8,128)}', space=vmem, size = 0x2000, scoped, tag = 'scratch operand']
  #allocation3 [shape = 'f32[16,64]{1,0:T(8,128)}', space=vmem, size = 0x2000, scoped, tag = 'scratch operand']
  #allocation4 [shape = 'f32[40,64]{1,0:T(8,128)}', space=vmem, size = 0x5000, scoped, tag = 'scratch operand']
  #allocation5 [shape = 'f32[32,64]{1,0:T(8,128)}', space=vmem, size = 0x4000, scoped, tag = 'scratch operand']
  #allocation6 [shape = 'f32[16,64]{1,0:T(8,128)}', space=vmem, size = 0x2000, scoped, tag = 'scratch operand']
  %s0 = inlined_call_operand.vmem [shape: f32[2,16,64], index: 0, kind: input, shape index: {}]
  %s1 = inlined_call_operand.vmem [shape: f32[2,40,64], index: 1, kind: input, shape index: {}]
  %s2 = inlined_call_operand.hbm [shape: f32[2,64,64], index: 2, kind: input, shape index: {}]
  %s3 = inlined_call_operand.vmem [shape: f32[6,64,64], index: 3, kind: input, shape index: {}]
  %s4 = inlined_call_operand.vmem [shape: f32[6,64,64], index: 4, kind: input, shape index: {}]
  %s5 = inlined_call_operand.vmem [shape: f32[1,64], index: 5, kind: input, shape index: {}]
  %s6 = inlined_call_operand.hbm [shape: f32[6,64,64], index: 6, kind: input, shape index: {}]
  %s7 = inlined_call_operand.vmem [shape: f32[1,64], index: 7, kind: input, shape index: {}]
  %s8 = inlined_call_operand.vmem [shape: f32[2,8,64], index: 8, kind: output, shape index: {}]
  %s9 = sld [smem:[#allocation0]]
  $region87: #{decoder_forward.4} parent=0
    _
  %s11 = ssub.s32 1, %s9
  %s12 = scalar_select 0, %s11, %s9
  $region1: #{decoder_forward.4} parent=0
    #allocation7 [shape = 'u8[65536]{0}', space=vmem, size = 0x10000, scoped, tag = 'input window, operand 2, single buffered']
    #allocation8 [shape = 's32[2]{0}', space=sflag, size = 0x8, scoped, tag = 'scoped memory for decoder_forward.4']
    #allocation9 [shape = 'u8[196608]{0}', space=vmem, size = 0x30000, scoped, tag = 'input window, operand 6, single buffered']
    #allocation10 [shape = 's32[1]{0}', space=sflag, size = 0x4, scoped, tag = 'scoped memory for decoder_forward.4']
    %13 = vsyncpa [#allocation8], 0
    %14 = vsyncpa [#allocation10], 0
    loop: start=0, step=1, limit=4
    $region2: #{decoder_forward.4} parent=1 // loop_pre_header
      _
    $region3: #{decoder_forward.4} parent=1 // loop_header
      %s16 = sphi 0, %s20
      %p17 = scmp.ge.s32.totalorder %s16, 4
      %s26 = sphi 0, %s28
      %s29 = sphi 0, %s26
      %s30 = sphi 0, %s29
      %s46 = sphi 0, %s30
      %s52 = sphi 0, %s54
      %s55 = sphi 0, %s52
      %s56 = sphi 0, %s55
      %s72 = sphi 0, %s56
      %s76 = sphi 0, %s76
      %s78 = sphi 0, %s76
      %s79 = sphi 0, %s78
      %s93 = sphi 0, %s79
      %s97 = sphi 0, %s97
      %s99 = sphi 0, %s97
      %s100 = sphi 0, %s99
      %s114 = sphi 0, %s100
      %s118 = sphi 0, %s118
      %s120 = sphi 0, %s118
      %s121 = sphi 0, %s120
      %s135 = sphi 0, %s121
      %s139 = sphi 0, %s139
      %s141 = sphi 0, %s139
      %s142 = sphi 0, %s141
      %s156 = sphi 0, %s142
      %s160 = sphi 0, %s160
      %s162 = sphi 0, %s160
      %s163 = sphi 0, %s162
      %s177 = sphi 0, %s163
      %s181 = sphi 0, %s181
      %s183 = sphi 0, %s181
      %s184 = sphi 0, %s183
      %s198 = sphi 0, %s184
      %s204 = sphi 0, %s206
      %s207 = sphi 0, %s204
      %s208 = sphi 0, %s207
      %s224 = sphi 0, %s208
    $region4: #{decoder_forward.4} parent=1 // loop_header_branch
      %19 = sbr.rel (%p17) target = $region8
    $region5: #{decoder_forward.4} parent=1 // loop_body
      %s21 = ssub.s32 %s16, 1
      %s22 = ssub.s32 %s16, 2
      %s23 = sadd.s32 %s16, 1
      %s24 = ssub.s32 %s16, %s23
      %p25 = scmp.eq.s32.totalorder %s24, 0
      %s27 = sadd.s32 %s26, 1
      %s28 = scalar_select %p25, %s26, %s27
      %p31 = pneg %p25
      %p32 = scmp.eq.s32.totalorder %s16, 1
      %p33 = por %p31, %p32
      %p34 = scmp.ne.s32.totalorder %s26, %s29
      %p35 = scmp.eq.s32.totalorder %s16, 0
      %p36 = por %p34, %p35
      %p37 = scmp.ne.s32.totalorder %s26, %s29
      %p38 = scmp.eq.s32.totalorder %s21, 1
      %p39 = por %p37, %p38
      %p40 = scmp.ne.s32.totalorder %s29, %s30
      %p41 = scmp.eq.s32.totalorder %s21, 0
      %p42 = por %p40, %p41
      %p43 = scmp.ne.s32.totalorder %s29, %s30
      %p44 = scmp.eq.s32.totalorder %s22, 1
      %p45 = por %p43, %p44
      %p47 = scmp.ne.s32.totalorder %s30, %s46
      %p48 = scmp.eq.s32.totalorder %s22, 0
      %p49 = por %p47, %p48
      %s50 = ssub.s32 %s16, %s23
      %p51 = scmp.eq.s32.totalorder %s50, 0
      %s53 = sadd.s32 %s52, 1
      %s54 = scalar_select %p51, %s52, %s53
      %p57 = pneg %p51
      %p58 = scmp.eq.s32.totalorder %s16, 1
      %p59 = por %p57, %p58
      %p60 = scmp.ne.s32.totalorder %s52, %s55
      %p61 = scmp.eq.s32.totalorder %s16, 0
      %p62 = por %p60, %p61
      %p63 = scmp.ne.s32.totalorder %s52, %s55
      %p64 = scmp.eq.s32.totalorder %s21, 1
      %p65 = por %p63, %p64
      %p66 = scmp.ne.s32.totalorder %s55, %s56
      %p67 = scmp.eq.s32.totalorder %s21, 0
      %p68 = por %p66, %p67
      %p69 = scmp.ne.s32.totalorder %s55, %s56
      %p70 = scmp.eq.s32.totalorder %s22, 1
      %p71 = por %p69, %p70
      %p73 = scmp.ne.s32.totalorder %s56, %s72
      %p74 = scmp.eq.s32.totalorder %s22, 0
      %p75 = por %p73, %p74
      %s77 = sadd.s32 %s76, 1
      %p80 = scmp.eq.s32.totalorder %s16, 1
      %p81 = scmp.ne.s32.totalorder %s76, %s78
      %p82 = scmp.eq.s32.totalorder %s16, 0
      %p83 = por %p81, %p82
      %p84 = scmp.ne.s32.totalorder %s76, %s78
      %p85 = scmp.eq.s32.totalorder %s21, 1
      %p86 = por %p84, %p85
      %p87 = scmp.ne.s32.totalorder %s78, %s79
      %p88 = scmp.eq.s32.totalorder %s21, 0
      %p89 = por %p87, %p88
      %p90 = scmp.ne.s32.totalorder %s78, %s79
      %p91 = scmp.eq.s32.totalorder %s22, 1
      %p92 = por %p90, %p91
      %p94 = scmp.ne.s32.totalorder %s79, %s93
      %p95 = scmp.eq.s32.totalorder %s22, 0
      %p96 = por %p94, %p95
      %s98 = sadd.s32 %s97, 1
      %p101 = scmp.eq.s32.totalorder %s16, 1
      %p102 = scmp.ne.s32.totalorder %s97, %s99
      %p103 = scmp.eq.s32.totalorder %s16, 0
      %p104 = por %p102, %p103
      %p105 = scmp.ne.s32.totalorder %s97, %s99
      %p106 = scmp.eq.s32.totalorder %s21, 1
      %p107 = por %p105, %p106
      %p108 = scmp.ne.s32.totalorder %s99, %s100
      %p109 = scmp.eq.s32.totalorder %s21, 0
      %p110 = por %p108, %p109
      %p111 = scmp.ne.s32.totalorder %s99, %s100
      %p112 = scmp.eq.s32.totalorder %s22, 1
      %p113 = por %p111, %p112
      %p115 = scmp.ne.s32.totalorder %s100, %s114
      %p116 = scmp.eq.s32.totalorder %s22, 0
      %p117 = por %p115, %p116
      %s119 = sadd.s32 %s118, 1
      %p122 = scmp.eq.s32.totalorder %s16, 1
      %p123 = scmp.ne.s32.totalorder %s118, %s120
      %p124 = scmp.eq.s32.totalorder %s16, 0
      %p125 = por %p123, %p124
      %p126 = scmp.ne.s32.totalorder %s118, %s120
      %p127 = scmp.eq.s32.totalorder %s21, 1
      %p128 = por %p126, %p127
      %p129 = scmp.ne.s32.totalorder %s120, %s121
      %p130 = scmp.eq.s32.totalorder %s21, 0
      %p131 = por %p129, %p130
      %p132 = scmp.ne.s32.totalorder %s120, %s121
      %p133 = scmp.eq.s32.totalorder %s22, 1
      %p134 = por %p132, %p133
      %p136 = scmp.ne.s32.totalorder %s121, %s135
      %p137 = scmp.eq.s32.totalorder %s22, 0
      %p138 = por %p136, %p137
      %s140 = sadd.s32 %s139, 1
      %p143 = scmp.eq.s32.totalorder %s16, 1
      %p144 = scmp.ne.s32.totalorder %s139, %s141
      %p145 = scmp.eq.s32.totalorder %s16, 0
      %p146 = por %p144, %p145
      %p147 = scmp.ne.s32.totalorder %s139, %s141
      %p148 = scmp.eq.s32.totalorder %s21, 1
      %p149 = por %p147, %p148
      %p150 = scmp.ne.s32.totalorder %s141, %s142
      %p151 = scmp.eq.s32.totalorder %s21, 0
      %p152 = por %p150, %p151
      %p153 = scmp.ne.s32.totalorder %s141, %s142
      %p154 = scmp.eq.s32.totalorder %s22, 1
      %p155 = por %p153, %p154
      %p157 = scmp.ne.s32.totalorder %s142, %s156
      %p158 = scmp.eq.s32.totalorder %s22, 0
      %p159 = por %p157, %p158
      %s161 = sadd.s32 %s160, 1
      %p164 = scmp.eq.s32.totalorder %s16, 1
      %p165 = scmp.ne.s32.totalorder %s160, %s162
      %p166 = scmp.eq.s32.totalorder %s16, 0
      %p167 = por %p165, %p166
      %p168 = scmp.ne.s32.totalorder %s160, %s162
      %p169 = scmp.eq.s32.totalorder %s21, 1
      %p170 = por %p168, %p169
      %p171 = scmp.ne.s32.totalorder %s162, %s163
      %p172 = scmp.eq.s32.totalorder %s21, 0
      %p173 = por %p171, %p172
      %p174 = scmp.ne.s32.totalorder %s162, %s163
      %p175 = scmp.eq.s32.totalorder %s22, 1
      %p176 = por %p174, %p175
      %p178 = scmp.ne.s32.totalorder %s163, %s177
      %p179 = scmp.eq.s32.totalorder %s22, 0
      %p180 = por %p178, %p179
      %s182 = sadd.s32 %s181, 1
      %p185 = scmp.eq.s32.totalorder %s16, 1
      %p186 = scmp.ne.s32.totalorder %s181, %s183
      %p187 = scmp.eq.s32.totalorder %s16, 0
      %p188 = por %p186, %p187
      %p189 = scmp.ne.s32.totalorder %s181, %s183
      %p190 = scmp.eq.s32.totalorder %s21, 1
      %p191 = por %p189, %p190
      %p192 = scmp.ne.s32.totalorder %s183, %s184
      %p193 = scmp.eq.s32.totalorder %s21, 0
      %p194 = por %p192, %p193
      %p195 = scmp.ne.s32.totalorder %s183, %s184
      %p196 = scmp.eq.s32.totalorder %s22, 1
      %p197 = por %p195, %p196
      %p199 = scmp.ne.s32.totalorder %s184, %s198
      %p200 = scmp.eq.s32.totalorder %s22, 0
      %p201 = por %p199, %p200
      %s202 = ssub.s32 %s16, %s23
      %p203 = scmp.eq.s32.totalorder %s202, 0
      %s205 = sadd.s32 %s204, 1
      %s206 = scalar_select %p203, %s204, %s205
      %p209 = pneg %p203
      %p210 = scmp.eq.s32.totalorder %s16, 1
      %p211 = por %p209, %p210
      %p212 = scmp.ne.s32.totalorder %s204, %s207
      %p213 = scmp.eq.s32.totalorder %s16, 0
      %p214 = por %p212, %p213
      %p215 = scmp.ne.s32.totalorder %s204, %s207
      %p216 = scmp.eq.s32.totalorder %s21, 1
      %p217 = por %p215, %p216
      %p218 = scmp.ne.s32.totalorder %s207, %s208
      %p219 = scmp.eq.s32.totalorder %s21, 0
      %p220 = por %p218, %p219
      %p221 = scmp.ne.s32.totalorder %s207, %s208
      %p222 = scmp.eq.s32.totalorder %s22, 1
      %p223 = por %p221, %p222
      %p225 = scmp.ne.s32.totalorder %s208, %s224
      %p226 = scmp.eq.s32.totalorder %s22, 0
      %p227 = por %p225, %p226
      %p228 = scmp.le.s32.totalorder 1, %s16
      %p229 = scmp.lt.s32.totalorder %s16, 3
      %p230 = pnand %p228, %p229
      %p231 = pneg %p230
      // Predicated region
      $region9: #{decoder_forward.4} parent=5 // pred_check
        _
      $region10: #{decoder_forward.4} parent=5 // pred_check_branch
        %233 = sbr.rel (%p230) target = $region12
      $region11: #{decoder_forward.4} parent=5 // pred_region
        %s234 = ssub.s32 %s16, 1
        // Predicated region
        $region13: #{decoder_forward.4} parent=11 // pred_check
          %p235 = pneg %p89
        $region14: #{decoder_forward.4} parent=11 // pred_check_branch
          %237 = sbr.rel (%p235) target = $region16
        $region15: #{decoder_forward.4} parent=11 // pred_region
          %239 = vsyncadd [#allocation8], 0
          %s240 = sshll.u32 %s2, 4
          %s241 = int_to_ptr.hbm [resolvable:$true] %s240
          %s242 = sshll.u32 [#allocation7], 4
          %s243 = int_to_ptr.vmem [resolvable:$true] %s242
          %248 = dma.hbm_to_vmem [thread:$0]  %s241, 2048, %s243, [#allocation8], 128, 128, 8
        $region16: #{decoder_forward.4} parent=11 // pred_fallthru
          _
        // Predicated region
        $region17: #{decoder_forward.4} parent=11 // pred_check
          %p249 = pneg %p110
        $region18: #{decoder_forward.4} parent=11 // pred_check_branch
          %251 = sbr.rel (%p249) target = $region20
        $region19: #{decoder_forward.4} parent=11 // pred_region
          _
        $region20: #{decoder_forward.4} parent=11 // pred_fallthru
          _
        // Predicated region
        $region21: #{decoder_forward.4} parent=11 // pred_check
          %p252 = pneg %p131
        $region22: #{decoder_forward.4} parent=11 // pred_check_branch
          %254 = sbr.rel (%p252) target = $region24
        $region23: #{decoder_forward.4} parent=11 // pred_region
          _
        $region24: #{decoder_forward.4} parent=11 // pred_fallthru
          _
        // Predicated region
        $region25: #{decoder_forward.4} parent=11 // pred_check
          %p255 = pneg %p152
        $region26: #{decoder_forward.4} parent=11 // pred_check_branch
          %257 = sbr.rel (%p255) target = $region28
        $region27: #{decoder_forward.4} parent=11 // pred_region
          _
        $region28: #{decoder_forward.4} parent=11 // pred_fallthru
          _
        // Predicated region
        $region29: #{decoder_forward.4} parent=11 // pred_check
          %p258 = pneg %p173
        $region30: #{decoder_forward.4} parent=11 // pred_check_branch
          %260 = sbr.rel (%p258) target = $region32
        $region31: #{decoder_forward.4} parent=11 // pred_region
          %262 = vsyncadd [#allocation10], 0
          %s263 = sshll.u32 %s6, 4
          %s264 = int_to_ptr.hbm [resolvable:$true] %s263
          %s265 = sshll.u32 [#allocation9], 4
          %s266 = int_to_ptr.vmem [resolvable:$true] %s265
          %271 = dma.hbm_to_vmem [thread:$0]  %s264, 6144, %s266, [#allocation10], 128, 128, 8
        $region32: #{decoder_forward.4} parent=11 // pred_fallthru
          _
        // Predicated region
        $region33: #{decoder_forward.4} parent=11 // pred_check
          %p272 = pneg %p194
        $region34: #{decoder_forward.4} parent=11 // pred_check_branch
          %274 = sbr.rel (%p272) target = $region36
        $region35: #{decoder_forward.4} parent=11 // pred_region
          _
        $region36: #{decoder_forward.4} parent=11 // pred_fallthru
          _
      $region12: #{decoder_forward.4} parent=5 // pred_fallthru
        _
      %p275 = scmp.lt.s32.totalorder %s16, 2
      // Predicated region
      $region37: #{decoder_forward.4} parent=5 // pred_check
        %p276 = pneg %p275
      $region38: #{decoder_forward.4} parent=5 // pred_check_branch
        %278 = sbr.rel (%p276) target = $region40
      $region39: #{decoder_forward.4} parent=5 // pred_region
        // Predicated region
        $region41: #{decoder_forward.4} parent=39 // pred_check
          %p279 = pneg %p36
        $region42: #{decoder_forward.4} parent=39 // pred_check_branch
          %281 = sbr.rel (%p279) target = $region44
        $region43: #{decoder_forward.4} parent=39 // pred_region
          %p282 = scmp.lt.s32.totalorder %s16, 1
          %s283 = scalar_select %p282, %s16, 1
          %s284 = smul.addr %s283, 2
          %s285 = smul.addr %s284, 8
          %s286 = scalar_lea.vmem %s0, %s285
        $region44: #{decoder_forward.4} parent=39 // pred_fallthru
          _
        // Predicated region
        $region45: #{decoder_forward.4} parent=39 // pred_check
          %p287 = pneg %p62
        $region46: #{decoder_forward.4} parent=39 // pred_check_branch
          %289 = sbr.rel (%p287) target = $region48
        $region47: #{decoder_forward.4} parent=39 // pred_region
          %p290 = scmp.lt.s32.totalorder %s16, 1
          %s291 = scalar_select %p290, %s16, 1
          %s292 = smul.addr %s291, 5
          %s293 = smul.addr %s292, 8
          %s294 = scalar_lea.vmem %s1, %s293
        $region48: #{decoder_forward.4} parent=39 // pred_fallthru
          _
      $region40: #{decoder_forward.4} parent=5 // pred_fallthru
        _
      %p295 = scmp.le.s32.totalorder 1, %s16
      %p296 = scmp.lt.s32.totalorder %s16, 3
      %p297 = pnand %p295, %p296
      %p298 = pneg %p297
      // Predicated region
      $region49: #{decoder_forward.4} parent=5 // pred_check
        _
      $region50: #{decoder_forward.4} parent=5 // pred_check_branch
        %300 = sbr.rel (%p297) target = $region52
      $region51: #{decoder_forward.4} parent=5 // pred_region
        %s301 = ssub.s32 %s16, 1
        // Predicated region
        $region53: #{decoder_forward.4} parent=51 // pred_check
          %p302 = pneg %p89
        $region54: #{decoder_forward.4} parent=51 // pred_check_branch
          %304 = sbr.rel (%p302) target = $region56
        $region55: #{decoder_forward.4} parent=51 // pred_region
          %306 = dma.done [#allocation8], 2048
        $region56: #{decoder_forward.4} parent=51 // pred_fallthru
          _
        // Predicated region
        $region57: #{decoder_forward.4} parent=51 // pred_check
          %p307 = pneg %p173
        $region58: #{decoder_forward.4} parent=51 // pred_check_branch
          %309 = sbr.rel (%p307) target = $region60
        $region59: #{decoder_forward.4} parent=51 // pred_region
          %311 = dma.done [#allocation10], 6144
        $region60: #{decoder_forward.4} parent=51 // pred_fallthru
          _
        %p312 = scmp.lt.s32.totalorder %s21, 1
        %s313 = scalar_select %p312, %s21, 1
        %s314 = smul.addr %s313, 2
        %s315 = smul.addr %s314, 8
        %s316 = scalar_lea.vmem %s0, %s315
        %p317 = pneg %p42
        %p318 = pneg %p39
        %p319 = scmp.lt.s32.totalorder %s21, 1
        %s320 = scalar_select %p319, %s21, 1
        %s321 = smul.addr %s320, 5
        %s322 = smul.addr %s321, 8
        %s323 = scalar_lea.vmem %s1, %s322
        %p324 = pneg %p68
        %p325 = pneg %p65
        %p326 = pneg %p89
        %p327 = pneg %p86
        %p328 = pneg %p110
        %p329 = pneg %p107
        %p330 = pneg %p131
        %p331 = pneg %p128
        %p332 = pneg %p152
        %p333 = pneg %p149
        %p334 = pneg %p173
        %p335 = pneg %p170
        %p336 = pneg %p194
        %p337 = pneg %p191
        %p338 = pneg %p220
        %p339 = pneg %p217
        %p340 = scmp.lt.s32.totalorder %s21, 1
        %s341 = scalar_select %p340, %s21, 1
        %s342 = smul.addr %s341, 8
        %s343 = scalar_lea.vmem %s8, %s342
        %p344 = scmp.lt.s32.totalorder %s21, 1
        %s345 = scalar_select %p344, %s21, 1
        %s346 = smul.addr %s345, 2
        %s347 = smul.addr %s346, 8
        %s348 = scalar_lea.vmem %s0, %s347
        %p349 = scmp.lt.s32.totalorder %s21, 1
        %s350 = scalar_select %p349, %s21, 1
        %s351 = smul.addr %s350, 5
        %s352 = smul.addr %s351, 8
        %s353 = scalar_lea.vmem %s1, %s352
        %p354 = scmp.lt.s32.totalorder %s21, 1
        %s355 = scalar_select %p354, %s21, 1
        %s356 = smul.addr %s355, 8
        %s357 = scalar_lea.vmem %s8, %s356
        %v358 = vld [vmem:[%s348] sm:$0xff]
        %v359 = vld [vmem:[%s348 + $0x8] sm:$0xff]
        %v360 = vld [vmem:[#allocation7] sm:$0xff]
        %v361 = vld [vmem:[#allocation7 + $0x8] sm:$0xff]
        %v362 = vld [vmem:[#allocation7 + $0x10] sm:$0xff]
        %v363 = vld [vmem:[#allocation7 + $0x18] sm:$0xff]
        %v364 = vld [vmem:[#allocation7 + $0x20] sm:$0xff]
        %v365 = vld [vmem:[#allocation7 + $0x28] sm:$0xff]
        %v366 = vld [vmem:[#allocation7 + $0x30] sm:$0xff]
        %v367 = vld [vmem:[#allocation7 + $0x38] sm:$0xff]
        %vm368 = vcmask 523264
        %v370 = vsel %vm368, %v358, 0
        %v373 = vsel %vm368, %v359, 0
        %375 = vmatpush.msra.mxu0 0.0
        %376 = vmatpush.msra.mxu0 0.0
        %377 = vmatpush.msra.mxu0 0.0
        %378 = vmatpush.msra.mxu0 0.0
        %379 = vmatpush.msra.mxu0 0.0
        %380 = vmatpush.msra.mxu0 0.0
        %381 = vmatpush.msra.mxu0 0.0
        %382 = vmatpush.msra.mxu0 0.0
        %383 = vmatpush.msra.mxu0 %v367
        %384 = vmatpush.msra.mxu0 %v366
        %385 = vmatpush.msra.mxu0 %v365
        %386 = vmatpush.msra.mxu0 %v364
        %387 = vmatpush.msra.mxu0 %v363
        %388 = vmatpush.msra.mxu0 %v362
        %389 = vmatpush.msra.mxu0 %v361
        %390 = vmatpush.msra.mxu0 %v360
        %391 = vmatmul.f32.gmra.mxu0 %v370
        %v392 = vpop.f32.mrf.mxu0
        %v393 = vadd.f32 0.0, %v392
        %394 = vmatmul.f32.gmra.mxu0 %v373
        %v395 = vpop.f32.mrf.mxu0
        %v396 = vadd.f32 0.0, %v395
        %397 = vdwg.mxu0
        %398 = vst.msk [vmem:[#allocation2] sm:$0xff] %vm368, %v393
        %399 = vst.msk [vmem:[#allocation2 + $0x8] sm:$0xff] %vm368, %v396
        %s400 = scalar_lea.vmem [#allocation7], 64
        %v401 = vld [vmem:[%s400] sm:$0xff]
        %v402 = vld [vmem:[%s400 + $0x8] sm:$0xff]
        %v403 = vld [vmem:[%s400 + $0x10] sm:$0xff]
        %v404 = vld [vmem:[%s400 + $0x18] sm:$0xff]
        %v405 = vld [vmem:[%s400 + $0x20] sm:$0xff]
        %v406 = vld [vmem:[%s400 + $0x28] sm:$0xff]
        %v407 = vld [vmem:[%s400 + $0x30] sm:$0xff]
        %v408 = vld [vmem:[%s400 + $0x38] sm:$0xff]
        %409 = vmatpush.msra.mxu0 0.0
        %410 = vmatpush.msra.mxu0 0.0
        %411 = vmatpush.msra.mxu0 0.0
        %412 = vmatpush.msra.mxu0 0.0
        %413 = vmatpush.msra.mxu0 0.0
        %414 = vmatpush.msra.mxu0 0.0
        %415 = vmatpush.msra.mxu0 0.0
        %416 = vmatpush.msra.mxu0 0.0
        %417 = vmatpush.msra.mxu0 %v408
        %418 = vmatpush.msra.mxu0 %v407
        %419 = vmatpush.msra.mxu0 %v406
        %420 = vmatpush.msra.mxu0 %v405
        %421 = vmatpush.msra.mxu0 %v404
        %422 = vmatpush.msra.mxu0 %v403
        %423 = vmatpush.msra.mxu0 %v402
        %424 = vmatpush.msra.mxu0 %v401
        %425 = vmatmul.f32.gmra.mxu0 %v370
        %v426 = vpop.f32.mrf.mxu0
        %v427 = vadd.f32 0.0, %v426
        %428 = vmatmul.f32.gmra.mxu0 %v373
        %v429 = vpop.f32.mrf.mxu0
        %v430 = vadd.f32 0.0, %v429
        %431 = vdwg.mxu0
        %432 = vst.msk [vmem:[#allocation3] sm:$0xff] %vm368, %v427
        %433 = vst.msk [vmem:[#allocation3 + $0x8] sm:$0xff] %vm368, %v430
        %434 = vst.msk [vmem:[#allocation4 + $0x20] sm:$0xff] %vm368, 0.0
        loop: start=0, step=1, limit=4
        $region61: #{decoder_forward.4} parent=51 // loop_pre_header
          _
        $region62: #{decoder_forward.4} parent=51 // loop_header
          %s436 = sphi 0, %s440
          %p437 = scmp.ge.s32.totalorder %s436, 4
        $region63: #{decoder_forward.4} parent=51 // loop_header_branch
          %439 = sbr.rel (%p437) target = $region67
        $region64: #{decoder_forward.4} parent=51 // loop_body
          %s441 = smul.u32 %s436, 4
          %s442 = scalar_lea.vmem [#allocation2], %s441
          %v443 = vld [vmem:[%s442] sm:$0xf]
          %s444 = smul.u32 %s436, 8
          %s445 = scalar_lea.vmem [#allocation4], %s444
          %vm446 = vcmask 519168
          %447 = vst.msk [vmem:[%s445] sm:$0xf] %vm446, %v443
          %s448 = scalar_lea.vmem [#allocation3], %s441
          %v449 = vld [vmem:[%s448] sm:$0xf]
          %s450 = smul.u32 %s436, 2
          %s451 = sadd.s32 %s450, 1
          %s452 = smul.u32 %s451, 4
          %s453 = scalar_lea.vmem [#allocation4], %s452
          %454 = vst.msk [vmem:[%s453] sm:$0xf] %vm446, %v449
        $region65: #{decoder_forward.4} parent=51 // loop_footer
          %s440 = sadd.s32 1, %s436
        $region66: #{decoder_forward.4} parent=51 // loop_footer_branch
          %435 = sbr.rel target = $region62
        $region67: #{decoder_forward.4} parent=51 // loop_exit
          _
        %v455 = vld [vmem:[#allocation4] sm:$0xff]
        %v456 = vld [vmem:[#allocation4 + $0x8] sm:$0xff]
        %v457 = vld [vmem:[#allocation4 + $0x10] sm:$0xff]
        %v458 = vld [vmem:[%s3] sm:$0xff]
        %v459 = vld [vmem:[%s3 + $0x8] sm:$0xff]
        %v460 = vld [vmem:[%s3 + $0x10] sm:$0xff]
        %v461 = vld [vmem:[%s3 + $0x18] sm:$0xff]
        %v462 = vld [vmem:[%s3 + $0x20] sm:$0xff]
        %v463 = vld [vmem:[%s3 + $0x28] sm:$0xff]
        %v464 = vld [vmem:[%s3 + $0x30] sm:$0xff]
        %v465 = vld [vmem:[%s3 + $0x38] sm:$0xff]
        %v466 = vld [vmem:[%s353] sm:$0xff]
        %v467 = vld [vmem:[%s353 + $0x8] sm:$0xff]
        %v468 = vld [vmem:[%s353 + $0x10] sm:$0xff]
        %v469 = vld [vmem:[%s4] sm:$0xff]
        %v470 = vld [vmem:[%s4 + $0x8] sm:$0xff]
        %v471 = vld [vmem:[%s4 + $0x10] sm:$0xff]
        %v472 = vld [vmem:[%s4 + $0x18] sm:$0xff]
        %v473 = vld [vmem:[%s4 + $0x20] sm:$0xff]
        %v474 = vld [vmem:[%s4 + $0x28] sm:$0xff]
        %v475 = vld [vmem:[%s4 + $0x30] sm:$0xff]
        %v476 = vld [vmem:[%s4 + $0x38] sm:$0xff]
        %v478 = vsel %vm368, %v466, 0
        %v481 = vsel %vm368, %v467, 0
        %v484 = vsel %vm368, %v468, 0
        %486 = vmatpush.msra.mxu0 0.0
        %487 = vmatpush.msra.mxu0 0.0
        %488 = vmatpush.msra.mxu0 0.0
        %489 = vmatpush.msra.mxu0 0.0
        %490 = vmatpush.msra.mxu0 0.0
        %491 = vmatpush.msra.mxu0 0.0
        %492 = vmatpush.msra.mxu0 0.0
        %493 = vmatpush.msra.mxu0 0.0
        %494 = vmatpush.msra.mxu0 %v476
        %495 = vmatpush.msra.mxu0 %v475
        %496 = vmatpush.msra.mxu0 %v474
        %497 = vmatpush.msra.mxu0 %v473
        %498 = vmatpush.msra.mxu0 %v472
        %499 = vmatpush.msra.mxu0 %v471
        %500 = vmatpush.msra.mxu0 %v470
        %501 = vmatpush.msra.mxu0 %v469
        %502 = vmatmul.f32.gmra.mxu0 %v478
        %v503 = vpop.f32.mrf.mxu0
        %v504 = vadd.f32 0.0, %v503
        %505 = vmatmul.f32.gmra.mxu0 %v481
        %v506 = vpop.f32.mrf.mxu0
        %v507 = vadd.f32 0.0, %v506
        %508 = vmatmul.f32.gmra.mxu0 %v484
        %v509 = vpop.f32.mrf.mxu0
        %v510 = vadd.f32 0.0, %v509
        %511 = vdwg.mxu0
        %v513 = vsel %vm368, %v455, 0
        %v516 = vsel %vm368, %v456, 0
        %v519 = vsel %vm368, %v457, 0
        %521 = vmatpush.msra.mxu0 0.0
        %522 = vmatpush.msra.mxu0 0.0
        %523 = vmatpush.msra.mxu0 0.0
        %524 = vmatpush.msra.mxu0 0.0
        %525 = vmatpush.msra.mxu0 0.0
        %526 = vmatpush.msra.mxu0 0.0
        %527 = vmatpush.msra.mxu0 0.0
        %528 = vmatpush.msra.mxu0 0.0
        %529 = vmatpush.msra.mxu0 %v465
        %530 = vmatpush.msra.mxu0 %v464
        %531 = vmatpush.msra.mxu0 %v463
        %532 = vmatpush.msra.mxu0 %v462
        %533 = vmatpush.msra.mxu0 %v461
        %534 = vmatpush.msra.mxu0 %v460
        %535 = vmatpush.msra.mxu0 %v459
        %536 = vmatpush.msra.mxu0 %v458
        %537 = vmatmul.f32.gmra.mxu0 %v513
        %v538 = vpop.f32.mrf.mxu0
        %v539 = vadd.f32 %v504, %v538
        %540 = vmatmul.f32.gmra.mxu0 %v516
        %v541 = vpop.f32.mrf.mxu0
        %v542 = vadd.f32 %v507, %v541
        %543 = vmatmul.f32.gmra.mxu0 %v519
        %v544 = vpop.f32.mrf.mxu0
        %v545 = vadd.f32 %v510, %v544
        %546 = vdwg.mxu0
        %v547 = vld [vmem:[#allocation4 + $0x1] sm:$0xff]
        %v548 = vld [vmem:[#allocation4 + $0x9] sm:$0xff]
        %v549 = vld [vmem:[#allocation4 + $0x11] sm:$0xff]
        %s550 = scalar_lea.vmem %s3, 64
        %v551 = vld [vmem:[%s550] sm:$0xff]
        %v552 = vld [vmem:[%s550 + $0x8] sm:$0xff]
        %v553 = vld [vmem:[%s550 + $0x10] sm:$0xff]
        %v554 = vld [vmem:[%s550 + $0x18] sm:$0xff]
        %v555 = vld [vmem:[%s550 + $0x20] sm:$0xff]
        %v556 = vld [vmem:[%s550 + $0x28] sm:$0xff]
        %v557 = vld [vmem:[%s550 + $0x30] sm:$0xff]
        %v558 = vld [vmem:[%s550 + $0x38] sm:$0xff]
        %v559 = vld [vmem:[%s353 + $0x1] sm:$0xff]
        %v560 = vld [vmem:[%s353 + $0x9] sm:$0xff]
        %v561 = vld [vmem:[%s353 + $0x11] sm:$0xff]
        %s562 = scalar_lea.vmem %s4, 64
        %v563 = vld [vmem:[%s562] sm:$0xff]
        %v564 = vld [vmem:[%s562 + $0x8] sm:$0xff]
        %v565 = vld [vmem:[%s562 + $0x10] sm:$0xff]
        %v566 = vld [vmem:[%s562 + $0x18] sm:$0xff]
        %v567 = vld [vmem:[%s562 + $0x20] sm:$0xff]
        %v568 = vld [vmem:[%s562 + $0x28] sm:$0xff]
        %v569 = vld [vmem:[%s562 + $0x30] sm:$0xff]
        %v570 = vld [vmem:[%s562 + $0x38] sm:$0xff]
        %v572 = vsel %vm368, %v559, 0
        %v575 = vsel %vm368, %v560, 0
        %v578 = vsel %vm368, %v561, 0
        %580 = vmatpush.msra.mxu0 0.0
        %581 = vmatpush.msra.mxu0 0.0
        %582 = vmatpush.msra.mxu0 0.0
        %583 = vmatpush.msra.mxu0 0.0
        %584 = vmatpush.msra.mxu0 0.0
        %585 = vmatpush.msra.mxu0 0.0
        %586 = vmatpush.msra.mxu0 0.0
        %587 = vmatpush.msra.mxu0 0.0
        %588 = vmatpush.msra.mxu0 %v570
        %589 = vmatpush.msra.mxu0 %v569
        %590 = vmatpush.msra.mxu0 %v568
        %591 = vmatpush.msra.mxu0 %v567
        %592 = vmatpush.msra.mxu0 %v566
        %593 = vmatpush.msra.mxu0 %v565
        %594 = vmatpush.msra.mxu0 %v564
        %595 = vmatpush.msra.mxu0 %v563
        %596 = vmatmul.f32.gmra.mxu0 %v572
        %v597 = vpop.f32.mrf.mxu0
        %v598 = vadd.f32 0.0, %v597
        %599 = vmatmul.f32.gmra.mxu0 %v575
        %v600 = vpop.f32.mrf.mxu0
        %v601 = vadd.f32 0.0, %v600
        %602 = vmatmul.f32.gmra.mxu0 %v578
        %v603 = vpop.f32.mrf.mxu0
        %v604 = vadd.f32 0.0, %v603
        %605 = vdwg.mxu0
        %v607 = vsel %vm368, %v547, 0
        %v610 = vsel %vm368, %v548, 0
        %v613 = vsel %vm368, %v549, 0
        %615 = vmatpush.msra.mxu0 0.0
        %616 = vmatpush.msra.mxu0 0.0
        %617 = vmatpush.msra.mxu0 0.0
        %618 = vmatpush.msra.mxu0 0.0
        %619 = vmatpush.msra.mxu0 0.0
        %620 = vmatpush.msra.mxu0 0.0
        %621 = vmatpush.msra.mxu0 0.0
        %622 = vmatpush.msra.mxu0 0.0
        %623 = vmatpush.msra.mxu0 %v558
        %624 = vmatpush.msra.mxu0 %v557
        %625 = vmatpush.msra.mxu0 %v556
        %626 = vmatpush.msra.mxu0 %v555
        %627 = vmatpush.msra.mxu0 %v554
        %628 = vmatpush.msra.mxu0 %v553
        %629 = vmatpush.msra.mxu0 %v552
        %630 = vmatpush.msra.mxu0 %v551
        %631 = vmatmul.f32.gmra.mxu0 %v607
        %v632 = vpop.f32.mrf.mxu0
        %v633 = vadd.f32 %v598, %v632
        %634 = vmatmul.f32.gmra.mxu0 %v610
        %v635 = vpop.f32.mrf.mxu0
        %v636 = vadd.f32 %v601, %v635
        %637 = vmatmul.f32.gmra.mxu0 %v613
        %v638 = vpop.f32.mrf.mxu0
        %v639 = vadd.f32 %v604, %v638
        %640 = vdwg.mxu0
        %v641 = vadd.f32 %v539, %v633
        %v642 = vadd.f32 %v542, %v636
        %v643 = vadd.f32 %v545, %v639
        %v644 = vld [vmem:[#allocation4 + $0x4] sm:$0xff]
        %v645 = vld [vmem:[#allocation4 + $0xc] sm:$0xff]
        %v646 = vld [vmem:[#allocation4 + $0x14] sm:$0xff]
        %s647 = scalar_lea.vmem %s3, 128
        %v648 = vld [vmem:[%s647] sm:$0xff]
        %v649 = vld [vmem:[%s647 + $0x8] sm:$0xff]
        %v650 = vld [vmem:[%s647 + $0x10] sm:$0xff]
        %v651 = vld [vmem:[%s647 + $0x18] sm:$0xff]
        %v652 = vld [vmem:[%s647 + $0x20] sm:$0xff]
        %v653 = vld [vmem:[%s647 + $0x28] sm:$0xff]
        %v654 = vld [vmem:[%s647 + $0x30] sm:$0xff]
        %v655 = vld [vmem:[%s647 + $0x38] sm:$0xff]
        %v656 = vld [vmem:[%s353 + $0x4] sm:$0xff]
        %v657 = vld [vmem:[%s353 + $0xc] sm:$0xff]
        %v658 = vld [vmem:[%s353 + $0x14] sm:$0xff]
        %s659 = scalar_lea.vmem %s4, 128
        %v660 = vld [vmem:[%s659] sm:$0xff]
        %v661 = vld [vmem:[%s659 + $0x8] sm:$0xff]
        %v662 = vld [vmem:[%s659 + $0x10] sm:$0xff]
        %v663 = vld [vmem:[%s659 + $0x18] sm:$0xff]
        %v664 = vld [vmem:[%s659 + $0x20] sm:$0xff]
        %v665 = vld [vmem:[%s659 + $0x28] sm:$0xff]
        %v666 = vld [vmem:[%s659 + $0x30] sm:$0xff]
        %v667 = vld [vmem:[%s659 + $0x38] sm:$0xff]
        %v669 = vsel %vm368, %v656, 0
        %v672 = vsel %vm368, %v657, 0
        %v675 = vsel %vm368, %v658, 0
        %677 = vmatpush.msra.mxu0 0.0
        %678 = vmatpush.msra.mxu0 0.0
        %679 = vmatpush.msra.mxu0 0.0
        %680 = vmatpush.msra.mxu0 0.0
        %681 = vmatpush.msra.mxu0 0.0
        %682 = vmatpush.msra.mxu0 0.0
        %683 = vmatpush.msra.mxu0 0.0
        %684 = vmatpush.msra.mxu0 0.0
        %685 = vmatpush.msra.mxu0 %v667
        %686 = vmatpush.msra.mxu0 %v666
        %687 = vmatpush.msra.mxu0 %v665
        %688 = vmatpush.msra.mxu0 %v664
        %689 = vmatpush.msra.mxu0 %v663
        %690 = vmatpush.msra.mxu0 %v662
        %691 = vmatpush.msra.mxu0 %v661
        %692 = vmatpush.msra.mxu0 %v660
        %693 = vmatmul.f32.gmra.mxu0 %v669
        %v694 = vpop.f32.mrf.mxu0
        %v695 = vadd.f32 0.0, %v694
        %696 = vmatmul.f32.gmra.mxu0 %v672
        %v697 = vpop.f32.mrf.mxu0
        %v698 = vadd.f32 0.0, %v697
        %699 = vmatmul.f32.gmra.mxu0 %v675
        %v700 = vpop.f32.mrf.mxu0
        %v701 = vadd.f32 0.0, %v700
        %702 = vdwg.mxu0
        %v704 = vsel %vm368, %v644, 0
        %v707 = vsel %vm368, %v645, 0
        %v710 = vsel %vm368, %v646, 0
        %712 = vmatpush.msra.mxu0 0.0
        %713 = vmatpush.msra.mxu0 0.0
        %714 = vmatpush.msra.mxu0 0.0
        %715 = vmatpush.msra.mxu0 0.0
        %716 = vmatpush.msra.mxu0 0.0
        %717 = vmatpush.msra.mxu0 0.0
        %718 = vmatpush.msra.mxu0 0.0
        %719 = vmatpush.msra.mxu0 0.0
        %720 = vmatpush.msra.mxu0 %v655
        %721 = vmatpush.msra.mxu0 %v654
        %722 = vmatpush.msra.mxu0 %v653
        %723 = vmatpush.msra.mxu0 %v652
        %724 = vmatpush.msra.mxu0 %v651
        %725 = vmatpush.msra.mxu0 %v650
        %726 = vmatpush.msra.mxu0 %v649
        %727 = vmatpush.msra.mxu0 %v648
        %728 = vmatmul.f32.gmra.mxu0 %v704
        %v729 = vpop.f32.mrf.mxu0
        %v730 = vadd.f32 %v695, %v729
        %731 = vmatmul.f32.gmra.mxu0 %v707
        %v732 = vpop.f32.mrf.mxu0
        %v733 = vadd.f32 %v698, %v732
        %734 = vmatmul.f32.gmra.mxu0 %v710
        %v735 = vpop.f32.mrf.mxu0
        %v736 = vadd.f32 %v701, %v735
        %737 = vdwg.mxu0
        %v738 = vadd.f32 %v641, %v730
        %v739 = vadd.f32 %v642, %v733
        %v740 = vadd.f32 %v643, %v736
        %v741 = vld [vmem:[#allocation4 + $0x5] sm:$0xff]
        %v742 = vld [vmem:[#allocation4 + $0xd] sm:$0xff]
        %v743 = vld [vmem:[#allocation4 + $0x15] sm:$0xff]
        %s744 = scalar_lea.vmem %s3, 192
        %v745 = vld [vmem:[%s744] sm:$0xff]
        %v746 = vld [vmem:[%s744 + $0x8] sm:$0xff]
        %v747 = vld [vmem:[%s744 + $0x10] sm:$0xff]
        %v748 = vld [vmem:[%s744 + $0x18] sm:$0xff]
        %v749 = vld [vmem:[%s744 + $0x20] sm:$0xff]
        %v750 = vld [vmem:[%s744 + $0x28] sm:$0xff]
        %v751 = vld [vmem:[%s744 + $0x30] sm:$0xff]
        %v752 = vld [vmem:[%s744 + $0x38] sm:$0xff]
        %v753 = vld [vmem:[%s353 + $0x5] sm:$0xff]
        %v754 = vld [vmem:[%s353 + $0xd] sm:$0xff]
        %v755 = vld [vmem:[%s353 + $0x15] sm:$0xff]
        %s756 = scalar_lea.vmem %s4, 192
        %v757 = vld [vmem:[%s756] sm:$0xff]
        %v758 = vld [vmem:[%s756 + $0x8] sm:$0xff]
        %v759 = vld [vmem:[%s756 + $0x10] sm:$0xff]
        %v760 = vld [vmem:[%s756 + $0x18] sm:$0xff]
        %v761 = vld [vmem:[%s756 + $0x20] sm:$0xff]
        %v762 = vld [vmem:[%s756 + $0x28] sm:$0xff]
        %v763 = vld [vmem:[%s756 + $0x30] sm:$0xff]
        %v764 = vld [vmem:[%s756 + $0x38] sm:$0xff]
        %v766 = vsel %vm368, %v753, 0
        %v769 = vsel %vm368, %v754, 0
        %v772 = vsel %vm368, %v755, 0
        %774 = vmatpush.msra.mxu0 0.0
        %775 = vmatpush.msra.mxu0 0.0
        %776 = vmatpush.msra.mxu0 0.0
        %777 = vmatpush.msra.mxu0 0.0
        %778 = vmatpush.msra.mxu0 0.0
        %779 = vmatpush.msra.mxu0 0.0
        %780 = vmatpush.msra.mxu0 0.0
        %781 = vmatpush.msra.mxu0 0.0
        %782 = vmatpush.msra.mxu0 %v764
        %783 = vmatpush.msra.mxu0 %v763
        %784 = vmatpush.msra.mxu0 %v762
        %785 = vmatpush.msra.mxu0 %v761
        %786 = vmatpush.msra.mxu0 %v760
        %787 = vmatpush.msra.mxu0 %v759
        %788 = vmatpush.msra.mxu0 %v758
        %789 = vmatpush.msra.mxu0 %v757
        %790 = vmatmul.f32.gmra.mxu0 %v766
        %v791 = vpop.f32.mrf.mxu0
        %v792 = vadd.f32 0.0, %v791
        %793 = vmatmul.f32.gmra.mxu0 %v769
        %v794 = vpop.f32.mrf.mxu0
        %v795 = vadd.f32 0.0, %v794
        %796 = vmatmul.f32.gmra.mxu0 %v772
        %v797 = vpop.f32.mrf.mxu0
        %v798 = vadd.f32 0.0, %v797
        %799 = vdwg.mxu0
        %v801 = vsel %vm368, %v741, 0
        %v804 = vsel %vm368, %v742, 0
        %v807 = vsel %vm368, %v743, 0
        %809 = vmatpush.msra.mxu0 0.0
        %810 = vmatpush.msra.mxu0 0.0
        %811 = vmatpush.msra.mxu0 0.0
        %812 = vmatpush.msra.mxu0 0.0
        %813 = vmatpush.msra.mxu0 0.0
        %814 = vmatpush.msra.mxu0 0.0
        %815 = vmatpush.msra.mxu0 0.0
        %816 = vmatpush.msra.mxu0 0.0
        %817 = vmatpush.msra.mxu0 %v752
        %818 = vmatpush.msra.mxu0 %v751
        %819 = vmatpush.msra.mxu0 %v750
        %820 = vmatpush.msra.mxu0 %v749
        %821 = vmatpush.msra.mxu0 %v748
        %822 = vmatpush.msra.mxu0 %v747
        %823 = vmatpush.msra.mxu0 %v746
        %824 = vmatpush.msra.mxu0 %v745
        %825 = vmatmul.f32.gmra.mxu0 %v801
        %v826 = vpop.f32.mrf.mxu0
        %v827 = vadd.f32 %v792, %v826
        %828 = vmatmul.f32.gmra.mxu0 %v804
        %v829 = vpop.f32.mrf.mxu0
        %v830 = vadd.f32 %v795, %v829
        %831 = vmatmul.f32.gmra.mxu0 %v807
        %v832 = vpop.f32.mrf.mxu0
        %v833 = vadd.f32 %v798, %v832
        %834 = vdwg.mxu0
        %v835 = vadd.f32 %v738, %v827
        %v836 = vadd.f32 %v739, %v830
        %v837 = vadd.f32 %v740, %v833
        %v838 = vld [vmem:[#allocation4 + $0x8] sm:$0xff]
        %v839 = vld [vmem:[#allocation4 + $0x10] sm:$0xff]
        %v840 = vld [vmem:[#allocation4 + $0x18] sm:$0xff]
        %s841 = scalar_lea.vmem %s3, 256
        %v842 = vld [vmem:[%s841] sm:$0xff]
        %v843 = vld [vmem:[%s841 + $0x8] sm:$0xff]
        %v844 = vld [vmem:[%s841 + $0x10] sm:$0xff]
        %v845 = vld [vmem:[%s841 + $0x18] sm:$0xff]
        %v846 = vld [vmem:[%s841 + $0x20] sm:$0xff]
        %v847 = vld [vmem:[%s841 + $0x28] sm:$0xff]
        %v848 = vld [vmem:[%s841 + $0x30] sm:$0xff]
        %v849 = vld [vmem:[%s841 + $0x38] sm:$0xff]
        %v850 = vld [vmem:[%s353 + $0x8] sm:$0xff]
        %v851 = vld [vmem:[%s353 + $0x10] sm:$0xff]
        %v852 = vld [vmem:[%s353 + $0x18] sm:$0xff]
        %s853 = scalar_lea.vmem %s4, 256
        %v854 = vld [vmem:[%s853] sm:$0xff]
        %v855 = vld [vmem:[%s853 + $0x8] sm:$0xff]
        %v856 = vld [vmem:[%s853 + $0x10] sm:$0xff]
        %v857 = vld [vmem:[%s853 + $0x18] sm:$0xff]
        %v858 = vld [vmem:[%s853 + $0x20] sm:$0xff]
        %v859 = vld [vmem:[%s853 + $0x28] sm:$0xff]
        %v860 = vld [vmem:[%s853 + $0x30] sm:$0xff]
        %v861 = vld [vmem:[%s853 + $0x38] sm:$0xff]
        %v863 = vsel %vm368, %v850, 0
        %v866 = vsel %vm368, %v851, 0
        %v869 = vsel %vm368, %v852, 0
        %871 = vmatpush.msra.mxu0 0.0
        %872 = vmatpush.msra.mxu0 0.0
        %873 = vmatpush.msra.mxu0 0.0
        %874 = vmatpush.msra.mxu0 0.0
        %875 = vmatpush.msra.mxu0 0.0
        %876 = vmatpush.msra.mxu0 0.0
        %877 = vmatpush.msra.mxu0 0.0
        %878 = vmatpush.msra.mxu0 0.0
        %879 = vmatpush.msra.mxu0 %v861
        %880 = vmatpush.msra.mxu0 %v860
        %881 = vmatpush.msra.mxu0 %v859
        %882 = vmatpush.msra.mxu0 %v858
        %883 = vmatpush.msra.mxu0 %v857
        %884 = vmatpush.msra.mxu0 %v856
        %885 = vmatpush.msra.mxu0 %v855
        %886 = vmatpush.msra.mxu0 %v854
        %887 = vmatmul.f32.gmra.mxu0 %v863
        %v888 = vpop.f32.mrf.mxu0
        %v889 = vadd.f32 0.0, %v888
        %890 = vmatmul.f32.gmra.mxu0 %v866
        %v891 = vpop.f32.mrf.mxu0
        %v892 = vadd.f32 0.0, %v891
        %893 = vmatmul.f32.gmra.mxu0 %v869
        %v894 = vpop.f32.mrf.mxu0
        %v895 = vadd.f32 0.0, %v894
        %896 = vdwg.mxu0
        %v898 = vsel %vm368, %v838, 0
        %v901 = vsel %vm368, %v839, 0
        %v904 = vsel %vm368, %v840, 0
        %906 = vmatpush.msra.mxu0 0.0
        %907 = vmatpush.msra.mxu0 0.0
        %908 = vmatpush.msra.mxu0 0.0
        %909 = vmatpush.msra.mxu0 0.0
        %910 = vmatpush.msra.mxu0 0.0
        %911 = vmatpush.msra.mxu0 0.0
        %912 = vmatpush.msra.mxu0 0.0
        %913 = vmatpush.msra.mxu0 0.0
        %914 = vmatpush.msra.mxu0 %v849
        %915 = vmatpush.msra.mxu0 %v848
        %916 = vmatpush.msra.mxu0 %v847
        %917 = vmatpush.msra.mxu0 %v846
        %918 = vmatpush.msra.mxu0 %v845
        %919 = vmatpush.msra.mxu0 %v844
        %920 = vmatpush.msra.mxu0 %v843
        %921 = vmatpush.msra.mxu0 %v842
        %922 = vmatmul.f32.gmra.mxu0 %v898
        %v923 = vpop.f32.mrf.mxu0
        %v924 = vadd.f32 %v889, %v923
        %925 = vmatmul.f32.gmra.mxu0 %v901
        %v926 = vpop.f32.mrf.mxu0
        %v927 = vadd.f32 %v892, %v926
        %928 = vmatmul.f32.gmra.mxu0 %v904
        %v929 = vpop.f32.mrf.mxu0
        %v930 = vadd.f32 %v895, %v929
        %931 = vdwg.mxu0
        %v932 = vadd.f32 %v835, %v924
        %v933 = vadd.f32 %v836, %v927
        %v934 = vadd.f32 %v837, %v930
        %v935 = vld [vmem:[#allocation4 + $0x9] sm:$0xff]
        %v936 = vld [vmem:[#allocation4 + $0x11] sm:$0xff]
        %v937 = vld [vmem:[#allocation4 + $0x19] sm:$0xff]
        %s938 = scalar_lea.vmem %s3, 320
        %v939 = vld [vmem:[%s938] sm:$0xff]
        %v940 = vld [vmem:[%s938 + $0x8] sm:$0xff]
        %v941 = vld [vmem:[%s938 + $0x10] sm:$0xff]
        %v942 = vld [vmem:[%s938 + $0x18] sm:$0xff]
        %v943 = vld [vmem:[%s938 + $0x20] sm:$0xff]
        %v944 = vld [vmem:[%s938 + $0x28] sm:$0xff]
        %v945 = vld [vmem:[%s938 + $0x30] sm:$0xff]
        %v946 = vld [vmem:[%s938 + $0x38] sm:$0xff]
        %v947 = vld [vmem:[%s353 + $0x9] sm:$0xff]
        %v948 = vld [vmem:[%s353 + $0x11] sm:$0xff]
        %v949 = vld [vmem:[%s353 + $0x19] sm:$0xff]
        %s950 = scalar_lea.vmem %s4, 320
        %v951 = vld [vmem:[%s950] sm:$0xff]
        %v952 = vld [vmem:[%s950 + $0x8] sm:$0xff]
        %v953 = vld [vmem:[%s950 + $0x10] sm:$0xff]
        %v954 = vld [vmem:[%s950 + $0x18] sm:$0xff]
        %v955 = vld [vmem:[%s950 + $0x20] sm:$0xff]
        %v956 = vld [vmem:[%s950 + $0x28] sm:$0xff]
        %v957 = vld [vmem:[%s950 + $0x30] sm:$0xff]
        %v958 = vld [vmem:[%s950 + $0x38] sm:$0xff]
        %v960 = vsel %vm368, %v947, 0
        %v963 = vsel %vm368, %v948, 0
        %v966 = vsel %vm368, %v949, 0
        %968 = vmatpush.msra.mxu0 0.0
        %969 = vmatpush.msra.mxu0 0.0
        %970 = vmatpush.msra.mxu0 0.0
        %971 = vmatpush.msra.mxu0 0.0
        %972 = vmatpush.msra.mxu0 0.0
        %973 = vmatpush.msra.mxu0 0.0
        %974 = vmatpush.msra.mxu0 0.0
        %975 = vmatpush.msra.mxu0 0.0
        %976 = vmatpush.msra.mxu0 %v958
        %977 = vmatpush.msra.mxu0 %v957
        %978 = vmatpush.msra.mxu0 %v956
        %979 = vmatpush.msra.mxu0 %v955
        %980 = vmatpush.msra.mxu0 %v954
        %981 = vmatpush.msra.mxu0 %v953
        %982 = vmatpush.msra.mxu0 %v952
        %983 = vmatpush.msra.mxu0 %v951
        %984 = vmatmul.f32.gmra.mxu0 %v960
        %v985 = vpop.f32.mrf.mxu0
        %v986 = vadd.f32 0.0, %v985
        %987 = vmatmul.f32.gmra.mxu0 %v963
        %v988 = vpop.f32.mrf.mxu0
        %v989 = vadd.f32 0.0, %v988
        %990 = vmatmul.f32.gmra.mxu0 %v966
        %v991 = vpop.f32.mrf.mxu0
        %v992 = vadd.f32 0.0, %v991
        %993 = vdwg.mxu0
        %v995 = vsel %vm368, %v935, 0
        %v998 = vsel %vm368, %v936, 0
        %v1001 = vsel %vm368, %v937, 0
        %1003 = vmatpush.msra.mxu0 0.0
        %1004 = vmatpush.msra.mxu0 0.0
        %1005 = vmatpush.msra.mxu0 0.0
        %1006 = vmatpush.msra.mxu0 0.0
        %1007 = vmatpush.msra.mxu0 0.0
        %1008 = vmatpush.msra.mxu0 0.0
        %1009 = vmatpush.msra.mxu0 0.0
        %1010 = vmatpush.msra.mxu0 0.0
        %1011 = vmatpush.msra.mxu0 %v946
        %1012 = vmatpush.msra.mxu0 %v945
        %1013 = vmatpush.msra.mxu0 %v944
        %1014 = vmatpush.msra.mxu0 %v943
        %1015 = vmatpush.msra.mxu0 %v942
        %1016 = vmatpush.msra.mxu0 %v941
        %1017 = vmatpush.msra.mxu0 %v940
        %1018 = vmatpush.msra.mxu0 %v939
        %1019 = vmatmul.f32.gmra.mxu0 %v995
        %v1020 = vpop.f32.mrf.mxu0
        %v1021 = vadd.f32 %v986, %v1020
        %1022 = vmatmul.f32.gmra.mxu0 %v998
        %v1023 = vpop.f32.mrf.mxu0
        %v1024 = vadd.f32 %v989, %v1023
        %1025 = vmatmul.f32.gmra.mxu0 %v1001
        %v1026 = vpop.f32.mrf.mxu0
        %v1027 = vadd.f32 %v992, %v1026
        %1028 = vdwg.mxu0
        %v1029 = vadd.f32 %v932, %v1021
        %v1030 = vadd.f32 %v933, %v1024
        %v1031 = vadd.f32 %v934, %v1027
        %v1032 = vld [vmem:[%s5] sm:$0x1]
        %v1034 = vperm.slane %v1032, 0
        %v1036 = vadd.f32 %v1029, %v1034
        %v1037 = vadd.f32 %v1030, %v1034
        %v1038 = vadd.f32 %v1031, %v1034
        %vm1039 = vcmp.ge.f32.partialorder %v1036, 0.0
        %vm1040 = vcmp.ge.f32.partialorder %v1037, 0.0
        %vm1041 = vcmp.ge.f32.partialorder %v1038, 0.0
        %v1042 = vmul.f32 %v1036, 0.01
        %v1043 = vmul.f32 %v1037, 0.01
        %v1044 = vmul.f32 %v1038, 0.01
        %v1045 = vsel %vm1039, %v1036, %v1042
        %v1046 = vsel %vm1040, %v1037, %v1043
        %v1047 = vsel %vm1041, %v1038, %v1044
        %1048 = vst.msk [vmem:[#allocation5] sm:$0xff] %vm368, %v1045
        %1049 = vst.msk [vmem:[#allocation5 + $0x8] sm:$0xff] %vm368, %v1046
        %1050 = vst.msk [vmem:[#allocation5 + $0x10] sm:$0xff] %vm368, %v1047
        %1051 = vst.msk [vmem:[#allocation5 + $0x18] sm:$0xff] %vm368, 0.0
        %v1052 = vld [vmem:[#allocation5] sm:$0xff]
        %v1053 = vld [vmem:[#allocation5 + $0x8] sm:$0xff]
        %v1054 = vld [vmem:[#allocation9] sm:$0xff]
        %v1055 = vld [vmem:[#allocation9 + $0x8] sm:$0xff]
        %v1056 = vld [vmem:[#allocation9 + $0x10] sm:$0xff]
        %v1057 = vld [vmem:[#allocation9 + $0x18] sm:$0xff]
        %v1058 = vld [vmem:[#allocation9 + $0x20] sm:$0xff]
        %v1059 = vld [vmem:[#allocation9 + $0x28] sm:$0xff]
        %v1060 = vld [vmem:[#allocation9 + $0x30] sm:$0xff]
        %v1061 = vld [vmem:[#allocation9 + $0x38] sm:$0xff]
        %v1062 = vld [vmem:[#allocation5 + $0x1] sm:$0xff]
        %v1063 = vld [vmem:[#allocation5 + $0x9] sm:$0xff]
        %s1064 = scalar_lea.vmem [#allocation9], 64
        %v1065 = vld [vmem:[%s1064] sm:$0xff]
        %v1066 = vld [vmem:[%s1064 + $0x8] sm:$0xff]
        %v1067 = vld [vmem:[%s1064 + $0x10] sm:$0xff]
        %v1068 = vld [vmem:[%s1064 + $0x18] sm:$0xff]
        %v1069 = vld [vmem:[%s1064 + $0x20] sm:$0xff]
        %v1070 = vld [vmem:[%s1064 + $0x28] sm:$0xff]
        %v1071 = vld [vmem:[%s1064 + $0x30] sm:$0xff]
        %v1072 = vld [vmem:[%s1064 + $0x38] sm:$0xff]
        %v1074 = vsel %vm368, %v1062, 0
        %v1077 = vsel %vm368, %v1063, 0
        %1079 = vmatpush.msra.mxu0 0.0
        %1080 = vmatpush.msra.mxu0 0.0
        %1081 = vmatpush.msra.mxu0 0.0
        %1082 = vmatpush.msra.mxu0 0.0
        %1083 = vmatpush.msra.mxu0 0.0
        %1084 = vmatpush.msra.mxu0 0.0
        %1085 = vmatpush.msra.mxu0 0.0
        %1086 = vmatpush.msra.mxu0 0.0
        %1087 = vmatpush.msra.mxu0 %v1072
        %1088 = vmatpush.msra.mxu0 %v1071
        %1089 = vmatpush.msra.mxu0 %v1070
        %1090 = vmatpush.msra.mxu0 %v1069
        %1091 = vmatpush.msra.mxu0 %v1068
        %1092 = vmatpush.msra.mxu0 %v1067
        %1093 = vmatpush.msra.mxu0 %v1066
        %1094 = vmatpush.msra.mxu0 %v1065
        %1095 = vmatmul.f32.gmra.mxu0 %v1074
        %v1096 = vpop.f32.mrf.mxu0
        %v1097 = vadd.f32 0.0, %v1096
        %1098 = vmatmul.f32.gmra.mxu0 %v1077
        %v1099 = vpop.f32.mrf.mxu0
        %v1100 = vadd.f32 0.0, %v1099
        %1101 = vdwg.mxu0
        %v1103 = vsel %vm368, %v1052, 0
        %v1106 = vsel %vm368, %v1053, 0
        %1108 = vmatpush.msra.mxu0 0.0
        %1109 = vmatpush.msra.mxu0 0.0
        %1110 = vmatpush.msra.mxu0 0.0
        %1111 = vmatpush.msra.mxu0 0.0
        %1112 = vmatpush.msra.mxu0 0.0
        %1113 = vmatpush.msra.mxu0 0.0
        %1114 = vmatpush.msra.mxu0 0.0
        %1115 = vmatpush.msra.mxu0 0.0
        %1116 = vmatpush.msra.mxu0 %v1061
        %1117 = vmatpush.msra.mxu0 %v1060
        %1118 = vmatpush.msra.mxu0 %v1059
        %1119 = vmatpush.msra.mxu0 %v1058
        %1120 = vmatpush.msra.mxu0 %v1057
        %1121 = vmatpush.msra.mxu0 %v1056
        %1122 = vmatpush.msra.mxu0 %v1055
        %1123 = vmatpush.msra.mxu0 %v1054
        %1124 = vmatmul.f32.gmra.mxu0 %v1103
        %v1125 = vpop.f32.mrf.mxu0
        %v1126 = vadd.f32 %v1097, %v1125
        %1127 = vmatmul.f32.gmra.mxu0 %v1106
        %v1128 = vpop.f32.mrf.mxu0
        %v1129 = vadd.f32 %v1100, %v1128
        %1130 = vdwg.mxu0
        %v1131 = vld [vmem:[#allocation5 + $0x4] sm:$0xff]
        %v1132 = vld [vmem:[#allocation5 + $0xc] sm:$0xff]
        %s1133 = scalar_lea.vmem [#allocation9], 128
        %v1134 = vld [vmem:[%s1133] sm:$0xff]
        %v1135 = vld [vmem:[%s1133 + $0x8] sm:$0xff]
        %v1136 = vld [vmem:[%s1133 + $0x10] sm:$0xff]
        %v1137 = vld [vmem:[%s1133 + $0x18] sm:$0xff]
        %v1138 = vld [vmem:[%s1133 + $0x20] sm:$0xff]
        %v1139 = vld [vmem:[%s1133 + $0x28] sm:$0xff]
        %v1140 = vld [vmem:[%s1133 + $0x30] sm:$0xff]
        %v1141 = vld [vmem:[%s1133 + $0x38] sm:$0xff]
        %v1143 = vsel %vm368, %v1131, 0
        %v1146 = vsel %vm368, %v1132, 0
        %1148 = vmatpush.msra.mxu0 0.0
        %1149 = vmatpush.msra.mxu0 0.0
        %1150 = vmatpush.msra.mxu0 0.0
        %1151 = vmatpush.msra.mxu0 0.0
        %1152 = vmatpush.msra.mxu0 0.0
        %1153 = vmatpush.msra.mxu0 0.0
        %1154 = vmatpush.msra.mxu0 0.0
        %1155 = vmatpush.msra.mxu0 0.0
        %1156 = vmatpush.msra.mxu0 %v1141
        %1157 = vmatpush.msra.mxu0 %v1140
        %1158 = vmatpush.msra.mxu0 %v1139
        %1159 = vmatpush.msra.mxu0 %v1138
        %1160 = vmatpush.msra.mxu0 %v1137
        %1161 = vmatpush.msra.mxu0 %v1136
        %1162 = vmatpush.msra.mxu0 %v1135
        %1163 = vmatpush.msra.mxu0 %v1134
        %1164 = vmatmul.f32.gmra.mxu0 %v1143
        %v1165 = vpop.f32.mrf.mxu0
        %v1166 = vadd.f32 0.0, %v1165
        %1167 = vmatmul.f32.gmra.mxu0 %v1146
        %v1168 = vpop.f32.mrf.mxu0
        %v1169 = vadd.f32 0.0, %v1168
        %1170 = vdwg.mxu0
        %v1171 = vadd.f32 %v1126, %v1166
        %v1172 = vadd.f32 %v1129, %v1169
        %v1173 = vld [vmem:[#allocation5 + $0x5] sm:$0xff]
        %v1174 = vld [vmem:[#allocation5 + $0xd] sm:$0xff]
        %s1175 = scalar_lea.vmem [#allocation9], 192
        %v1176 = vld [vmem:[%s1175] sm:$0xff]
        %v1177 = vld [vmem:[%s1175 + $0x8] sm:$0xff]
        %v1178 = vld [vmem:[%s1175 + $0x10] sm:$0xff]
        %v1179 = vld [vmem:[%s1175 + $0x18] sm:$0xff]
        %v1180 = vld [vmem:[%s1175 + $0x20] sm:$0xff]
        %v1181 = vld [vmem:[%s1175 + $0x28] sm:$0xff]
        %v1182 = vld [vmem:[%s1175 + $0x30] sm:$0xff]
        %v1183 = vld [vmem:[%s1175 + $0x38] sm:$0xff]
        %v1185 = vsel %vm368, %v1173, 0
        %v1188 = vsel %vm368, %v1174, 0
        %1190 = vmatpush.msra.mxu0 0.0
        %1191 = vmatpush.msra.mxu0 0.0
        %1192 = vmatpush.msra.mxu0 0.0
        %1193 = vmatpush.msra.mxu0 0.0
        %1194 = vmatpush.msra.mxu0 0.0
        %1195 = vmatpush.msra.mxu0 0.0
        %1196 = vmatpush.msra.mxu0 0.0
        %1197 = vmatpush.msra.mxu0 0.0
        %1198 = vmatpush.msra.mxu0 %v1183
        %1199 = vmatpush.msra.mxu0 %v1182
        %1200 = vmatpush.msra.mxu0 %v1181
        %1201 = vmatpush.msra.mxu0 %v1180
        %1202 = vmatpush.msra.mxu0 %v1179
        %1203 = vmatpush.msra.mxu0 %v1178
        %1204 = vmatpush.msra.mxu0 %v1177
        %1205 = vmatpush.msra.mxu0 %v1176
        %1206 = vmatmul.f32.gmra.mxu0 %v1185
        %v1207 = vpop.f32.mrf.mxu0
        %v1208 = vadd.f32 0.0, %v1207
        %1209 = vmatmul.f32.gmra.mxu0 %v1188
        %v1210 = vpop.f32.mrf.mxu0
        %v1211 = vadd.f32 0.0, %v1210
        %1212 = vdwg.mxu0
        %v1213 = vadd.f32 %v1171, %v1208
        %v1214 = vadd.f32 %v1172, %v1211
        %v1215 = vld [vmem:[#allocation5 + $0x8] sm:$0xff]
        %v1216 = vld [vmem:[#allocation5 + $0x10] sm:$0xff]
        %s1217 = scalar_lea.vmem [#allocation9], 256
        %v1218 = vld [vmem:[%s1217] sm:$0xff]
        %v1219 = vld [vmem:[%s1217 + $0x8] sm:$0xff]
        %v1220 = vld [vmem:[%s1217 + $0x10] sm:$0xff]
        %v1221 = vld [vmem:[%s1217 + $0x18] sm:$0xff]
        %v1222 = vld [vmem:[%s1217 + $0x20] sm:$0xff]
        %v1223 = vld [vmem:[%s1217 + $0x28] sm:$0xff]
        %v1224 = vld [vmem:[%s1217 + $0x30] sm:$0xff]
        %v1225 = vld [vmem:[%s1217 + $0x38] sm:$0xff]
        %v1227 = vsel %vm368, %v1215, 0
        %v1230 = vsel %vm368, %v1216, 0
        %1232 = vmatpush.msra.mxu0 0.0
        %1233 = vmatpush.msra.mxu0 0.0
        %1234 = vmatpush.msra.mxu0 0.0
        %1235 = vmatpush.msra.mxu0 0.0
        %1236 = vmatpush.msra.mxu0 0.0
        %1237 = vmatpush.msra.mxu0 0.0
        %1238 = vmatpush.msra.mxu0 0.0
        %1239 = vmatpush.msra.mxu0 0.0
        %1240 = vmatpush.msra.mxu0 %v1225
        %1241 = vmatpush.msra.mxu0 %v1224
        %1242 = vmatpush.msra.mxu0 %v1223
        %1243 = vmatpush.msra.mxu0 %v1222
        %1244 = vmatpush.msra.mxu0 %v1221
        %1245 = vmatpush.msra.mxu0 %v1220
        %1246 = vmatpush.msra.mxu0 %v1219
        %1247 = vmatpush.msra.mxu0 %v1218
        %1248 = vmatmul.f32.gmra.mxu0 %v1227
        %v1249 = vpop.f32.mrf.mxu0
        %v1250 = vadd.f32 0.0, %v1249
        %1251 = vmatmul.f32.gmra.mxu0 %v1230
        %v1252 = vpop.f32.mrf.mxu0
        %v1253 = vadd.f32 0.0, %v1252
        %1254 = vdwg.mxu0
        %v1255 = vadd.f32 %v1213, %v1250
        %v1256 = vadd.f32 %v1214, %v1253
        %v1257 = vld [vmem:[#allocation5 + $0x9] sm:$0xff]
        %v1258 = vld [vmem:[#allocation5 + $0x11] sm:$0xff]
        %s1259 = scalar_lea.vmem [#allocation9], 320
        %v1260 = vld [vmem:[%s1259] sm:$0xff]
        %v1261 = vld [vmem:[%s1259 + $0x8] sm:$0xff]
        %v1262 = vld [vmem:[%s1259 + $0x10] sm:$0xff]
        %v1263 = vld [vmem:[%s1259 + $0x18] sm:$0xff]
        %v1264 = vld [vmem:[%s1259 + $0x20] sm:$0xff]
        %v1265 = vld [vmem:[%s1259 + $0x28] sm:$0xff]
        %v1266 = vld [vmem:[%s1259 + $0x30] sm:$0xff]
        %v1267 = vld [vmem:[%s1259 + $0x38] sm:$0xff]
        %v1269 = vsel %vm368, %v1257, 0
        %v1272 = vsel %vm368, %v1258, 0
        %1274 = vmatpush.msra.mxu0 0.0
        %1275 = vmatpush.msra.mxu0 0.0
        %1276 = vmatpush.msra.mxu0 0.0
        %1277 = vmatpush.msra.mxu0 0.0
        %1278 = vmatpush.msra.mxu0 0.0
        %1279 = vmatpush.msra.mxu0 0.0
        %1280 = vmatpush.msra.mxu0 0.0
        %1281 = vmatpush.msra.mxu0 0.0
        %1282 = vmatpush.msra.mxu0 %v1267
        %1283 = vmatpush.msra.mxu0 %v1266
        %1284 = vmatpush.msra.mxu0 %v1265
        %1285 = vmatpush.msra.mxu0 %v1264
        %1286 = vmatpush.msra.mxu0 %v1263
        %1287 = vmatpush.msra.mxu0 %v1262
        %1288 = vmatpush.msra.mxu0 %v1261
        %1289 = vmatpush.msra.mxu0 %v1260
        %1290 = vmatmul.f32.gmra.mxu0 %v1269
        %v1291 = vpop.f32.mrf.mxu0
        %v1292 = vadd.f32 0.0, %v1291
        %1293 = vmatmul.f32.gmra.mxu0 %v1272
        %v1294 = vpop.f32.mrf.mxu0
        %v1295 = vadd.f32 0.0, %v1294
        %1296 = vdwg.mxu0
        %v1297 = vadd.f32 %v1255, %v1292
        %v1298 = vadd.f32 %v1256, %v1295
        %v1299 = vld [vmem:[%s7] sm:$0x1]
        %v1301 = vperm.slane %v1299, 0
        %v1303 = vadd.f32 %v1297, %v1301
        %v1304 = vadd.f32 %v1298, %v1301
        %vm1305 = vcmp.ge.f32.partialorder %v1303, 0.0
        %vm1306 = vcmp.ge.f32.partialorder %v1304, 0.0
        %v1307 = vmul.f32 %v1303, 0.01
        %v1308 = vmul.f32 %v1304, 0.01
        %v1309 = vsel %vm1305, %v1303, %v1307
        %v1310 = vsel %vm1306, %v1304, %v1308
        %1311 = vst.msk [vmem:[#allocation6] sm:$0xff] %vm368, %v1309
        %1312 = vst.msk [vmem:[#allocation6 + $0x8] sm:$0xff] %vm368, %v1310
        loop: start=0, step=1, limit=4
        $region68: #{decoder_forward.4} parent=51 // loop_pre_header
          _
        $region69: #{decoder_forward.4} parent=51 // loop_header
          %s1314 = sphi 0, %s1318
          %p1315 = scmp.ge.s32.totalorder %s1314, 4
        $region70: #{decoder_forward.4} parent=51 // loop_header_branch
          %1317 = sbr.rel (%p1315) target = $region74
        $region71: #{decoder_forward.4} parent=51 // loop_body
          %s1319 = smul.u32 %s1314, 4
          %s1320 = scalar_lea.vmem [#allocation6], %s1319
          %v1321 = vld [vmem:[%s1320] sm:$0x3]
          %s1322 = smul.u32 %s1314, 2
          %s1323 = scalar_lea.vmem %s357, %s1322
          %vm1324 = vcmask 517120
          %1325 = vst.msk [vmem:[%s1323] sm:$0x3] %vm1324, %v1321
        $region72: #{decoder_forward.4} parent=51 // loop_footer
          %s1318 = sadd.s32 1, %s1314
        $region73: #{decoder_forward.4} parent=51 // loop_footer_branch
          %1313 = sbr.rel target = $region69
        $region74: #{decoder_forward.4} parent=51 // loop_exit
          _
        %p1326 = scmp.lt.s32.totalorder %s21, 1
        %s1327 = scalar_select %p1326, %s21, 1
        %s1328 = smul.addr %s1327, 8
        %s1329 = scalar_lea.vmem %s8, %s1328
        // Predicated region
        $region75: #{decoder_forward.4} parent=51 // pred_check
          %p1330 = pneg %p217
        $region76: #{decoder_forward.4} parent=51 // pred_check_branch
          %1332 = sbr.rel (%p1330) target = $region78
        $region77: #{decoder_forward.4} parent=51 // pred_region
          _
        $region78: #{decoder_forward.4} parent=51 // pred_fallthru
          _
      $region52: #{decoder_forward.4} parent=5 // pred_fallthru
        _
      %p1333 = scmp.le.s32.totalorder 2, %s16
      // Predicated region
      $region79: #{decoder_forward.4} parent=5 // pred_check
        %p1334 = pneg %p1333
      $region80: #{decoder_forward.4} parent=5 // pred_check_branch
        %1336 = sbr.rel (%p1334) target = $region82
      $region81: #{decoder_forward.4} parent=5 // pred_region
        %s1337 = ssub.s32 %s16, 2
        // Predicated region
        $region83: #{decoder_forward.4} parent=81 // pred_check
          %p1338 = pneg %p223
        $region84: #{decoder_forward.4} parent=81 // pred_check_branch
          %1340 = sbr.rel (%p1338) target = $region86
        $region85: #{decoder_forward.4} parent=81 // pred_region
          %p1341 = scmp.lt.s32.totalorder %s22, 1
          %s1342 = scalar_select %p1341, %s22, 1
          %s1343 = smul.addr %s1342, 8
          %s1344 = scalar_lea.vmem %s8, %s1343
        $region86: #{decoder_forward.4} parent=81 // pred_fallthru
          _
      $region82: #{decoder_forward.4} parent=5 // pred_fallthru
        _
    $region6: #{decoder_forward.4} parent=1 // loop_footer
      %s20 = sadd.s32 1, %s16
    $region7: #{decoder_forward.4} parent=1 // loop_footer_branch
      %15 = sbr.rel target = $region3
    $region8: #{decoder_forward.4} parent=1 // loop_exit
      _
    %1345 = vsyncpa [#allocation8], 1
    %s1346 = scalar_lea.sflag [#allocation8], 1
    %1347 = vsyncpa %s1346, 1
    %1348 = vsyncpa [#allocation10], 1

</llo_original>
